<compile_context>
chip_gen: v7x
topology: tpu7x:2x2x1
jax: 0.10.0
libtpu: 0.0.40
codegen_flags: <defaults>
</compile_context>

<pallas_src>
import functools
import math

import jax
import jax.numpy as jnp
from jax import lax
from jax.experimental import pallas as pl
from jax.experimental.pallas import tpu as pltpu


SH_FEATS = 9       # legendre_polys=3 -> 9 real spherical harmonics
SH_PAD = 16        # lane-padded K for the first matmul


def _round_up(x, m):
    return (x + m - 1) // m * m


def _choose_tile_n(n, max_tile=512, min_tile=8):
    """Largest row tile <= max_tile, multiple of 8, with >=2 grid steps when possible."""
    n8 = _round_up(max(n, 1), 8)
    half = _round_up((n8 + 1) // 2, 8)      # keep >=2 grid steps (v7x megacore)
    return max(min(max_tile, half), min_tile)


# ----------------------------------------------------------------------------
# SIREN parameter init (deterministic; mirrors SirenNet init scheme), then a
# one-time transform: fold sine frequencies into W/b, pad layer-0 input to
# SH_PAD, cast weights to bf16 (biases stay f32).
# ----------------------------------------------------------------------------
def init_siren_params(key, input_dim, hidden_dim, output_dim, num_layers,
                      w0=1.0, w0_initial=30.0):
    params = []
    dims = [input_dim] + [hidden_dim] * num_layers
    for i in range(num_layers):
        d_in, d_out = dims[i], dims[i + 1]
        key, kw, kb = jax.random.split(key, 3)
        bound = (1.0 / d_in) if i == 0 else (math.sqrt(6.0 / d_in) / w0)
        W = jax.random.uniform(kw, (d_in, d_out), jnp.float32, -bound, bound)
        b = jax.random.uniform(kb, (1, d_out), jnp.float32, -bound, bound)
        params.append((W, b))
    key, kw, kb = jax.random.split(key, 3)
    bound = math.sqrt(6.0 / hidden_dim) / w0
    Wl = jax.random.uniform(kw, (hidden_dim, output_dim), jnp.float32, -bound, bound)
    bl = jax.random.uniform(kb, (1, output_dim), jnp.float32, -bound, bound)
    params.append((Wl, bl))
    return params


def prepare_siren_params(params, w0=1.0, w0_initial=30.0, pad_input_to=SH_PAD):
    """Fold frequencies, pad layer-0 K to pad_input_to, cast W->bf16, keep b f32."""
    prepared = []
    n_sine = len(params) - 1
    for i, (W, b) in enumerate(params):
        W = W.astype(jnp.float32)
        b = b.astype(jnp.float32)
        if i < n_sine:
            freq = w0_initial if i == 0 else w0
            W = W * freq
            b = b * freq
        if i == 0 and pad_input_to is not None and W.shape[0] < pad_input_to:
            W = jnp.pad(W, ((0, pad_input_to - W.shape[0]), (0, 0)))
        prepared.append((W.astype(jnp.bfloat16), b))
    return prepared


# ----------------------------------------------------------------------------
# Pallas kernel: SH encoding (VPU) + full SIREN MLP (MXU) for one row tile.
# ----------------------------------------------------------------------------
def sh_siren_kernel(*refs, num_sine_layers):
    x_ref = refs[0]          # (tile_n, 2)  lon/lat in degrees, f32
    o_ref = refs[-1]         # (tile_n, out_dim)
    w_refs = refs[1:-1]      # W0, b0, W1, b1, ..., Wlast, blast

    lonlat = x_ref[...].astype(jnp.float32)
    tn = lonlat.shape[0]

    deg2rad = jnp.float32(math.pi / 180.0)
    lon = lonlat[:, 0:1] * deg2rad                     # (tn, 1)
    lat = lonlat[:, 1:2] * deg2rad                     # (tn, 1)
    phi = lon + jnp.float32(math.pi)                   # azimuth in [0, 2pi)
    theta = jnp.float32(math.pi / 2.0) - lat           # colatitude in [0, pi]
    st = jnp.sin(theta)
    ct = jnp.cos(theta)
    xs = st * jnp.cos(phi)
    ys = st * jnp.sin(phi)
    zs = ct

    feats = (
        jnp.float32(0.28209479177387814),              # Y_0^0 (constant)
        0.4886025119029199 * ys,                       # Y_1^-1
        0.4886025119029199 * zs,                       # Y_1^0
        0.4886025119029199 * xs,                       # Y_1^1
        1.0925484305920792 * xs * ys,                  # Y_2^-2
        1.0925484305920792 * ys * zs,                  # Y_2^-1
        0.31539156525252005 * (3.0 * zs * zs - 1.0),   # Y_2^0
        1.0925484305920792 * xs * zs,                  # Y_2^1
        0.5462742152960396 * (xs * xs - ys * ys),      # Y_2^2
    )

    # Scatter the 9 features into a lane-padded (tn, 16) slab via lane selects
    # (pure VPU work; lanes 9..15 stay zero and match the zero-padded W0 rows).
    lane = lax.broadcasted_iota(jnp.int32, (tn, SH_PAD), 1)
    h = jnp.zeros((tn, SH_PAD), jnp.float32)
    for k, f in enumerate(feats):
        h = jnp.where(lane == k, f, h)

    # SIREN sine layers: frequencies are already folded into W/b.
    for i in range(num_sine_layers):
        W = w_refs[2 * i][...]          # bf16, (K, hidden)
        b = w_refs[2 * i + 1][...]      # f32,  (1, hidden)
        h = jnp.sin(
            jnp.dot(h.astype(jnp.bfloat16), W, preferred_element_type=jnp.float32) + b
        )

    Wl = w_refs[-2][...]
    bl = w_refs[-1][...]
    out = jnp.dot(h.astype(jnp.bfloat16), Wl, preferred_element_type=jnp.float32) + bl
    o_ref[...] = out.astype(o_ref.dtype)


def sh_siren_forward_pallas(lonlat, params, tile_n=None):
    """lonlat: (N, 2) degrees. params: prepared (bf16 W, f32 b) list. -> (N, out_dim) f32."""
    lonlat = lonlat.astype(jnp.float32)
    n = lonlat.shape[0]
    out_dim = params[-1][0].shape[1]
    num_sine_layers = len(params) - 1

    if tile_n is None:
        tile_n = _choose_tile_n(n)
    n_pad = _round_up(n, tile_n)
    if n_pad != n:
        lonlat = jnp.pad(lonlat, ((0, n_pad - n), (0, 0)))
    grid = (n_pad // tile_n,)

    flat_params = []
    in_specs = [pl.BlockSpec((tile_n, 2), lambda i: (i, 0))]
    for (W, b) in params:
        flat_params.extend([W, b])
        in_specs.append(pl.BlockSpec(W.shape, lambda i: (0, 0)))   # resident weights
        in_specs.append(pl.BlockSpec(b.shape, lambda i: (0, 0)))

    kernel = functools.partial(sh_siren_kernel, num_sine_layers=num_sine_layers)
    out = pl.pallas_call(
        kernel,
        out_shape=jax.ShapeDtypeStruct((n_pad, out_dim), jnp.float32),
        grid_spec=pltpu.PrefetchScalarGridSpec(
            num_scalar_prefetch=0,
            grid=grid,
            in_specs=in_specs,
            out_specs=pl.BlockSpec((tile_n, out_dim), lambda i: (i, 0)),
        ),
        compiler_params=pltpu.CompilerParams(
            dimension_semantics=("parallel",),
            vmem_limit_bytes=32 * 1024 * 1024,
        ),
    )(lonlat, *flat_params)
    return out[:n] if n_pad != n else out


# ----------------------------------------------------------------------------
# Plain-JAX reference (mirrors the kernel math, incl. bf16 matmul operands).
# ----------------------------------------------------------------------------
def spherical_harmonics_padded_ref(lonlat, pad_to=SH_PAD):
    lon = jnp.deg2rad(lonlat[:, 0].astype(jnp.float32))
    lat = jnp.deg2rad(lonlat[:, 1].astype(jnp.float32))
    phi = lon + jnp.pi
    theta = jnp.pi / 2.0 - lat
    st, ct = jnp.sin(theta), jnp.cos(theta)
    x = st * jnp.cos(phi)
    y = st * jnp.sin(phi)
    z = ct
    feats = [
        0.28209479177387814 * jnp.ones_like(x),
        0.4886025119029199 * y,
        0.4886025119029199 * z,
        0.4886025119029199 * x,
        1.0925484305920792 * x * y,
        1.0925484305920792 * y * z,
        0.31539156525252005 * (3.0 * z * z - 1.0),
        1.0925484305920792 * x * z,
        0.5462742152960396 * (x * x - y * y),
    ]
    sh = jnp.stack(feats, axis=-1).astype(jnp.float32)
    return jnp.pad(sh, ((0, 0), (0, pad_to - sh.shape[-1])))


def sh_siren_forward_ref(lonlat, params):
    h = spherical_harmonics_padded_ref(lonlat)
    for (W, b) in params[:-1]:
        h = jnp.sin(jnp.dot(h.astype(jnp.bfloat16), W, preferred_element_type=jnp.float32) + b)
    Wl, bl = params[-1]
    return jnp.dot(h.astype(jnp.bfloat16), Wl, preferred_element_type=jnp.float32) + bl


# ----------------------------------------------------------------------------
# LocationEncoder equivalent (SH positional encoding -> SIREN head(s)).
# ----------------------------------------------------------------------------
class LocationEncoderPallas:
    def __init__(self, hparams, key, w0=1.0, w0_initial=30.0):
        self.hparams = dict(hparams)
        # SphericalHarmonics(legendre_polys=3) -> single head, embedding_dim = [9]
        self.embedding_dims = [hparams["legendre_polys"] ** 2]
        self.nets = []
        for dim in self.embedding_dims:
            key, sub = jax.random.split(key)
            raw = init_siren_params(
                sub,
                input_dim=dim,
                hidden_dim=hparams["hidden_dim"],
                output_dim=hparams["output_dim"],
                num_layers=hparams["num_layers"],
                w0=w0,
                w0_initial=w0_initial,
            )
            self.nets.append(
                prepare_siren_params(raw, w0=w0, w0_initial=w0_initial, pad_input_to=SH_PAD)
            )

    def __call__(self, x):
        # Single SH head: return the fused-kernel output directly (no zeros-
        # accumulator HBM round trip). Multiple heads would be summed here.
        outs = [sh_siren_forward_pallas(x, params) for params in self.nets]
        res = outs[0]
        for o in outs[1:]:
            res = res + o
        return res

    def reference(self, x):
        outs = [sh_siren_forward_ref(x, params) for params in self.nets]
        res = outs[0]
        for o in outs[1:]:
            res = res + o
        return res


if __name__ == "__main__":
    key = jax.random.PRNGKey(0)
    k_lon, k_lat, k_params = jax.random.split(key, 3)

    # Small, deterministic test; N is deliberately NOT a multiple of the tile
    # to exercise the cdiv/padding path.
    N = 100
    hparams = {
        "legendre_polys": 3,          # -> 9 SH features
        "hidden_dim": 128,
        "num_layers": 2,              # sine layers before the final linear
        "output_dim": 512,            # module hard-codes 512-wide features
        "harmonics_calculation": "analytic",
    }

    lon = jax.random.uniform(k_lon, (N, 1), jnp.float32, -180.0, 180.0)
    lat = jax.random.uniform(k_lat, (N, 1), jnp.float32, -90.0, 90.0)
    x = jnp.concatenate([lon, lat], axis=-1)  # (N, 2) lon/lat degrees

    enc = LocationEncoderPallas(hparams, k_params)

    out = jax.block_until_ready(enc(x))
    ref = jax.block_until_ready(enc.reference(x))

    assert out.shape == (N, hparams["output_dim"]) and out.dtype == jnp.float32
    # bf16 matmul operands (f32 accumulation) -> tolerance loosened vs pure f32.
    assert jnp.allclose(out, ref, atol=3e-2, rtol=3e-2), float(jnp.max(jnp.abs(out - ref)))

    print("KERNEL_OK")
</pallas_src>

<mosaic_0001>
module attributes {stable_mosaic.version = 11 : i64} {
  func.func @sh_siren_kernel(%arg0: i32, %arg1: memref<56x2xf32, #tpu.memory_space<vmem>>, %arg2: memref<16x128xbf16, #tpu.memory_space<vmem>>, %arg3: memref<1x128xf32, #tpu.memory_space<vmem>>, %arg4: memref<128x128xbf16, #tpu.memory_space<vmem>>, %arg5: memref<1x128xf32, #tpu.memory_space<vmem>>, %arg6: memref<128x512xbf16, #tpu.memory_space<vmem>>, %arg7: memref<1x512xf32, #tpu.memory_space<vmem>>, %arg8: memref<56x512xf32, #tpu.memory_space<vmem>>) attributes {dimension_semantics = [#tpu.dimension_semantics<parallel>], iteration_bounds = array<i64: 2>, scalar_prefetch = 0 : i64, scratch_operands = 0 : i64, tpu.core_type = #tpu.core_type<tc>, window_params = [{transform_indices = @transform_0, window_bounds = array<i64: 56, 2>}, {pipeline_mode = #tpu.pipeline_mode<synchronous>, transform_indices = @transform_1, window_bounds = array<i64: 16, 128>}, {pipeline_mode = #tpu.pipeline_mode<synchronous>, transform_indices = @transform_2, window_bounds = array<i64: 1, 128>}, {pipeline_mode = #tpu.pipeline_mode<synchronous>, transform_indices = @transform_3, window_bounds = array<i64: 128, 128>}, {pipeline_mode = #tpu.pipeline_mode<synchronous>, transform_indices = @transform_4, window_bounds = array<i64: 1, 128>}, {pipeline_mode = #tpu.pipeline_mode<synchronous>, transform_indices = @transform_5, window_bounds = array<i64: 128, 512>}, {pipeline_mode = #tpu.pipeline_mode<synchronous>, transform_indices = @transform_6, window_bounds = array<i64: 1, 512>}, {transform_indices = @transform_7, window_bounds = array<i64: 56, 512>}]} {
    %c0 = arith.constant 0 : index
    %c0_0 = arith.constant 0 : index
    %0 = vector.load %arg1[%c0, %c0_0] : memref<56x2xf32, #tpu.memory_space<vmem>>, vector<56x2xf32>
    %1 = vector.extract_strided_slice %0 {offsets = [0, 0], sizes = [56, 1], strides = [1, 1]} : vector<56x2xf32> to vector<56x1xf32>
    %cst = arith.constant 0.0174532924 : f32
    %2 = vector.broadcast %cst : f32 to vector<56x1xf32>
    %3 = arith.mulf %1, %2 : vector<56x1xf32>
    %4 = vector.extract_strided_slice %0 {offsets = [0, 1], sizes = [56, 1], strides = [1, 1]} : vector<56x2xf32> to vector<56x1xf32>
    %cst_1 = arith.constant 0.0174532924 : f32
    %5 = vector.broadcast %cst_1 : f32 to vector<56x1xf32>
    %6 = arith.mulf %4, %5 : vector<56x1xf32>
    %cst_2 = arith.constant 3.14159274 : f32
    %7 = vector.broadcast %cst_2 : f32 to vector<56x1xf32>
    %8 = arith.addf %3, %7 : vector<56x1xf32>
    %cst_3 = arith.constant 1.57079637 : f32
    %9 = vector.broadcast %cst_3 : f32 to vector<56x1xf32>
    %10 = arith.subf %9, %6 : vector<56x1xf32>
    %11 = math.sin %10 : vector<56x1xf32>
    %12 = math.cos %10 : vector<56x1xf32>
    %13 = math.cos %8 : vector<56x1xf32>
    %14 = arith.mulf %11, %13 : vector<56x1xf32>
    %15 = math.sin %8 : vector<56x1xf32>
    %16 = arith.mulf %11, %15 : vector<56x1xf32>
    %cst_4 = arith.constant 0.488602519 : f32
    %17 = vector.broadcast %cst_4 : f32 to vector<56x1xf32>
    %18 = arith.mulf %17, %16 : vector<56x1xf32>
    %cst_5 = arith.constant 0.488602519 : f32
    %19 = vector.broadcast %cst_5 : f32 to vector<56x1xf32>
    %20 = arith.mulf %19, %12 : vector<56x1xf32>
    %cst_6 = arith.constant 0.488602519 : f32
    %21 = vector.broadcast %cst_6 : f32 to vector<56x1xf32>
    %22 = arith.mulf %21, %14 : vector<56x1xf32>
    %cst_7 = arith.constant 1.09254849 : f32
    %23 = vector.broadcast %cst_7 : f32 to vector<56x1xf32>
    %24 = arith.mulf %23, %14 : vector<56x1xf32>
    %25 = arith.mulf %24, %16 : vector<56x1xf32>
    %cst_8 = arith.constant 1.09254849 : f32
    %26 = vector.broadcast %cst_8 : f32 to vector<56x1xf32>
    %27 = arith.mulf %26, %16 : vector<56x1xf32>
    %28 = arith.mulf %27, %12 : vector<56x1xf32>
    %cst_9 = arith.constant 3.000000e+00 : f32
    %29 = vector.broadcast %cst_9 : f32 to vector<56x1xf32>
    %30 = arith.mulf %29, %12 : vector<56x1xf32>
    %31 = arith.mulf %30, %12 : vector<56x1xf32>
    %cst_10 = arith.constant 1.000000e+00 : f32
    %32 = vector.broadcast %cst_10 : f32 to vector<56x1xf32>
    %33 = arith.subf %31, %32 : vector<56x1xf32>
    %cst_11 = arith.constant 0.31539157 : f32
    %34 = vector.broadcast %cst_11 : f32 to vector<56x1xf32>
    %35 = arith.mulf %34, %33 : vector<56x1xf32>
    %cst_12 = arith.constant 1.09254849 : f32
    %36 = vector.broadcast %cst_12 : f32 to vector<56x1xf32>
    %37 = arith.mulf %36, %14 : vector<56x1xf32>
    %38 = arith.mulf %37, %12 : vector<56x1xf32>
    %39 = arith.mulf %14, %14 : vector<56x1xf32>
    %40 = arith.mulf %16, %16 : vector<56x1xf32>
    %41 = arith.subf %39, %40 : vector<56x1xf32>
    %cst_13 = arith.constant 0.546274245 : f32
    %42 = vector.broadcast %cst_13 : f32 to vector<56x1xf32>
    %43 = arith.mulf %42, %41 : vector<56x1xf32>
    %44 = tpu.iota {dimensions = array<i32: 1>} : vector<56x16xi32>
    %cst_14 = arith.constant 0.000000e+00 : f32
    %45 = vector.broadcast %cst_14 : f32 to vector<56x16xf32>
    %c0_i32 = arith.constant 0 : i32
    %46 = vector.broadcast %c0_i32 : i32 to vector<56x16xi32>
    %47 = arith.cmpi eq, %44, %46 : vector<56x16xi32>
    %cst_15 = arith.constant 0.282094806 : f32
    %48 = vector.broadcast %cst_15 : f32 to vector<56x16xf32>
    %49 = arith.select %47, %48, %45 : vector<56x16xi1>, vector<56x16xf32>
    %c1_i32 = arith.constant 1 : i32
    %50 = vector.broadcast %c1_i32 : i32 to vector<56x16xi32>
    %51 = arith.cmpi eq, %44, %50 : vector<56x16xi32>
    %52 = vector.shape_cast %18 : vector<56x1xf32> to vector<56x1xf32>
    %53 = vector.broadcast %52 : vector<56x1xf32> to vector<56x16xf32>
    %54 = arith.select %51, %53, %49 : vector<56x16xi1>, vector<56x16xf32>
    %c2_i32 = arith.constant 2 : i32
    %55 = vector.broadcast %c2_i32 : i32 to vector<56x16xi32>
    %56 = arith.cmpi eq, %44, %55 : vector<56x16xi32>
    %57 = vector.shape_cast %20 : vector<56x1xf32> to vector<56x1xf32>
    %58 = vector.broadcast %57 : vector<56x1xf32> to vector<56x16xf32>
    %59 = arith.select %56, %58, %54 : vector<56x16xi1>, vector<56x16xf32>
    %c3_i32 = arith.constant 3 : i32
    %60 = vector.broadcast %c3_i32 : i32 to vector<56x16xi32>
    %61 = arith.cmpi eq, %44, %60 : vector<56x16xi32>
    %62 = vector.shape_cast %22 : vector<56x1xf32> to vector<56x1xf32>
    %63 = vector.broadcast %62 : vector<56x1xf32> to vector<56x16xf32>
    %64 = arith.select %61, %63, %59 : vector<56x16xi1>, vector<56x16xf32>
    %c4_i32 = arith.constant 4 : i32
    %65 = vector.broadcast %c4_i32 : i32 to vector<56x16xi32>
    %66 = arith.cmpi eq, %44, %65 : vector<56x16xi32>
    %67 = vector.shape_cast %25 : vector<56x1xf32> to vector<56x1xf32>
    %68 = vector.broadcast %67 : vector<56x1xf32> to vector<56x16xf32>
    %69 = arith.select %66, %68, %64 : vector<56x16xi1>, vector<56x16xf32>
    %c5_i32 = arith.constant 5 : i32
    %70 = vector.broadcast %c5_i32 : i32 to vector<56x16xi32>
    %71 = arith.cmpi eq, %44, %70 : vector<56x16xi32>
    %72 = vector.shape_cast %28 : vector<56x1xf32> to vector<56x1xf32>
    %73 = vector.broadcast %72 : vector<56x1xf32> to vector<56x16xf32>
    %74 = arith.select %71, %73, %69 : vector<56x16xi1>, vector<56x16xf32>
    %c6_i32 = arith.constant 6 : i32
    %75 = vector.broadcast %c6_i32 : i32 to vector<56x16xi32>
    %76 = arith.cmpi eq, %44, %75 : vector<56x16xi32>
    %77 = vector.shape_cast %35 : vector<56x1xf32> to vector<56x1xf32>
    %78 = vector.broadcast %77 : vector<56x1xf32> to vector<56x16xf32>
    %79 = arith.select %76, %78, %74 : vector<56x16xi1>, vector<56x16xf32>
    %c7_i32 = arith.constant 7 : i32
    %80 = vector.broadcast %c7_i32 : i32 to vector<56x16xi32>
    %81 = arith.cmpi eq, %44, %80 : vector<56x16xi32>
    %82 = vector.shape_cast %38 : vector<56x1xf32> to vector<56x1xf32>
    %83 = vector.broadcast %82 : vector<56x1xf32> to vector<56x16xf32>
    %84 = arith.select %81, %83, %79 : vector<56x16xi1>, vector<56x16xf32>
    %c8_i32 = arith.constant 8 : i32
    %85 = vector.broadcast %c8_i32 : i32 to vector<56x16xi32>
    %86 = arith.cmpi eq, %44, %85 : vector<56x16xi32>
    %87 = vector.shape_cast %43 : vector<56x1xf32> to vector<56x1xf32>
    %88 = vector.broadcast %87 : vector<56x1xf32> to vector<56x16xf32>
    %89 = arith.select %86, %88, %84 : vector<56x16xi1>, vector<56x16xf32>
    %c0_16 = arith.constant 0 : index
    %c0_17 = arith.constant 0 : index
    %90 = vector.load %arg2[%c0_16, %c0_17] : memref<16x128xbf16, #tpu.memory_space<vmem>>, vector<16x128xbf16>
    %c0_18 = arith.constant 0 : index
    %c0_19 = arith.constant 0 : index
    %91 = vector.load %arg3[%c0_18, %c0_19] : memref<1x128xf32, #tpu.memory_space<vmem>>, vector<1x128xf32>
    %92 = arith.truncf %89 : vector<56x16xf32> to vector<56x16xbf16>
    %cst_20 = arith.constant dense<0.000000e+00> : vector<56x128xf32>
    %93 = tpu.matmul %92, %90, %cst_20 {dimension_numbers = #tpu.dot_dimension_numbers<[1], [0], [0], [1], [0, 0, 1, 1], [], []>} : vector<56x16xbf16>, vector<16x128xbf16>, vector<56x128xf32> -> vector<56x128xf32>
    %94 = vector.broadcast %91 : vector<1x128xf32> to vector<56x128xf32>
    %95 = arith.addf %93, %94 : vector<56x128xf32>
    %96 = math.sin %95 : vector<56x128xf32>
    %c0_21 = arith.constant 0 : index
    %c0_22 = arith.constant 0 : index
    %97 = vector.load %arg4[%c0_21, %c0_22] : memref<128x128xbf16, #tpu.memory_space<vmem>>, vector<128x128xbf16>
    %c0_23 = arith.constant 0 : index
    %c0_24 = arith.constant 0 : index
    %98 = vector.load %arg5[%c0_23, %c0_24] : memref<1x128xf32, #tpu.memory_space<vmem>>, vector<1x128xf32>
    %99 = arith.truncf %96 : vector<56x128xf32> to vector<56x128xbf16>
    %cst_25 = arith.constant dense<0.000000e+00> : vector<56x128xf32>
    %100 = tpu.matmul %99, %97, %cst_25 {dimension_numbers = #tpu.dot_dimension_numbers<[1], [0], [0], [1], [0, 0, 1, 1], [], []>} : vector<56x128xbf16>, vector<128x128xbf16>, vector<56x128xf32> -> vector<56x128xf32>
    %101 = vector.broadcast %98 : vector<1x128xf32> to vector<56x128xf32>
    %102 = arith.addf %100, %101 : vector<56x128xf32>
    %103 = math.sin %102 : vector<56x128xf32>
    %c0_26 = arith.constant 0 : index
    %c0_27 = arith.constant 0 : index
    %104 = vector.load %arg6[%c0_26, %c0_27] : memref<128x512xbf16, #tpu.memory_space<vmem>>, vector<128x512xbf16>
    %c0_28 = arith.constant 0 : index
    %c0_29 = arith.constant 0 : index
    %105 = vector.load %arg7[%c0_28, %c0_29] : memref<1x512xf32, #tpu.memory_space<vmem>>, vector<1x512xf32>
    %106 = arith.truncf %103 : vector<56x128xf32> to vector<56x128xbf16>
    %cst_30 = arith.constant dense<0.000000e+00> : vector<56x512xf32>
    %107 = tpu.matmul %106, %104, %cst_30 {dimension_numbers = #tpu.dot_dimension_numbers<[1], [0], [0], [1], [0, 0, 1, 1], [], []>} : vector<56x128xbf16>, vector<128x512xbf16>, vector<56x512xf32> -> vector<56x512xf32>
    %108 = vector.broadcast %105 : vector<1x512xf32> to vector<56x512xf32>
    %109 = arith.addf %107, %108 : vector<56x512xf32>
    %c0_31 = arith.constant 0 : index
    %c0_32 = arith.constant 0 : index
    %110 = vector.load %arg8[%c0_31, %c0_32] : memref<56x512xf32, #tpu.memory_space<vmem>>, vector<56x512xf32>
    tpu.vector_store %arg8[%c0_31, %c0_32], %109 {strides = array<i32>} : memref<56x512xf32, #tpu.memory_space<vmem>>, vector<56x512xf32>,
    return
  }
  func.func @transform_0(%arg0: i32) -> (i32, i32) {
    %c0_i32 = arith.constant 0 : i32
    %c0_i32_0 = arith.constant 0 : i32
    return %arg0, %c0_i32 : i32, i32
  }
  func.func @transform_1(%arg0: i32) -> (i32, i32) {
    %c0_i32 = arith.constant 0 : i32
    %c0_i32_0 = arith.constant 0 : i32
    %c0_i32_1 = arith.constant 0 : i32
    return %c0_i32, %c0_i32_0 : i32, i32
  }
  func.func @transform_2(%arg0: i32) -> (i32, i32) {
    %c0_i32 = arith.constant 0 : i32
    %c0_i32_0 = arith.constant 0 : i32
    %c0_i32_1 = arith.constant 0 : i32
    return %c0_i32, %c0_i32_0 : i32, i32
  }
  func.func @transform_3(%arg0: i32) -> (i32, i32) {
    %c0_i32 = arith.constant 0 : i32
    %c0_i32_0 = arith.constant 0 : i32
    %c0_i32_1 = arith.constant 0 : i32
    return %c0_i32, %c0_i32_0 : i32, i32
  }
  func.func @transform_4(%arg0: i32) -> (i32, i32) {
    %c0_i32 = arith.constant 0 : i32
    %c0_i32_0 = arith.constant 0 : i32
    %c0_i32_1 = arith.constant 0 : i32
    return %c0_i32, %c0_i32_0 : i32, i32
  }
  func.func @transform_5(%arg0: i32) -> (i32, i32) {
    %c0_i32 = arith.constant 0 : i32
    %c0_i32_0 = arith.constant 0 : i32
    %c0_i32_1 = arith.constant 0 : i32
    return %c0_i32, %c0_i32_0 : i32, i32
  }
  func.func @transform_6(%arg0: i32) -> (i32, i32) {
    %c0_i32 = arith.constant 0 : i32
    %c0_i32_0 = arith.constant 0 : i32
    %c0_i32_1 = arith.constant 0 : i32
    return %c0_i32, %c0_i32_0 : i32, i32
  }
  func.func @transform_7(%arg0: i32) -> (i32, i32) {
    %c0_i32 = arith.constant 0 : i32
    %c0_i32_0 = arith.constant 0 : i32
    return %arg0, %c0_i32 : i32, i32
  }
}

</mosaic_0001>

<llo_original>
// kernel: tpu_custom_call.1
$region0: #{tpu_custom_call.1}
  #allocation0 [shape = 'u32[]', space=smem, size = 0x4, offset = 0x4, fixed_abs, tag = 'smem constant byte address 0x4 - core index']
  #allocation1 [shape = 'u32[144,128]{1,0:T(1,128)}', space=vmem, size = 0x12000, scoped, tag = 'internal scratch']
  %s0 = inlined_call_operand.vmem [shape: f32[112,2], index: 0, kind: input, shape index: {}]
  %s1 = inlined_call_operand.vmem [shape: bf16[16,128], index: 1, kind: input, shape index: {}]
  %s2 = inlined_call_operand.vmem [shape: f32[1,128], index: 2, kind: input, shape index: {}]
  %s3 = inlined_call_operand.vmem [shape: bf16[128,128], index: 3, kind: input, shape index: {}]
  %s4 = inlined_call_operand.vmem [shape: f32[1,128], index: 4, kind: input, shape index: {}]
  %s5 = inlined_call_operand.hbm [shape: bf16[128,512], index: 5, kind: input, shape index: {}]
  %s6 = inlined_call_operand.vmem [shape: f32[1,512], index: 6, kind: input, shape index: {}]
  %s7 = inlined_call_operand.hbm [shape: f32[112,512], index: 7, kind: output, shape index: {}]
  %s8 = sld [smem:[#allocation0]]
  $region65: #{tpu_custom_call.1} parent=0
    _
  %s10 = ssub.s32 1, %s8
  %s11 = scalar_select 0, %s10, %s8
  $region1: #{tpu_custom_call.1} parent=0
    #allocation2 [shape = 'u8[131072]{0}', space=vmem, size = 0x20000, scoped, tag = 'input window, operand 5, single buffered']
    #allocation3 [shape = 's32[2]{0}', space=sflag, size = 0x8, scoped, tag = 'scoped memory for tpu_custom_call.1']
    #allocation4 [shape = 's32[2]{0}', space=sflag, size = 0x8, scoped, tag = 'scoped memory for tpu_custom_call.1']
    #allocation5 [shape = 'u8[229376]{0}', space=vmem, size = 0x38000, scoped, tag = 'output window, operand 0']
    %12 = vsyncpa [#allocation3], 0
    %13 = vsyncpa [#allocation4], 0
    %s14 = scalar_lea.sflag [#allocation4], 1
    %15 = vsyncpa %s14, 0
    loop: start=0, step=1, limit=4
    $region2: #{tpu_custom_call.1} parent=1 // loop_pre_header
      _
    $region3: #{tpu_custom_call.1} parent=1 // loop_header
      %s17 = sphi 0, %s21
      %p18 = scmp.ge.s32.totalorder %s17, 4
      %s27 = sphi 0, %s29
      %s30 = sphi 0, %s27
      %s31 = sphi 0, %s30
      %s47 = sphi 0, %s31
      %s51 = sphi 0, %s51
      %s53 = sphi 0, %s51
      %s54 = sphi 0, %s53
      %s68 = sphi 0, %s54
      %s72 = sphi 0, %s72
      %s74 = sphi 0, %s72
      %s75 = sphi 0, %s74
      %s89 = sphi 0, %s75
      %s93 = sphi 0, %s93
      %s95 = sphi 0, %s93
      %s96 = sphi 0, %s95
      %s110 = sphi 0, %s96
      %s114 = sphi 0, %s114
      %s116 = sphi 0, %s114
      %s117 = sphi 0, %s116
      %s131 = sphi 0, %s117
      %s135 = sphi 0, %s135
      %s137 = sphi 0, %s135
      %s138 = sphi 0, %s137
      %s152 = sphi 0, %s138
      %s156 = sphi 0, %s156
      %s158 = sphi 0, %s156
      %s159 = sphi 0, %s158
      %s173 = sphi 0, %s159
      %s179 = sphi 0, %s181
      %s182 = sphi 0, %s179
      %s183 = sphi 0, %s182
      %s199 = sphi 0, %s183
    $region4: #{tpu_custom_call.1} parent=1 // loop_header_branch
      %20 = sbr.rel (%p18) target = $region8
    $region5: #{tpu_custom_call.1} parent=1 // loop_body
      %s22 = ssub.s32 %s17, 1
      %s23 = ssub.s32 %s17, 2
      %s24 = sadd.s32 %s17, 1
      %s25 = ssub.s32 %s17, %s24
      %p26 = scmp.eq.s32.totalorder %s25, 0
      %s28 = sadd.s32 %s27, 1
      %s29 = scalar_select %p26, %s27, %s28
      %p32 = pneg %p26
      %p33 = scmp.eq.s32.totalorder %s17, 1
      %p34 = por %p32, %p33
      %p35 = scmp.ne.s32.totalorder %s27, %s30
      %p36 = scmp.eq.s32.totalorder %s17, 0
      %p37 = por %p35, %p36
      %p38 = scmp.ne.s32.totalorder %s27, %s30
      %p39 = scmp.eq.s32.totalorder %s22, 1
      %p40 = por %p38, %p39
      %p41 = scmp.ne.s32.totalorder %s30, %s31
      %p42 = scmp.eq.s32.totalorder %s22, 0
      %p43 = por %p41, %p42
      %p44 = scmp.ne.s32.totalorder %s30, %s31
      %p45 = scmp.eq.s32.totalorder %s23, 1
      %p46 = por %p44, %p45
      %p48 = scmp.ne.s32.totalorder %s31, %s47
      %p49 = scmp.eq.s32.totalorder %s23, 0
      %p50 = por %p48, %p49
      %s52 = sadd.s32 %s51, 1
      %p55 = scmp.eq.s32.totalorder %s17, 1
      %p56 = scmp.ne.s32.totalorder %s51, %s53
      %p57 = scmp.eq.s32.totalorder %s17, 0
      %p58 = por %p56, %p57
      %p59 = scmp.ne.s32.totalorder %s51, %s53
      %p60 = scmp.eq.s32.totalorder %s22, 1
      %p61 = por %p59, %p60
      %p62 = scmp.ne.s32.totalorder %s53, %s54
      %p63 = scmp.eq.s32.totalorder %s22, 0
      %p64 = por %p62, %p63
      %p65 = scmp.ne.s32.totalorder %s53, %s54
      %p66 = scmp.eq.s32.totalorder %s23, 1
      %p67 = por %p65, %p66
      %p69 = scmp.ne.s32.totalorder %s54, %s68
      %p70 = scmp.eq.s32.totalorder %s23, 0
      %p71 = por %p69, %p70
      %s73 = sadd.s32 %s72, 1
      %p76 = scmp.eq.s32.totalorder %s17, 1
      %p77 = scmp.ne.s32.totalorder %s72, %s74
      %p78 = scmp.eq.s32.totalorder %s17, 0
      %p79 = por %p77, %p78
      %p80 = scmp.ne.s32.totalorder %s72, %s74
      %p81 = scmp.eq.s32.totalorder %s22, 1
      %p82 = por %p80, %p81
      %p83 = scmp.ne.s32.totalorder %s74, %s75
      %p84 = scmp.eq.s32.totalorder %s22, 0
      %p85 = por %p83, %p84
      %p86 = scmp.ne.s32.totalorder %s74, %s75
      %p87 = scmp.eq.s32.totalorder %s23, 1
      %p88 = por %p86, %p87
      %p90 = scmp.ne.s32.totalorder %s75, %s89
      %p91 = scmp.eq.s32.totalorder %s23, 0
      %p92 = por %p90, %p91
      %s94 = sadd.s32 %s93, 1
      %p97 = scmp.eq.s32.totalorder %s17, 1
      %p98 = scmp.ne.s32.totalorder %s93, %s95
      %p99 = scmp.eq.s32.totalorder %s17, 0
      %p100 = por %p98, %p99
      %p101 = scmp.ne.s32.totalorder %s93, %s95
      %p102 = scmp.eq.s32.totalorder %s22, 1
      %p103 = por %p101, %p102
      %p104 = scmp.ne.s32.totalorder %s95, %s96
      %p105 = scmp.eq.s32.totalorder %s22, 0
      %p106 = por %p104, %p105
      %p107 = scmp.ne.s32.totalorder %s95, %s96
      %p108 = scmp.eq.s32.totalorder %s23, 1
      %p109 = por %p107, %p108
      %p111 = scmp.ne.s32.totalorder %s96, %s110
      %p112 = scmp.eq.s32.totalorder %s23, 0
      %p113 = por %p111, %p112
      %s115 = sadd.s32 %s114, 1
      %p118 = scmp.eq.s32.totalorder %s17, 1
      %p119 = scmp.ne.s32.totalorder %s114, %s116
      %p120 = scmp.eq.s32.totalorder %s17, 0
      %p121 = por %p119, %p120
      %p122 = scmp.ne.s32.totalorder %s114, %s116
      %p123 = scmp.eq.s32.totalorder %s22, 1
      %p124 = por %p122, %p123
      %p125 = scmp.ne.s32.totalorder %s116, %s117
      %p126 = scmp.eq.s32.totalorder %s22, 0
      %p127 = por %p125, %p126
      %p128 = scmp.ne.s32.totalorder %s116, %s117
      %p129 = scmp.eq.s32.totalorder %s23, 1
      %p130 = por %p128, %p129
      %p132 = scmp.ne.s32.totalorder %s117, %s131
      %p133 = scmp.eq.s32.totalorder %s23, 0
      %p134 = por %p132, %p133
      %s136 = sadd.s32 %s135, 1
      %p139 = scmp.eq.s32.totalorder %s17, 1
      %p140 = scmp.ne.s32.totalorder %s135, %s137
      %p141 = scmp.eq.s32.totalorder %s17, 0
      %p142 = por %p140, %p141
      %p143 = scmp.ne.s32.totalorder %s135, %s137
      %p144 = scmp.eq.s32.totalorder %s22, 1
      %p145 = por %p143, %p144
      %p146 = scmp.ne.s32.totalorder %s137, %s138
      %p147 = scmp.eq.s32.totalorder %s22, 0
      %p148 = por %p146, %p147
      %p149 = scmp.ne.s32.totalorder %s137, %s138
      %p150 = scmp.eq.s32.totalorder %s23, 1
      %p151 = por %p149, %p150
      %p153 = scmp.ne.s32.totalorder %s138, %s152
      %p154 = scmp.eq.s32.totalorder %s23, 0
      %p155 = por %p153, %p154
      %s157 = sadd.s32 %s156, 1
      %p160 = scmp.eq.s32.totalorder %s17, 1
      %p161 = scmp.ne.s32.totalorder %s156, %s158
      %p162 = scmp.eq.s32.totalorder %s17, 0
      %p163 = por %p161, %p162
      %p164 = scmp.ne.s32.totalorder %s156, %s158
      %p165 = scmp.eq.s32.totalorder %s22, 1
      %p166 = por %p164, %p165
      %p167 = scmp.ne.s32.totalorder %s158, %s159
      %p168 = scmp.eq.s32.totalorder %s22, 0
      %p169 = por %p167, %p168
      %p170 = scmp.ne.s32.totalorder %s158, %s159
      %p171 = scmp.eq.s32.totalorder %s23, 1
      %p172 = por %p170, %p171
      %p174 = scmp.ne.s32.totalorder %s159, %s173
      %p175 = scmp.eq.s32.totalorder %s23, 0
      %p176 = por %p174, %p175
      %s177 = ssub.s32 %s17, %s24
      %p178 = scmp.eq.s32.totalorder %s177, 0
      %s180 = sadd.s32 %s179, 1
      %s181 = scalar_select %p178, %s179, %s180
      %p184 = pneg %p178
      %p185 = scmp.eq.s32.totalorder %s17, 1
      %p186 = por %p184, %p185
      %p187 = scmp.ne.s32.totalorder %s179, %s182
      %p188 = scmp.eq.s32.totalorder %s17, 0
      %p189 = por %p187, %p188
      %p190 = scmp.ne.s32.totalorder %s179, %s182
      %p191 = scmp.eq.s32.totalorder %s22, 1
      %p192 = por %p190, %p191
      %p193 = scmp.ne.s32.totalorder %s182, %s183
      %p194 = scmp.eq.s32.totalorder %s22, 0
      %p195 = por %p193, %p194
      %p196 = scmp.ne.s32.totalorder %s182, %s183
      %p197 = scmp.eq.s32.totalorder %s23, 1
      %p198 = por %p196, %p197
      %p200 = scmp.ne.s32.totalorder %s183, %s199
      %p201 = scmp.eq.s32.totalorder %s23, 0
      %p202 = por %p200, %p201
      %p203 = scmp.le.s32.totalorder 1, %s17
      %p204 = scmp.lt.s32.totalorder %s17, 3
      %p205 = pnand %p203, %p204
      %p206 = pneg %p205
      // Predicated region
      $region9: #{tpu_custom_call.1} parent=5 // pred_check
        _
      $region10: #{tpu_custom_call.1} parent=5 // pred_check_branch
        %208 = sbr.rel (%p205) target = $region12
      $region11: #{tpu_custom_call.1} parent=5 // pred_region
        %s209 = ssub.s32 %s17, 1
        // Predicated region
        $region13: #{tpu_custom_call.1} parent=11 // pred_check
          %p210 = pneg %p64
        $region14: #{tpu_custom_call.1} parent=11 // pred_check_branch
          %212 = sbr.rel (%p210) target = $region16
        $region15: #{tpu_custom_call.1} parent=11 // pred_region
          _
        $region16: #{tpu_custom_call.1} parent=11 // pred_fallthru
          _
        // Predicated region
        $region17: #{tpu_custom_call.1} parent=11 // pred_check
          %p213 = pneg %p85
        $region18: #{tpu_custom_call.1} parent=11 // pred_check_branch
          %215 = sbr.rel (%p213) target = $region20
        $region19: #{tpu_custom_call.1} parent=11 // pred_region
          _
        $region20: #{tpu_custom_call.1} parent=11 // pred_fallthru
          _
        // Predicated region
        $region21: #{tpu_custom_call.1} parent=11 // pred_check
          %p216 = pneg %p106
        $region22: #{tpu_custom_call.1} parent=11 // pred_check_branch
          %218 = sbr.rel (%p216) target = $region24
        $region23: #{tpu_custom_call.1} parent=11 // pred_region
          _
        $region24: #{tpu_custom_call.1} parent=11 // pred_fallthru
          _
        // Predicated region
        $region25: #{tpu_custom_call.1} parent=11 // pred_check
          %p219 = pneg %p127
        $region26: #{tpu_custom_call.1} parent=11 // pred_check_branch
          %221 = sbr.rel (%p219) target = $region28
        $region27: #{tpu_custom_call.1} parent=11 // pred_region
          _
        $region28: #{tpu_custom_call.1} parent=11 // pred_fallthru
          _
        // Predicated region
        $region29: #{tpu_custom_call.1} parent=11 // pred_check
          %p222 = pneg %p148
        $region30: #{tpu_custom_call.1} parent=11 // pred_check_branch
          %224 = sbr.rel (%p222) target = $region32
        $region31: #{tpu_custom_call.1} parent=11 // pred_region
          %s226 = ssub.s32 4096, 4096
          %227 = vsyncadd [#allocation3], %s226
          %s228 = sshll.u32 [#allocation2], 4
          %s229 = int_to_ptr.vmem [resolvable:$true] %s228
          %234 = dma.hbm_to_vmem [thread:$0]  %s5, 4096, %s229, [#allocation3], 256, 256, 16
        $region32: #{tpu_custom_call.1} parent=11 // pred_fallthru
          _
        // Predicated region
        $region33: #{tpu_custom_call.1} parent=11 // pred_check
          %p235 = pneg %p169
        $region34: #{tpu_custom_call.1} parent=11 // pred_check_branch
          %237 = sbr.rel (%p235) target = $region36
        $region35: #{tpu_custom_call.1} parent=11 // pred_region
          _
        $region36: #{tpu_custom_call.1} parent=11 // pred_fallthru
          _
      $region12: #{tpu_custom_call.1} parent=5 // pred_fallthru
        _
      %p238 = scmp.lt.s32.totalorder %s17, 2
      // Predicated region
      $region37: #{tpu_custom_call.1} parent=5 // pred_check
        %p239 = pneg %p238
      $region38: #{tpu_custom_call.1} parent=5 // pred_check_branch
        %241 = sbr.rel (%p239) target = $region40
      $region39: #{tpu_custom_call.1} parent=5 // pred_region
        // Predicated region
        $region41: #{tpu_custom_call.1} parent=39 // pred_check
          %p242 = pneg %p37
        $region42: #{tpu_custom_call.1} parent=39 // pred_check_branch
          %244 = sbr.rel (%p242) target = $region44
        $region43: #{tpu_custom_call.1} parent=39 // pred_region
          %s245 = smul.u32 7, %s17
          %p246 = scmp.lt.s32.totalorder %s245, 13
          %s247 = scalar_select %p246, %s245, 13
          %s248 = smul.addr %s247, 8
          %s249 = scalar_lea.vmem %s0, %s248
          %s250 = smul.u32 7, %s17
        $region44: #{tpu_custom_call.1} parent=39 // pred_fallthru
          _
      $region40: #{tpu_custom_call.1} parent=5 // pred_fallthru
        _
      %p251 = scmp.le.s32.totalorder 1, %s17
      %p252 = scmp.lt.s32.totalorder %s17, 3
      %p253 = pnand %p251, %p252
      %p254 = pneg %p253
      // Predicated region
      $region45: #{tpu_custom_call.1} parent=5 // pred_check
        _
      $region46: #{tpu_custom_call.1} parent=5 // pred_check_branch
        %256 = sbr.rel (%p253) target = $region48
      $region47: #{tpu_custom_call.1} parent=5 // pred_region
        %s257 = ssub.s32 %s17, 1
        // Predicated region
        $region49: #{tpu_custom_call.1} parent=47 // pred_check
          %p258 = pneg %p148
        $region50: #{tpu_custom_call.1} parent=47 // pred_check_branch
          %260 = sbr.rel (%p258) target = $region52
        $region51: #{tpu_custom_call.1} parent=47 // pred_region
          %261 = dma.done [#allocation3], 4096
        $region52: #{tpu_custom_call.1} parent=47 // pred_fallthru
          _
        %s262 = smul.u32 7, %s22
        %p263 = scmp.lt.s32.totalorder %s262, 13
        %s264 = scalar_select %p263, %s262, 13
        %s265 = smul.addr %s264, 8
        %s266 = scalar_lea.vmem %s0, %s265
        %p267 = pneg %p43
        %p268 = pneg %p40
        %p269 = pneg %p64
        %p270 = pneg %p61
        %p271 = pneg %p85
        %p272 = pneg %p82
        %p273 = pneg %p106
        %p274 = pneg %p103
        %p275 = pneg %p127
        %p276 = pneg %p124
        %p277 = pneg %p148
        %p278 = pneg %p145
        %p279 = pneg %p169
        %p280 = pneg %p166
        %p281 = pneg %p195
        %p282 = pneg %p192
        %s283 = sand.u32 %s182, 1
        %s284 = scalar_lea.sflag [#allocation4], %s283
        %s285 = sand.u32 %s182, 1
        %s286 = smul.addr %s285, 224
        %s287 = scalar_lea.vmem [#allocation5], %s286
        %s288 = smul.u32 7, %s22
        %p289 = scmp.lt.s32.totalorder %s288, 13
        %s290 = scalar_select %p289, %s288, 13
        %s291 = smul.addr %s290, 8
        %s292 = scalar_lea.vmem %s0, %s291
        %s293 = smul.u32 7, %s22
        %s294 = smul.u32 7, %s22
        %v296 = vld [vmem:[%s292] sm:$0xff]
        %v297 = vld [vmem:[%s292 + $0x8] sm:$0xff]
        %v298 = vld [vmem:[%s292 + $0x10] sm:$0xff]
        %v299 = vld [vmem:[%s292 + $0x18] sm:$0xff]
        %v300 = vld [vmem:[%s292 + $0x20] sm:$0xff]
        %v301 = vld [vmem:[%s292 + $0x28] sm:$0xff]
        %v302 = vld [vmem:[%s292 + $0x30] sm:$0xff]
        %v303 = vmul.f32 %v296, 0.017453292
        %v304 = vmul.f32 %v297, 0.017453292
        %v305 = vmul.f32 %v298, 0.017453292
        %v306 = vmul.f32 %v299, 0.017453292
        %v307 = vmul.f32 %v300, 0.017453292
        %v308 = vmul.f32 %v301, 0.017453292
        %v309 = vmul.f32 %v302, 0.017453292
        %v310 = vadd.f32 %v303, 3.1415927
        %v311 = vadd.f32 %v304, 3.1415927
        %v312 = vadd.f32 %v305, 3.1415927
        %v313 = vadd.f32 %v306, 3.1415927
        %v314 = vadd.f32 %v307, 3.1415927
        %v315 = vadd.f32 %v308, 3.1415927
        %v316 = vadd.f32 %v309, 3.1415927
        %v317 = vsub.f32 1.5707964, %v303
        %v318 = vsub.f32 1.5707964, %v304
        %v319 = vsub.f32 1.5707964, %v305
        %v320 = vsub.f32 1.5707964, %v306
        %v321 = vsub.f32 1.5707964, %v307
        %v322 = vsub.f32 1.5707964, %v308
        %v323 = vsub.f32 1.5707964, %v309
        %v324 = vand.u32 2147483647, %v317
        %vm325 = vcmp.le.f32.partialorder %v324, 0.7853982
        %vm326 = vcmp.lt.s32.totalorder %v317, 0
        %v327 = vand.u32 %v317, 2139095040
        %v328 = vshrl.u32 %v327, 23
        %v329 = vsub.s32 %v328, 127
        %v330 = vand.u32 2147483647, %v317
        %v331 = vand.u32 %v330, 8388607
        %v332 = vor.u32 %v331, 8388608
        %v333 = vsub.s32 0, %v332
        %v334 = vadd.s32 %v329, 1
        %vm335 = vcmp.gt.s32.totalorder %v334, 0
        %v336 = vsel %vm335, %v334, 0
        %v337 = vshrl.u32 %v336, 5
        %v338 = vand.u32 %v336, 31
        %v339 = vsub.s32 32, %v338
        %v340 = vshrl.u32 683565275, %v339
        %v341 = vshll.u32 683565275, %v338
        %v342 = vshrl.u32 2475754826, %v339
        %v343 = vor.u32 %v341, %v342
        %v344 = vshll.u32 2475754826, %v338
        %v345 = vshrl.u32 2131351028, %v339
        %v346 = vor.u32 %v344, %v345
        %v347 = vshll.u32 2131351028, %v338
        %v348 = vshrl.u32 2102212464, %v339
        %v349 = vor.u32 %v347, %v348
        %v350 = vshll.u32 2102212464, %v338
        %v351 = vshrl.u32 920167782, %v339
        %v352 = vor.u32 %v350, %v351
        %v353 = vshll.u32 920167782, %v338
        %v354 = vshrl.u32 1326507024, %v339
        %v355 = vor.u32 %v353, %v354
        %vm356 = vcmp.lt.s32.totalorder %v337, 1
        %vm357 = vcmp.lt.s32.totalorder %v337, 2
        %vm358 = vcmp.lt.s32.totalorder %v337, 3
        %vm359 = vcmp.lt.s32.totalorder %v337, 4
        %v360 = vsel %vm356, %v340, %v343
        %v361 = vsel %vm359, %v349, 2102212464
        %v362 = vsel %vm358, %v346, %v361
        %v363 = vsel %vm357, %v360, %v362
        %v364 = vsel %vm356, %v343, %v346
        %v365 = vsel %vm359, %v352, 920167782
        %v366 = vsel %vm358, %v349, %v365
        %v367 = vsel %vm357, %v364, %v366
        %v368 = vsel %vm356, %v346, %v349
        %v369 = vsel %vm359, %v355, 1326507024
        %v370 = vsel %vm358, %v352, %v369
        %v371 = vsel %vm357, %v368, %v370
        %v372 = vshll.u32 %v332, 8
        %v373 = vmul.u32.u64.compose %v372, %v371
        %v374 = vextract.low.u32 %v373
        %v375 = vextract.high.u32 %v373
        %v376 = vmul.u32.u64.compose %v372, %v367
        %v377 = vextract.low.u32 %v376
        %v378 = vextract.high.u32 %v376
        %v379 = vmul.u32 %v372, %v363
        %v380 = vadd.s32 %v375, %v377
        %vm381 = vc.u32 %v375, %v377
        %v382 = vadd.s32 %v378, 1
        %v383 = vsel %vm381, %v382, %v378
        %v384 = vadd.s32 %v379, %v383
        %v385 = vadd.s32 %v384, 536870912
        %v386 = vshrl.u32 %v385, 30
        %v387 = vshll.u32 %v386, 30
        %v388 = vsub.s32 %v384, %v387
        %vm389 = vcmp.lt.s32.totalorder %v388, 0
        %v390 = vsub.s32 0, %v388
        %v391 = vsel %vm389, %v390, %v388
        %v392 = vclz %v391
        %v393 = vsub.s32 %v392, 2
        %vm394 = vcmp.gt.s32.totalorder 0, %v393
        %v395 = vsel %vm394, 0, %v393
        %v396 = vsub.s32 32, %v395
        %v397 = vshll.u32 %v388, %v395
        %v398 = vshrl.u32 %v380, %v396
        %v399 = vor.u32 %v397, %v398
        %v400 = vsub.s32 4294967266, %v395
        %v401 = vadd.s32 %v400, 127
        %v402 = vshll.u32 %v401, 23
        %v403 = vor.u32 4788187, %v402
        %v404 = vand.u32 2147483647, %v403
        %v406 = vcvt.s32.f32 %v399
        %v407 = vmul.f32 %v406, %v404
        %v408 = vxor.u32 %v407, 2147483648
        %v409 = vsel %vm326, %v408, %v407
        %v410 = vsub.s32 4, %v386
        %v411 = vsel %vm326, %v410, %v386
        %v412 = vsel %vm325, %v317, %v409
        %v413 = vsel %vm325, 0, %v411
        %v414 = vcosq.f32.pop %v412
        %v415 = vsinq.f32.pop %v412
        %vm416 = vweird.f32 %v317
        %v417 = vadd.s32 %v413, 3
        %v418 = vand.u32 %v417, 3
        %vm419 = vcmp.lt.s32.totalorder %v418, 2
        %vm420 = vcmp.eq.s32.totalorder %v418, 0
        %v421 = vxor.u32 %v415, 2147483648
        %v422 = vsel %vm420, %v414, %v421
        %vm423 = vcmp.eq.s32.totalorder %v418, 2
        %v424 = vxor.u32 %v414, 2147483648
        %v425 = vsel %vm423, %v424, %v415
        %v426 = vsel %vm419, %v422, %v425
        %v427 = vsel %vm416, nan, %v426
        %v428 = vand.u32 2147483647, %v318
        %vm429 = vcmp.le.f32.partialorder %v428, 0.7853982
        %vm430 = vcmp.lt.s32.totalorder %v318, 0
        %v431 = vand.u32 %v318, 2139095040
        %v432 = vshrl.u32 %v431, 23
        %v433 = vsub.s32 %v432, 127
        %v434 = vand.u32 2147483647, %v318
        %v435 = vand.u32 %v434, 8388607
        %v436 = vor.u32 %v435, 8388608
        %v437 = vsub.s32 0, %v436
        %v438 = vadd.s32 %v433, 1
        %vm439 = vcmp.gt.s32.totalorder %v438, 0
        %v440 = vsel %vm439, %v438, 0
        %v441 = vshrl.u32 %v440, 5
        %v442 = vand.u32 %v440, 31
        %v443 = vsub.s32 32, %v442
        %v444 = vshrl.u32 683565275, %v443
        %v445 = vshll.u32 683565275, %v442
        %v446 = vshrl.u32 2475754826, %v443
        %v447 = vor.u32 %v445, %v446
        %v448 = vshll.u32 2475754826, %v442
        %v449 = vshrl.u32 2131351028, %v443
        %v450 = vor.u32 %v448, %v449
        %v451 = vshll.u32 2131351028, %v442
        %v452 = vshrl.u32 2102212464, %v443
        %v453 = vor.u32 %v451, %v452
        %v454 = vshll.u32 2102212464, %v442
        %v455 = vshrl.u32 920167782, %v443
        %v456 = vor.u32 %v454, %v455
        %v457 = vshll.u32 920167782, %v442
        %v458 = vshrl.u32 1326507024, %v443
        %v459 = vor.u32 %v457, %v458
        %vm460 = vcmp.lt.s32.totalorder %v441, 1
        %vm461 = vcmp.lt.s32.totalorder %v441, 2
        %vm462 = vcmp.lt.s32.totalorder %v441, 3
        %vm463 = vcmp.lt.s32.totalorder %v441, 4
        %v464 = vsel %vm460, %v444, %v447
        %v465 = vsel %vm463, %v453, 2102212464
        %v466 = vsel %vm462, %v450, %v465
        %v467 = vsel %vm461, %v464, %v466
        %v468 = vsel %vm460, %v447, %v450
        %v469 = vsel %vm463, %v456, 920167782
        %v470 = vsel %vm462, %v453, %v469
        %v471 = vsel %vm461, %v468, %v470
        %v472 = vsel %vm460, %v450, %v453
        %v473 = vsel %vm463, %v459, 1326507024
        %v474 = vsel %vm462, %v456, %v473
        %v475 = vsel %vm461, %v472, %v474
        %v476 = vshll.u32 %v436, 8
        %v477 = vmul.u32.u64.compose %v476, %v475
        %v478 = vextract.low.u32 %v477
        %v479 = vextract.high.u32 %v477
        %v480 = vmul.u32.u64.compose %v476, %v471
        %v481 = vextract.low.u32 %v480
        %v482 = vextract.high.u32 %v480
        %v483 = vmul.u32 %v476, %v467
        %v484 = vadd.s32 %v479, %v481
        %vm485 = vc.u32 %v479, %v481
        %v486 = vadd.s32 %v482, 1
        %v487 = vsel %vm485, %v486, %v482
        %v488 = vadd.s32 %v483, %v487
        %v489 = vadd.s32 %v488, 536870912
        %v490 = vshrl.u32 %v489, 30
        %v491 = vshll.u32 %v490, 30
        %v492 = vsub.s32 %v488, %v491
        %vm493 = vcmp.lt.s32.totalorder %v492, 0
        %v494 = vsub.s32 0, %v492
        %v495 = vsel %vm493, %v494, %v492
        %v496 = vclz %v495
        %v497 = vsub.s32 %v496, 2
        %vm498 = vcmp.gt.s32.totalorder 0, %v497
        %v499 = vsel %vm498, 0, %v497
        %v500 = vsub.s32 32, %v499
        %v501 = vshll.u32 %v492, %v499
        %v502 = vshrl.u32 %v484, %v500
        %v503 = vor.u32 %v501, %v502
        %v504 = vsub.s32 4294967266, %v499
        %v505 = vadd.s32 %v504, 127
        %v506 = vshll.u32 %v505, 23
        %v507 = vor.u32 4788187, %v506
        %v508 = vand.u32 2147483647, %v507
        %v510 = vcvt.s32.f32 %v503
        %v511 = vmul.f32 %v510, %v508
        %v512 = vxor.u32 %v511, 2147483648
        %v513 = vsel %vm430, %v512, %v511
        %v514 = vsub.s32 4, %v490
        %v515 = vsel %vm430, %v514, %v490
        %v516 = vsel %vm429, %v318, %v513
        %v517 = vsel %vm429, 0, %v515
        %v518 = vcosq.f32.pop %v516
        %v519 = vsinq.f32.pop %v516
        %vm520 = vweird.f32 %v318
        %v521 = vadd.s32 %v517, 3
        %v522 = vand.u32 %v521, 3
        %vm523 = vcmp.lt.s32.totalorder %v522, 2
        %vm524 = vcmp.eq.s32.totalorder %v522, 0
        %v525 = vxor.u32 %v519, 2147483648
        %v526 = vsel %vm524, %v518, %v525
        %vm527 = vcmp.eq.s32.totalorder %v522, 2
        %v528 = vxor.u32 %v518, 2147483648
        %v529 = vsel %vm527, %v528, %v519
        %v530 = vsel %vm523, %v526, %v529
        %v531 = vsel %vm520, nan, %v530
        %v532 = vand.u32 2147483647, %v319
        %vm533 = vcmp.le.f32.partialorder %v532, 0.7853982
        %vm534 = vcmp.lt.s32.totalorder %v319, 0
        %v535 = vand.u32 %v319, 2139095040
        %v536 = vshrl.u32 %v535, 23
        %v537 = vsub.s32 %v536, 127
        %v538 = vand.u32 2147483647, %v319
        %v539 = vand.u32 %v538, 8388607
        %v540 = vor.u32 %v539, 8388608
        %v541 = vsub.s32 0, %v540
        %v542 = vadd.s32 %v537, 1
        %vm543 = vcmp.gt.s32.totalorder %v542, 0
        %v544 = vsel %vm543, %v542, 0
        %v545 = vshrl.u32 %v544, 5
        %v546 = vand.u32 %v544, 31
        %v547 = vsub.s32 32, %v546
        %v548 = vshrl.u32 683565275, %v547
        %v549 = vshll.u32 683565275, %v546
        %v550 = vshrl.u32 2475754826, %v547
        %v551 = vor.u32 %v549, %v550
        %v552 = vshll.u32 2475754826, %v546
        %v553 = vshrl.u32 2131351028, %v547
        %v554 = vor.u32 %v552, %v553
        %v555 = vshll.u32 2131351028, %v546
        %v556 = vshrl.u32 2102212464, %v547
        %v557 = vor.u32 %v555, %v556
        %v558 = vshll.u32 2102212464, %v546
        %v559 = vshrl.u32 920167782, %v547
        %v560 = vor.u32 %v558, %v559
        %v561 = vshll.u32 920167782, %v546
        %v562 = vshrl.u32 1326507024, %v547
        %v563 = vor.u32 %v561, %v562
        %vm564 = vcmp.lt.s32.totalorder %v545, 1
        %vm565 = vcmp.lt.s32.totalorder %v545, 2
        %vm566 = vcmp.lt.s32.totalorder %v545, 3
        %vm567 = vcmp.lt.s32.totalorder %v545, 4
        %v568 = vsel %vm564, %v548, %v551
        %v569 = vsel %vm567, %v557, 2102212464
        %v570 = vsel %vm566, %v554, %v569
        %v571 = vsel %vm565, %v568, %v570
        %v572 = vsel %vm564, %v551, %v554
        %v573 = vsel %vm567, %v560, 920167782
        %v574 = vsel %vm566, %v557, %v573
        %v575 = vsel %vm565, %v572, %v574
        %v576 = vsel %vm564, %v554, %v557
        %v577 = vsel %vm567, %v563, 1326507024
        %v578 = vsel %vm566, %v560, %v577
        %v579 = vsel %vm565, %v576, %v578
        %v580 = vshll.u32 %v540, 8
        %v581 = vmul.u32.u64.compose %v580, %v579
        %v582 = vextract.low.u32 %v581
        %v583 = vextract.high.u32 %v581
        %v584 = vmul.u32.u64.compose %v580, %v575
        %v585 = vextract.low.u32 %v584
        %v586 = vextract.high.u32 %v584
        %v587 = vmul.u32 %v580, %v571
        %v588 = vadd.s32 %v583, %v585
        %vm589 = vc.u32 %v583, %v585
        %v590 = vadd.s32 %v586, 1
        %v591 = vsel %vm589, %v590, %v586
        %v592 = vadd.s32 %v587, %v591
        %v593 = vadd.s32 %v592, 536870912
        %v594 = vshrl.u32 %v593, 30
        %v595 = vshll.u32 %v594, 30
        %v596 = vsub.s32 %v592, %v595
        %vm597 = vcmp.lt.s32.totalorder %v596, 0
        %v598 = vsub.s32 0, %v596
        %v599 = vsel %vm597, %v598, %v596
        %v600 = vclz %v599
        %v601 = vsub.s32 %v600, 2
        %vm602 = vcmp.gt.s32.totalorder 0, %v601
        %v603 = vsel %vm602, 0, %v601
        %v604 = vsub.s32 32, %v603
        %v605 = vshll.u32 %v596, %v603
        %v606 = vshrl.u32 %v588, %v604
        %v607 = vor.u32 %v605, %v606
        %v608 = vsub.s32 4294967266, %v603
        %v609 = vadd.s32 %v608, 127
        %v610 = vshll.u32 %v609, 23
        %v611 = vor.u32 4788187, %v610
        %v612 = vand.u32 2147483647, %v611
        %v614 = vcvt.s32.f32 %v607
        %v615 = vmul.f32 %v614, %v612
        %v616 = vxor.u32 %v615, 2147483648
        %v617 = vsel %vm534, %v616, %v615
        %v618 = vsub.s32 4, %v594
        %v619 = vsel %vm534, %v618, %v594
        %v620 = vsel %vm533, %v319, %v617
        %v621 = vsel %vm533, 0, %v619
        %v622 = vcosq.f32.pop %v620
        %v623 = vsinq.f32.pop %v620
        %vm624 = vweird.f32 %v319
        %v625 = vadd.s32 %v621, 3
        %v626 = vand.u32 %v625, 3
        %vm627 = vcmp.lt.s32.totalorder %v626, 2
        %vm628 = vcmp.eq.s32.totalorder %v626, 0
        %v629 = vxor.u32 %v623, 2147483648
        %v630 = vsel %vm628, %v622, %v629
        %vm631 = vcmp.eq.s32.totalorder %v626, 2
        %v632 = vxor.u32 %v622, 2147483648
        %v633 = vsel %vm631, %v632, %v623
        %v634 = vsel %vm627, %v630, %v633
        %v635 = vsel %vm624, nan, %v634
        %v636 = vand.u32 2147483647, %v320
        %vm637 = vcmp.le.f32.partialorder %v636, 0.7853982
        %vm638 = vcmp.lt.s32.totalorder %v320, 0
        %v639 = vand.u32 %v320, 2139095040
        %v640 = vshrl.u32 %v639, 23
        %v641 = vsub.s32 %v640, 127
        %v642 = vand.u32 2147483647, %v320
        %v643 = vand.u32 %v642, 8388607
        %v644 = vor.u32 %v643, 8388608
        %v645 = vsub.s32 0, %v644
        %v646 = vadd.s32 %v641, 1
        %vm647 = vcmp.gt.s32.totalorder %v646, 0
        %v648 = vsel %vm647, %v646, 0
        %v649 = vshrl.u32 %v648, 5
        %v650 = vand.u32 %v648, 31
        %v651 = vsub.s32 32, %v650
        %v652 = vshrl.u32 683565275, %v651
        %v653 = vshll.u32 683565275, %v650
        %v654 = vshrl.u32 2475754826, %v651
        %v655 = vor.u32 %v653, %v654
        %v656 = vshll.u32 2475754826, %v650
        %v657 = vshrl.u32 2131351028, %v651
        %v658 = vor.u32 %v656, %v657
        %v659 = vshll.u32 2131351028, %v650
        %v660 = vshrl.u32 2102212464, %v651
        %v661 = vor.u32 %v659, %v660
        %v662 = vshll.u32 2102212464, %v650
        %v663 = vshrl.u32 920167782, %v651
        %v664 = vor.u32 %v662, %v663
        %v665 = vshll.u32 920167782, %v650
        %v666 = vshrl.u32 1326507024, %v651
        %v667 = vor.u32 %v665, %v666
        %vm668 = vcmp.lt.s32.totalorder %v649, 1
        %vm669 = vcmp.lt.s32.totalorder %v649, 2
        %vm670 = vcmp.lt.s32.totalorder %v649, 3
        %vm671 = vcmp.lt.s32.totalorder %v649, 4
        %v672 = vsel %vm668, %v652, %v655
        %v673 = vsel %vm671, %v661, 2102212464
        %v674 = vsel %vm670, %v658, %v673
        %v675 = vsel %vm669, %v672, %v674
        %v676 = vsel %vm668, %v655, %v658
        %v677 = vsel %vm671, %v664, 920167782
        %v678 = vsel %vm670, %v661, %v677
        %v679 = vsel %vm669, %v676, %v678
        %v680 = vsel %vm668, %v658, %v661
        %v681 = vsel %vm671, %v667, 1326507024
        %v682 = vsel %vm670, %v664, %v681
        %v683 = vsel %vm669, %v680, %v682
        %v684 = vshll.u32 %v644, 8
        %v685 = vmul.u32.u64.compose %v684, %v683
        %v686 = vextract.low.u32 %v685
        %v687 = vextract.high.u32 %v685
        %v688 = vmul.u32.u64.compose %v684, %v679
        %v689 = vextract.low.u32 %v688
        %v690 = vextract.high.u32 %v688
        %v691 = vmul.u32 %v684, %v675
        %v692 = vadd.s32 %v687, %v689
        %vm693 = vc.u32 %v687, %v689
        %v694 = vadd.s32 %v690, 1
        %v695 = vsel %vm693, %v694, %v690
        %v696 = vadd.s32 %v691, %v695
        %v697 = vadd.s32 %v696, 536870912
        %v698 = vshrl.u32 %v697, 30
        %v699 = vshll.u32 %v698, 30
        %v700 = vsub.s32 %v696, %v699
        %vm701 = vcmp.lt.s32.totalorder %v700, 0
        %v702 = vsub.s32 0, %v700
        %v703 = vsel %vm701, %v702, %v700
        %v704 = vclz %v703
        %v705 = vsub.s32 %v704, 2
        %vm706 = vcmp.gt.s32.totalorder 0, %v705
        %v707 = vsel %vm706, 0, %v705
        %v708 = vsub.s32 32, %v707
        %v709 = vshll.u32 %v700, %v707
        %v710 = vshrl.u32 %v692, %v708
        %v711 = vor.u32 %v709, %v710
        %v712 = vsub.s32 4294967266, %v707
        %v713 = vadd.s32 %v712, 127
        %v714 = vshll.u32 %v713, 23
        %v715 = vor.u32 4788187, %v714
        %v716 = vand.u32 2147483647, %v715
        %v718 = vcvt.s32.f32 %v711
        %v719 = vmul.f32 %v718, %v716
        %v720 = vxor.u32 %v719, 2147483648
        %v721 = vsel %vm638, %v720, %v719
        %v722 = vsub.s32 4, %v698
        %v723 = vsel %vm638, %v722, %v698
        %v724 = vsel %vm637, %v320, %v721
        %v725 = vsel %vm637, 0, %v723
        %v726 = vcosq.f32.pop %v724
        %v727 = vsinq.f32.pop %v724
        %vm728 = vweird.f32 %v320
        %v729 = vadd.s32 %v725, 3
        %v730 = vand.u32 %v729, 3
        %vm731 = vcmp.lt.s32.totalorder %v730, 2
        %vm732 = vcmp.eq.s32.totalorder %v730, 0
        %v733 = vxor.u32 %v727, 2147483648
        %v734 = vsel %vm732, %v726, %v733
        %vm735 = vcmp.eq.s32.totalorder %v730, 2
        %v736 = vxor.u32 %v726, 2147483648
        %v737 = vsel %vm735, %v736, %v727
        %v738 = vsel %vm731, %v734, %v737
        %v739 = vsel %vm728, nan, %v738
        %v740 = vand.u32 2147483647, %v321
        %vm741 = vcmp.le.f32.partialorder %v740, 0.7853982
        %vm742 = vcmp.lt.s32.totalorder %v321, 0
        %v743 = vand.u32 %v321, 2139095040
        %v744 = vshrl.u32 %v743, 23
        %v745 = vsub.s32 %v744, 127
        %v746 = vand.u32 2147483647, %v321
        %v747 = vand.u32 %v746, 8388607
        %v748 = vor.u32 %v747, 8388608
        %v749 = vsub.s32 0, %v748
        %v750 = vadd.s32 %v745, 1
        %vm751 = vcmp.gt.s32.totalorder %v750, 0
        %v752 = vsel %vm751, %v750, 0
        %v753 = vshrl.u32 %v752, 5
        %v754 = vand.u32 %v752, 31
        %v755 = vsub.s32 32, %v754
        %v756 = vshrl.u32 683565275, %v755
        %v757 = vshll.u32 683565275, %v754
        %v758 = vshrl.u32 2475754826, %v755
        %v759 = vor.u32 %v757, %v758
        %v760 = vshll.u32 2475754826, %v754
        %v761 = vshrl.u32 2131351028, %v755
        %v762 = vor.u32 %v760, %v761
        %v763 = vshll.u32 2131351028, %v754
        %v764 = vshrl.u32 2102212464, %v755
        %v765 = vor.u32 %v763, %v764
        %v766 = vshll.u32 2102212464, %v754
        %v767 = vshrl.u32 920167782, %v755
        %v768 = vor.u32 %v766, %v767
        %v769 = vshll.u32 920167782, %v754
        %v770 = vshrl.u32 1326507024, %v755
        %v771 = vor.u32 %v769, %v770
        %vm772 = vcmp.lt.s32.totalorder %v753, 1
        %vm773 = vcmp.lt.s32.totalorder %v753, 2
        %vm774 = vcmp.lt.s32.totalorder %v753, 3
        %vm775 = vcmp.lt.s32.totalorder %v753, 4
        %v776 = vsel %vm772, %v756, %v759
        %v777 = vsel %vm775, %v765, 2102212464
        %v778 = vsel %vm774, %v762, %v777
        %v779 = vsel %vm773, %v776, %v778
        %v780 = vsel %vm772, %v759, %v762
        %v781 = vsel %vm775, %v768, 920167782
        %v782 = vsel %vm774, %v765, %v781
        %v783 = vsel %vm773, %v780, %v782
        %v784 = vsel %vm772, %v762, %v765
        %v785 = vsel %vm775, %v771, 1326507024
        %v786 = vsel %vm774, %v768, %v785
        %v787 = vsel %vm773, %v784, %v786
        %v788 = vshll.u32 %v748, 8
        %v789 = vmul.u32.u64.compose %v788, %v787
        %v790 = vextract.low.u32 %v789
        %v791 = vextract.high.u32 %v789
        %v792 = vmul.u32.u64.compose %v788, %v783
        %v793 = vextract.low.u32 %v792
        %v794 = vextract.high.u32 %v792
        %v795 = vmul.u32 %v788, %v779
        %v796 = vadd.s32 %v791, %v793
        %vm797 = vc.u32 %v791, %v793
        %v798 = vadd.s32 %v794, 1
        %v799 = vsel %vm797, %v798, %v794
        %v800 = vadd.s32 %v795, %v799
        %v801 = vadd.s32 %v800, 536870912
        %v802 = vshrl.u32 %v801, 30
        %v803 = vshll.u32 %v802, 30
        %v804 = vsub.s32 %v800, %v803
        %vm805 = vcmp.lt.s32.totalorder %v804, 0
        %v806 = vsub.s32 0, %v804
        %v807 = vsel %vm805, %v806, %v804
        %v808 = vclz %v807
        %v809 = vsub.s32 %v808, 2
        %vm810 = vcmp.gt.s32.totalorder 0, %v809
        %v811 = vsel %vm810, 0, %v809
        %v812 = vsub.s32 32, %v811
        %v813 = vshll.u32 %v804, %v811
        %v814 = vshrl.u32 %v796, %v812
        %v815 = vor.u32 %v813, %v814
        %v816 = vsub.s32 4294967266, %v811
        %v817 = vadd.s32 %v816, 127
        %v818 = vshll.u32 %v817, 23
        %v819 = vor.u32 4788187, %v818
        %v820 = vand.u32 2147483647, %v819
        %v822 = vcvt.s32.f32 %v815
        %v823 = vmul.f32 %v822, %v820
        %v824 = vxor.u32 %v823, 2147483648
        %v825 = vsel %vm742, %v824, %v823
        %v826 = vsub.s32 4, %v802
        %v827 = vsel %vm742, %v826, %v802
        %v828 = vsel %vm741, %v321, %v825
        %v829 = vsel %vm741, 0, %v827
        %v830 = vcosq.f32.pop %v828
        %v831 = vsinq.f32.pop %v828
        %vm832 = vweird.f32 %v321
        %v833 = vadd.s32 %v829, 3
        %v834 = vand.u32 %v833, 3
        %vm835 = vcmp.lt.s32.totalorder %v834, 2
        %vm836 = vcmp.eq.s32.totalorder %v834, 0
        %v837 = vxor.u32 %v831, 2147483648
        %v838 = vsel %vm836, %v830, %v837
        %vm839 = vcmp.eq.s32.totalorder %v834, 2
        %v840 = vxor.u32 %v830, 2147483648
        %v841 = vsel %vm839, %v840, %v831
        %v842 = vsel %vm835, %v838, %v841
        %v843 = vsel %vm832, nan, %v842
        %v844 = vand.u32 2147483647, %v322
        %vm845 = vcmp.le.f32.partialorder %v844, 0.7853982
        %vm846 = vcmp.lt.s32.totalorder %v322, 0
        %v847 = vand.u32 %v322, 2139095040
        %v848 = vshrl.u32 %v847, 23
        %v849 = vsub.s32 %v848, 127
        %v850 = vand.u32 2147483647, %v322
        %v851 = vand.u32 %v850, 8388607
        %v852 = vor.u32 %v851, 8388608
        %v853 = vsub.s32 0, %v852
        %v854 = vadd.s32 %v849, 1
        %vm855 = vcmp.gt.s32.totalorder %v854, 0
        %v856 = vsel %vm855, %v854, 0
        %v857 = vshrl.u32 %v856, 5
        %v858 = vand.u32 %v856, 31
        %v859 = vsub.s32 32, %v858
        %v860 = vshrl.u32 683565275, %v859
        %v861 = vshll.u32 683565275, %v858
        %v862 = vshrl.u32 2475754826, %v859
        %v863 = vor.u32 %v861, %v862
        %v864 = vshll.u32 2475754826, %v858
        %v865 = vshrl.u32 2131351028, %v859
        %v866 = vor.u32 %v864, %v865
        %v867 = vshll.u32 2131351028, %v858
        %v868 = vshrl.u32 2102212464, %v859
        %v869 = vor.u32 %v867, %v868
        %v870 = vshll.u32 2102212464, %v858
        %v871 = vshrl.u32 920167782, %v859
        %v872 = vor.u32 %v870, %v871
        %v873 = vshll.u32 920167782, %v858
        %v874 = vshrl.u32 1326507024, %v859
        %v875 = vor.u32 %v873, %v874
        %vm876 = vcmp.lt.s32.totalorder %v857, 1
        %vm877 = vcmp.lt.s32.totalorder %v857, 2
        %vm878 = vcmp.lt.s32.totalorder %v857, 3
        %vm879 = vcmp.lt.s32.totalorder %v857, 4
        %v880 = vsel %vm876, %v860, %v863
        %v881 = vsel %vm879, %v869, 2102212464
        %v882 = vsel %vm878, %v866, %v881
        %v883 = vsel %vm877, %v880, %v882
        %v884 = vsel %vm876, %v863, %v866
        %v885 = vsel %vm879, %v872, 920167782
        %v886 = vsel %vm878, %v869, %v885
        %v887 = vsel %vm877, %v884, %v886
        %v888 = vsel %vm876, %v866, %v869
        %v889 = vsel %vm879, %v875, 1326507024
        %v890 = vsel %vm878, %v872, %v889
        %v891 = vsel %vm877, %v888, %v890
        %v892 = vshll.u32 %v852, 8
        %v893 = vmul.u32.u64.compose %v892, %v891
        %v894 = vextract.low.u32 %v893
        %v895 = vextract.high.u32 %v893
        %v896 = vmul.u32.u64.compose %v892, %v887
        %v897 = vextract.low.u32 %v896
        %v898 = vextract.high.u32 %v896
        %v899 = vmul.u32 %v892, %v883
        %v900 = vadd.s32 %v895, %v897
        %vm901 = vc.u32 %v895, %v897
        %v902 = vadd.s32 %v898, 1
        %v903 = vsel %vm901, %v902, %v898
        %v904 = vadd.s32 %v899, %v903
        %v905 = vadd.s32 %v904, 536870912
        %v906 = vshrl.u32 %v905, 30
        %v907 = vshll.u32 %v906, 30
        %v908 = vsub.s32 %v904, %v907
        %vm909 = vcmp.lt.s32.totalorder %v908, 0
        %v910 = vsub.s32 0, %v908
        %v911 = vsel %vm909, %v910, %v908
        %v912 = vclz %v911
        %v913 = vsub.s32 %v912, 2
        %vm914 = vcmp.gt.s32.totalorder 0, %v913
        %v915 = vsel %vm914, 0, %v913
        %v916 = vsub.s32 32, %v915
        %v917 = vshll.u32 %v908, %v915
        %v918 = vshrl.u32 %v900, %v916
        %v919 = vor.u32 %v917, %v918
        %v920 = vsub.s32 4294967266, %v915
        %v921 = vadd.s32 %v920, 127
        %v922 = vshll.u32 %v921, 23
        %v923 = vor.u32 4788187, %v922
        %v924 = vand.u32 2147483647, %v923
        %v926 = vcvt.s32.f32 %v919
        %v927 = vmul.f32 %v926, %v924
        %v928 = vxor.u32 %v927, 2147483648
        %v929 = vsel %vm846, %v928, %v927
        %v930 = vsub.s32 4, %v906
        %v931 = vsel %vm846, %v930, %v906
        %v932 = vsel %vm845, %v322, %v929
        %v933 = vsel %vm845, 0, %v931
        %v934 = vcosq.f32.pop %v932
        %v935 = vsinq.f32.pop %v932
        %vm936 = vweird.f32 %v322
        %v937 = vadd.s32 %v933, 3
        %v938 = vand.u32 %v937, 3
        %vm939 = vcmp.lt.s32.totalorder %v938, 2
        %vm940 = vcmp.eq.s32.totalorder %v938, 0
        %v941 = vxor.u32 %v935, 2147483648
        %v942 = vsel %vm940, %v934, %v941
        %vm943 = vcmp.eq.s32.totalorder %v938, 2
        %v944 = vxor.u32 %v934, 2147483648
        %v945 = vsel %vm943, %v944, %v935
        %v946 = vsel %vm939, %v942, %v945
        %v947 = vsel %vm936, nan, %v946
        %v948 = vand.u32 2147483647, %v323
        %vm949 = vcmp.le.f32.partialorder %v948, 0.7853982
        %vm950 = vcmp.lt.s32.totalorder %v323, 0
        %v951 = vand.u32 %v323, 2139095040
        %v952 = vshrl.u32 %v951, 23
        %v953 = vsub.s32 %v952, 127
        %v954 = vand.u32 2147483647, %v323
        %v955 = vand.u32 %v954, 8388607
        %v956 = vor.u32 %v955, 8388608
        %v957 = vsub.s32 0, %v956
        %v958 = vadd.s32 %v953, 1
        %vm959 = vcmp.gt.s32.totalorder %v958, 0
        %v960 = vsel %vm959, %v958, 0
        %v961 = vshrl.u32 %v960, 5
        %v962 = vand.u32 %v960, 31
        %v963 = vsub.s32 32, %v962
        %v964 = vshrl.u32 683565275, %v963
        %v965 = vshll.u32 683565275, %v962
        %v966 = vshrl.u32 2475754826, %v963
        %v967 = vor.u32 %v965, %v966
        %v968 = vshll.u32 2475754826, %v962
        %v969 = vshrl.u32 2131351028, %v963
        %v970 = vor.u32 %v968, %v969
        %v971 = vshll.u32 2131351028, %v962
        %v972 = vshrl.u32 2102212464, %v963
        %v973 = vor.u32 %v971, %v972
        %v974 = vshll.u32 2102212464, %v962
        %v975 = vshrl.u32 920167782, %v963
        %v976 = vor.u32 %v974, %v975
        %v977 = vshll.u32 920167782, %v962
        %v978 = vshrl.u32 1326507024, %v963
        %v979 = vor.u32 %v977, %v978
        %vm980 = vcmp.lt.s32.totalorder %v961, 1
        %vm981 = vcmp.lt.s32.totalorder %v961, 2
        %vm982 = vcmp.lt.s32.totalorder %v961, 3
        %vm983 = vcmp.lt.s32.totalorder %v961, 4
        %v984 = vsel %vm980, %v964, %v967
        %v985 = vsel %vm983, %v973, 2102212464
        %v986 = vsel %vm982, %v970, %v985
        %v987 = vsel %vm981, %v984, %v986
        %v988 = vsel %vm980, %v967, %v970
        %v989 = vsel %vm983, %v976, 920167782
        %v990 = vsel %vm982, %v973, %v989
        %v991 = vsel %vm981, %v988, %v990
        %v992 = vsel %vm980, %v970, %v973
        %v993 = vsel %vm983, %v979, 1326507024
        %v994 = vsel %vm982, %v976, %v993
        %v995 = vsel %vm981, %v992, %v994
        %v996 = vshll.u32 %v956, 8
        %v997 = vmul.u32.u64.compose %v996, %v995
        %v998 = vextract.low.u32 %v997
        %v999 = vextract.high.u32 %v997
        %v1000 = vmul.u32.u64.compose %v996, %v991
        %v1001 = vextract.low.u32 %v1000
        %v1002 = vextract.high.u32 %v1000
        %v1003 = vmul.u32 %v996, %v987
        %v1004 = vadd.s32 %v999, %v1001
        %vm1005 = vc.u32 %v999, %v1001
        %v1006 = vadd.s32 %v1002, 1
        %v1007 = vsel %vm1005, %v1006, %v1002
        %v1008 = vadd.s32 %v1003, %v1007
        %v1009 = vadd.s32 %v1008, 536870912
        %v1010 = vshrl.u32 %v1009, 30
        %v1011 = vshll.u32 %v1010, 30
        %v1012 = vsub.s32 %v1008, %v1011
        %vm1013 = vcmp.lt.s32.totalorder %v1012, 0
        %v1014 = vsub.s32 0, %v1012
        %v1015 = vsel %vm1013, %v1014, %v1012
        %v1016 = vclz %v1015
        %v1017 = vsub.s32 %v1016, 2
        %vm1018 = vcmp.gt.s32.totalorder 0, %v1017
        %v1019 = vsel %vm1018, 0, %v1017
        %v1020 = vsub.s32 32, %v1019
        %v1021 = vshll.u32 %v1012, %v1019
        %v1022 = vshrl.u32 %v1004, %v1020
        %v1023 = vor.u32 %v1021, %v1022
        %v1024 = vsub.s32 4294967266, %v1019
        %v1025 = vadd.s32 %v1024, 127
        %v1026 = vshll.u32 %v1025, 23
        %v1027 = vor.u32 4788187, %v1026
        %v1028 = vand.u32 2147483647, %v1027
        %v1030 = vcvt.s32.f32 %v1023
        %v1031 = vmul.f32 %v1030, %v1028
        %v1032 = vxor.u32 %v1031, 2147483648
        %v1033 = vsel %vm950, %v1032, %v1031
        %v1034 = vsub.s32 4, %v1010
        %v1035 = vsel %vm950, %v1034, %v1010
        %v1036 = vsel %vm949, %v323, %v1033
        %v1037 = vsel %vm949, 0, %v1035
        %v1038 = vcosq.f32.pop %v1036
        %v1039 = vsinq.f32.pop %v1036
        %vm1040 = vweird.f32 %v323
        %v1041 = vadd.s32 %v1037, 3
        %v1042 = vand.u32 %v1041, 3
        %vm1043 = vcmp.lt.s32.totalorder %v1042, 2
        %vm1044 = vcmp.eq.s32.totalorder %v1042, 0
        %v1045 = vxor.u32 %v1039, 2147483648
        %v1046 = vsel %vm1044, %v1038, %v1045
        %vm1047 = vcmp.eq.s32.totalorder %v1042, 2
        %v1048 = vxor.u32 %v1038, 2147483648
        %v1049 = vsel %vm1047, %v1048, %v1039
        %v1050 = vsel %vm1043, %v1046, %v1049
        %v1051 = vsel %vm1040, nan, %v1050
        %v1052 = vand.u32 2147483647, %v317
        %vm1053 = vcmp.le.f32.partialorder %v1052, 0.7853982
        %vm1054 = vcmp.lt.s32.totalorder %v317, 0
        %v1055 = vand.u32 %v317, 2139095040
        %v1056 = vshrl.u32 %v1055, 23
        %v1057 = vsub.s32 %v1056, 127
        %v1058 = vand.u32 2147483647, %v317
        %v1059 = vand.u32 %v1058, 8388607
        %v1060 = vor.u32 %v1059, 8388608
        %v1061 = vsub.s32 0, %v1060
        %v1062 = vadd.s32 %v1057, 1
        %vm1063 = vcmp.gt.s32.totalorder %v1062, 0
        %v1064 = vsel %vm1063, %v1062, 0
        %v1065 = vshrl.u32 %v1064, 5
        %v1066 = vand.u32 %v1064, 31
        %v1067 = vsub.s32 32, %v1066
        %v1068 = vshrl.u32 683565275, %v1067
        %v1069 = vshll.u32 683565275, %v1066
        %v1070 = vshrl.u32 2475754826, %v1067
        %v1071 = vor.u32 %v1069, %v1070
        %v1072 = vshll.u32 2475754826, %v1066
        %v1073 = vshrl.u32 2131351028, %v1067
        %v1074 = vor.u32 %v1072, %v1073
        %v1075 = vshll.u32 2131351028, %v1066
        %v1076 = vshrl.u32 2102212464, %v1067
        %v1077 = vor.u32 %v1075, %v1076
        %v1078 = vshll.u32 2102212464, %v1066
        %v1079 = vshrl.u32 920167782, %v1067
        %v1080 = vor.u32 %v1078, %v1079
        %v1081 = vshll.u32 920167782, %v1066
        %v1082 = vshrl.u32 1326507024, %v1067
        %v1083 = vor.u32 %v1081, %v1082
        %vm1084 = vcmp.lt.s32.totalorder %v1065, 1
        %vm1085 = vcmp.lt.s32.totalorder %v1065, 2
        %vm1086 = vcmp.lt.s32.totalorder %v1065, 3
        %vm1087 = vcmp.lt.s32.totalorder %v1065, 4
        %v1088 = vsel %vm1084, %v1068, %v1071
        %v1089 = vsel %vm1087, %v1077, 2102212464
        %v1090 = vsel %vm1086, %v1074, %v1089
        %v1091 = vsel %vm1085, %v1088, %v1090
        %v1092 = vsel %vm1084, %v1071, %v1074
        %v1093 = vsel %vm1087, %v1080, 920167782
        %v1094 = vsel %vm1086, %v1077, %v1093
        %v1095 = vsel %vm1085, %v1092, %v1094
        %v1096 = vsel %vm1084, %v1074, %v1077
        %v1097 = vsel %vm1087, %v1083, 1326507024
        %v1098 = vsel %vm1086, %v1080, %v1097
        %v1099 = vsel %vm1085, %v1096, %v1098
        %v1100 = vshll.u32 %v1060, 8
        %v1101 = vmul.u32.u64.compose %v1100, %v1099
        %v1102 = vextract.low.u32 %v1101
        %v1103 = vextract.high.u32 %v1101
        %v1104 = vmul.u32.u64.compose %v1100, %v1095
        %v1105 = vextract.low.u32 %v1104
        %v1106 = vextract.high.u32 %v1104
        %v1107 = vmul.u32 %v1100, %v1091
        %v1108 = vadd.s32 %v1103, %v1105
        %vm1109 = vc.u32 %v1103, %v1105
        %v1110 = vadd.s32 %v1106, 1
        %v1111 = vsel %vm1109, %v1110, %v1106
        %v1112 = vadd.s32 %v1107, %v1111
        %v1113 = vadd.s32 %v1112, 536870912
        %v1114 = vshrl.u32 %v1113, 30
        %v1115 = vshll.u32 %v1114, 30
        %v1116 = vsub.s32 %v1112, %v1115
        %vm1117 = vcmp.lt.s32.totalorder %v1116, 0
        %v1118 = vsub.s32 0, %v1116
        %v1119 = vsel %vm1117, %v1118, %v1116
        %v1120 = vclz %v1119
        %v1121 = vsub.s32 %v1120, 2
        %vm1122 = vcmp.gt.s32.totalorder 0, %v1121
        %v1123 = vsel %vm1122, 0, %v1121
        %v1124 = vsub.s32 32, %v1123
        %v1125 = vshll.u32 %v1116, %v1123
        %v1126 = vshrl.u32 %v1108, %v1124
        %v1127 = vor.u32 %v1125, %v1126
        %v1128 = vsub.s32 4294967266, %v1123
        %v1129 = vadd.s32 %v1128, 127
        %v1130 = vshll.u32 %v1129, 23
        %v1131 = vor.u32 4788187, %v1130
        %v1132 = vand.u32 2147483647, %v1131
        %v1134 = vcvt.s32.f32 %v1127
        %v1135 = vmul.f32 %v1134, %v1132
        %v1136 = vxor.u32 %v1135, 2147483648
        %v1137 = vsel %vm1054, %v1136, %v1135
        %v1138 = vsub.s32 4, %v1114
        %v1139 = vsel %vm1054, %v1138, %v1114
        %v1140 = vsel %vm1053, %v317, %v1137
        %v1141 = vsel %vm1053, 0, %v1139
        %v1142 = vcosq.f32.pop %v1140
        %v1143 = vsinq.f32.pop %v1140
        %vm1144 = vweird.f32 %v317
        %v1145 = vand.u32 %v1141, 3
        %vm1146 = vcmp.lt.s32.totalorder %v1145, 2
        %vm1147 = vcmp.eq.s32.totalorder %v1145, 0
        %v1148 = vxor.u32 %v1143, 2147483648
        %v1149 = vsel %vm1147, %v1142, %v1148
        %vm1150 = vcmp.eq.s32.totalorder %v1145, 2
        %v1151 = vxor.u32 %v1142, 2147483648
        %v1152 = vsel %vm1150, %v1151, %v1143
        %v1153 = vsel %vm1146, %v1149, %v1152
        %v1154 = vsel %vm1144, nan, %v1153
        %v1155 = vand.u32 2147483647, %v318
        %vm1156 = vcmp.le.f32.partialorder %v1155, 0.7853982
        %vm1157 = vcmp.lt.s32.totalorder %v318, 0
        %v1158 = vand.u32 %v318, 2139095040
        %v1159 = vshrl.u32 %v1158, 23
        %v1160 = vsub.s32 %v1159, 127
        %v1161 = vand.u32 2147483647, %v318
        %v1162 = vand.u32 %v1161, 8388607
        %v1163 = vor.u32 %v1162, 8388608
        %v1164 = vsub.s32 0, %v1163
        %v1165 = vadd.s32 %v1160, 1
        %vm1166 = vcmp.gt.s32.totalorder %v1165, 0
        %v1167 = vsel %vm1166, %v1165, 0
        %v1168 = vshrl.u32 %v1167, 5
        %v1169 = vand.u32 %v1167, 31
        %v1170 = vsub.s32 32, %v1169
        %v1171 = vshrl.u32 683565275, %v1170
        %v1172 = vshll.u32 683565275, %v1169
        %v1173 = vshrl.u32 2475754826, %v1170
        %v1174 = vor.u32 %v1172, %v1173
        %v1175 = vshll.u32 2475754826, %v1169
        %v1176 = vshrl.u32 2131351028, %v1170
        %v1177 = vor.u32 %v1175, %v1176
        %v1178 = vshll.u32 2131351028, %v1169
        %v1179 = vshrl.u32 2102212464, %v1170
        %v1180 = vor.u32 %v1178, %v1179
        %v1181 = vshll.u32 2102212464, %v1169
        %v1182 = vshrl.u32 920167782, %v1170
        %v1183 = vor.u32 %v1181, %v1182
        %v1184 = vshll.u32 920167782, %v1169
        %v1185 = vshrl.u32 1326507024, %v1170
        %v1186 = vor.u32 %v1184, %v1185
        %vm1187 = vcmp.lt.s32.totalorder %v1168, 1
        %vm1188 = vcmp.lt.s32.totalorder %v1168, 2
        %vm1189 = vcmp.lt.s32.totalorder %v1168, 3
        %vm1190 = vcmp.lt.s32.totalorder %v1168, 4
        %v1191 = vsel %vm1187, %v1171, %v1174
        %v1192 = vsel %vm1190, %v1180, 2102212464
        %v1193 = vsel %vm1189, %v1177, %v1192
        %v1194 = vsel %vm1188, %v1191, %v1193
        %v1195 = vsel %vm1187, %v1174, %v1177
        %v1196 = vsel %vm1190, %v1183, 920167782
        %v1197 = vsel %vm1189, %v1180, %v1196
        %v1198 = vsel %vm1188, %v1195, %v1197
        %v1199 = vsel %vm1187, %v1177, %v1180
        %v1200 = vsel %vm1190, %v1186, 1326507024
        %v1201 = vsel %vm1189, %v1183, %v1200
        %v1202 = vsel %vm1188, %v1199, %v1201
        %v1203 = vshll.u32 %v1163, 8
        %v1204 = vmul.u32.u64.compose %v1203, %v1202
        %v1205 = vextract.low.u32 %v1204
        %v1206 = vextract.high.u32 %v1204
        %v1207 = vmul.u32.u64.compose %v1203, %v1198
        %v1208 = vextract.low.u32 %v1207
        %v1209 = vextract.high.u32 %v1207
        %v1210 = vmul.u32 %v1203, %v1194
        %v1211 = vadd.s32 %v1206, %v1208
        %vm1212 = vc.u32 %v1206, %v1208
        %v1213 = vadd.s32 %v1209, 1
        %v1214 = vsel %vm1212, %v1213, %v1209
        %v1215 = vadd.s32 %v1210, %v1214
        %v1216 = vadd.s32 %v1215, 536870912
        %v1217 = vshrl.u32 %v1216, 30
        %v1218 = vshll.u32 %v1217, 30
        %v1219 = vsub.s32 %v1215, %v1218
        %vm1220 = vcmp.lt.s32.totalorder %v1219, 0
        %v1221 = vsub.s32 0, %v1219
        %v1222 = vsel %vm1220, %v1221, %v1219
        %v1223 = vclz %v1222
        %v1224 = vsub.s32 %v1223, 2
        %vm1225 = vcmp.gt.s32.totalorder 0, %v1224
        %v1226 = vsel %vm1225, 0, %v1224
        %v1227 = vsub.s32 32, %v1226
        %v1228 = vshll.u32 %v1219, %v1226
        %v1229 = vshrl.u32 %v1211, %v1227
        %v1230 = vor.u32 %v1228, %v1229
        %v1231 = vsub.s32 4294967266, %v1226
        %v1232 = vadd.s32 %v1231, 127
        %v1233 = vshll.u32 %v1232, 23
        %v1234 = vor.u32 4788187, %v1233
        %v1235 = vand.u32 2147483647, %v1234
        %v1237 = vcvt.s32.f32 %v1230
        %v1238 = vmul.f32 %v1237, %v1235
        %v1239 = vxor.u32 %v1238, 2147483648
        %v1240 = vsel %vm1157, %v1239, %v1238
        %v1241 = vsub.s32 4, %v1217
        %v1242 = vsel %vm1157, %v1241, %v1217
        %v1243 = vsel %vm1156, %v318, %v1240
        %v1244 = vsel %vm1156, 0, %v1242
        %v1245 = vcosq.f32.pop %v1243
        %v1246 = vsinq.f32.pop %v1243
        %vm1247 = vweird.f32 %v318
        %v1248 = vand.u32 %v1244, 3
        %vm1249 = vcmp.lt.s32.totalorder %v1248, 2
        %vm1250 = vcmp.eq.s32.totalorder %v1248, 0
        %v1251 = vxor.u32 %v1246, 2147483648
        %v1252 = vsel %vm1250, %v1245, %v1251
        %vm1253 = vcmp.eq.s32.totalorder %v1248, 2
        %v1254 = vxor.u32 %v1245, 2147483648
        %v1255 = vsel %vm1253, %v1254, %v1246
        %v1256 = vsel %vm1249, %v1252, %v1255
        %v1257 = vsel %vm1247, nan, %v1256
        %v1258 = vand.u32 2147483647, %v319
        %vm1259 = vcmp.le.f32.partialorder %v1258, 0.7853982
        %vm1260 = vcmp.lt.s32.totalorder %v319, 0
        %v1261 = vand.u32 %v319, 2139095040
        %v1262 = vshrl.u32 %v1261, 23
        %v1263 = vsub.s32 %v1262, 127
        %v1264 = vand.u32 2147483647, %v319
        %v1265 = vand.u32 %v1264, 8388607
        %v1266 = vor.u32 %v1265, 8388608
        %v1267 = vsub.s32 0, %v1266
        %v1268 = vadd.s32 %v1263, 1
        %vm1269 = vcmp.gt.s32.totalorder %v1268, 0
        %v1270 = vsel %vm1269, %v1268, 0
        %v1271 = vshrl.u32 %v1270, 5
        %v1272 = vand.u32 %v1270, 31
        %v1273 = vsub.s32 32, %v1272
        %v1274 = vshrl.u32 683565275, %v1273
        %v1275 = vshll.u32 683565275, %v1272
        %v1276 = vshrl.u32 2475754826, %v1273
        %v1277 = vor.u32 %v1275, %v1276
        %v1278 = vshll.u32 2475754826, %v1272
        %v1279 = vshrl.u32 2131351028, %v1273
        %v1280 = vor.u32 %v1278, %v1279
        %v1281 = vshll.u32 2131351028, %v1272
        %v1282 = vshrl.u32 2102212464, %v1273
        %v1283 = vor.u32 %v1281, %v1282
        %v1284 = vshll.u32 2102212464, %v1272
        %v1285 = vshrl.u32 920167782, %v1273
        %v1286 = vor.u32 %v1284, %v1285
        %v1287 = vshll.u32 920167782, %v1272
        %v1288 = vshrl.u32 1326507024, %v1273
        %v1289 = vor.u32 %v1287, %v1288
        %vm1290 = vcmp.lt.s32.totalorder %v1271, 1
        %vm1291 = vcmp.lt.s32.totalorder %v1271, 2
        %vm1292 = vcmp.lt.s32.totalorder %v1271, 3
        %vm1293 = vcmp.lt.s32.totalorder %v1271, 4
        %v1294 = vsel %vm1290, %v1274, %v1277
        %v1295 = vsel %vm1293, %v1283, 2102212464
        %v1296 = vsel %vm1292, %v1280, %v1295
        %v1297 = vsel %vm1291, %v1294, %v1296
        %v1298 = vsel %vm1290, %v1277, %v1280
        %v1299 = vsel %vm1293, %v1286, 920167782
        %v1300 = vsel %vm1292, %v1283, %v1299
        %v1301 = vsel %vm1291, %v1298, %v1300
        %v1302 = vsel %vm1290, %v1280, %v1283
        %v1303 = vsel %vm1293, %v1289, 1326507024
        %v1304 = vsel %vm1292, %v1286, %v1303
        %v1305 = vsel %vm1291, %v1302, %v1304
        %v1306 = vshll.u32 %v1266, 8
        %v1307 = vmul.u32.u64.compose %v1306, %v1305
        %v1308 = vextract.low.u32 %v1307
        %v1309 = vextract.high.u32 %v1307
        %v1310 = vmul.u32.u64.compose %v1306, %v1301
        %v1311 = vextract.low.u32 %v1310
        %v1312 = vextract.high.u32 %v1310
        %v1313 = vmul.u32 %v1306, %v1297
        %v1314 = vadd.s32 %v1309, %v1311
        %vm1315 = vc.u32 %v1309, %v1311
        %v1316 = vadd.s32 %v1312, 1
        %v1317 = vsel %vm1315, %v1316, %v1312
        %v1318 = vadd.s32 %v1313, %v1317
        %v1319 = vadd.s32 %v1318, 536870912
        %v1320 = vshrl.u32 %v1319, 30
        %v1321 = vshll.u32 %v1320, 30
        %v1322 = vsub.s32 %v1318, %v1321
        %vm1323 = vcmp.lt.s32.totalorder %v1322, 0
        %v1324 = vsub.s32 0, %v1322
        %v1325 = vsel %vm1323, %v1324, %v1322
        %v1326 = vclz %v1325
        %v1327 = vsub.s32 %v1326, 2
        %vm1328 = vcmp.gt.s32.totalorder 0, %v1327
        %v1329 = vsel %vm1328, 0, %v1327
        %v1330 = vsub.s32 32, %v1329
        %v1331 = vshll.u32 %v1322, %v1329
        %v1332 = vshrl.u32 %v1314, %v1330
        %v1333 = vor.u32 %v1331, %v1332
        %v1334 = vsub.s32 4294967266, %v1329
        %v1335 = vadd.s32 %v1334, 127
        %v1336 = vshll.u32 %v1335, 23
        %v1337 = vor.u32 4788187, %v1336
        %v1338 = vand.u32 2147483647, %v1337
        %v1340 = vcvt.s32.f32 %v1333
        %v1341 = vmul.f32 %v1340, %v1338
        %v1342 = vxor.u32 %v1341, 2147483648
        %v1343 = vsel %vm1260, %v1342, %v1341
        %v1344 = vsub.s32 4, %v1320
        %v1345 = vsel %vm1260, %v1344, %v1320
        %v1346 = vsel %vm1259, %v319, %v1343
        %v1347 = vsel %vm1259, 0, %v1345
        %v1348 = vcosq.f32.pop %v1346
        %v1349 = vsinq.f32.pop %v1346
        %vm1350 = vweird.f32 %v319
        %v1351 = vand.u32 %v1347, 3
        %vm1352 = vcmp.lt.s32.totalorder %v1351, 2
        %vm1353 = vcmp.eq.s32.totalorder %v1351, 0
        %v1354 = vxor.u32 %v1349, 2147483648
        %v1355 = vsel %vm1353, %v1348, %v1354
        %vm1356 = vcmp.eq.s32.totalorder %v1351, 2
        %v1357 = vxor.u32 %v1348, 2147483648
        %v1358 = vsel %vm1356, %v1357, %v1349
        %v1359 = vsel %vm1352, %v1355, %v1358
        %v1360 = vsel %vm1350, nan, %v1359
        %v1361 = vand.u32 2147483647, %v320
        %vm1362 = vcmp.le.f32.partialorder %v1361, 0.7853982
        %vm1363 = vcmp.lt.s32.totalorder %v320, 0
        %v1364 = vand.u32 %v320, 2139095040
        %v1365 = vshrl.u32 %v1364, 23
        %v1366 = vsub.s32 %v1365, 127
        %v1367 = vand.u32 2147483647, %v320
        %v1368 = vand.u32 %v1367, 8388607
        %v1369 = vor.u32 %v1368, 8388608
        %v1370 = vsub.s32 0, %v1369
        %v1371 = vadd.s32 %v1366, 1
        %vm1372 = vcmp.gt.s32.totalorder %v1371, 0
        %v1373 = vsel %vm1372, %v1371, 0
        %v1374 = vshrl.u32 %v1373, 5
        %v1375 = vand.u32 %v1373, 31
        %v1376 = vsub.s32 32, %v1375
        %v1377 = vshrl.u32 683565275, %v1376
        %v1378 = vshll.u32 683565275, %v1375
        %v1379 = vshrl.u32 2475754826, %v1376
        %v1380 = vor.u32 %v1378, %v1379
        %v1381 = vshll.u32 2475754826, %v1375
        %v1382 = vshrl.u32 2131351028, %v1376
        %v1383 = vor.u32 %v1381, %v1382
        %v1384 = vshll.u32 2131351028, %v1375
        %v1385 = vshrl.u32 2102212464, %v1376
        %v1386 = vor.u32 %v1384, %v1385
        %v1387 = vshll.u32 2102212464, %v1375
        %v1388 = vshrl.u32 920167782, %v1376
        %v1389 = vor.u32 %v1387, %v1388
        %v1390 = vshll.u32 920167782, %v1375
        %v1391 = vshrl.u32 1326507024, %v1376
        %v1392 = vor.u32 %v1390, %v1391
        %vm1393 = vcmp.lt.s32.totalorder %v1374, 1
        %vm1394 = vcmp.lt.s32.totalorder %v1374, 2
        %vm1395 = vcmp.lt.s32.totalorder %v1374, 3
        %vm1396 = vcmp.lt.s32.totalorder %v1374, 4
        %v1397 = vsel %vm1393, %v1377, %v1380
        %v1398 = vsel %vm1396, %v1386, 2102212464
        %v1399 = vsel %vm1395, %v1383, %v1398
        %v1400 = vsel %vm1394, %v1397, %v1399
        %v1401 = vsel %vm1393, %v1380, %v1383
        %v1402 = vsel %vm1396, %v1389, 920167782
        %v1403 = vsel %vm1395, %v1386, %v1402
        %v1404 = vsel %vm1394, %v1401, %v1403
        %v1405 = vsel %vm1393, %v1383, %v1386
        %v1406 = vsel %vm1396, %v1392, 1326507024
        %v1407 = vsel %vm1395, %v1389, %v1406
        %v1408 = vsel %vm1394, %v1405, %v1407
        %v1409 = vshll.u32 %v1369, 8
        %v1410 = vmul.u32.u64.compose %v1409, %v1408
        %v1411 = vextract.low.u32 %v1410
        %v1412 = vextract.high.u32 %v1410
        %v1413 = vmul.u32.u64.compose %v1409, %v1404
        %v1414 = vextract.low.u32 %v1413
        %v1415 = vextract.high.u32 %v1413
        %v1416 = vmul.u32 %v1409, %v1400
        %v1417 = vadd.s32 %v1412, %v1414
        %vm1418 = vc.u32 %v1412, %v1414
        %v1419 = vadd.s32 %v1415, 1
        %v1420 = vsel %vm1418, %v1419, %v1415
        %v1421 = vadd.s32 %v1416, %v1420
        %v1422 = vadd.s32 %v1421, 536870912
        %v1423 = vshrl.u32 %v1422, 30
        %v1424 = vshll.u32 %v1423, 30
        %v1425 = vsub.s32 %v1421, %v1424
        %vm1426 = vcmp.lt.s32.totalorder %v1425, 0
        %v1427 = vsub.s32 0, %v1425
        %v1428 = vsel %vm1426, %v1427, %v1425
        %v1429 = vclz %v1428
        %v1430 = vsub.s32 %v1429, 2
        %vm1431 = vcmp.gt.s32.totalorder 0, %v1430
        %v1432 = vsel %vm1431, 0, %v1430
        %v1433 = vsub.s32 32, %v1432
        %v1434 = vshll.u32 %v1425, %v1432
        %v1435 = vshrl.u32 %v1417, %v1433
        %v1436 = vor.u32 %v1434, %v1435
        %v1437 = vsub.s32 4294967266, %v1432
        %v1438 = vadd.s32 %v1437, 127
        %v1439 = vshll.u32 %v1438, 23
        %v1440 = vor.u32 4788187, %v1439
        %v1441 = vand.u32 2147483647, %v1440
        %v1443 = vcvt.s32.f32 %v1436
        %v1444 = vmul.f32 %v1443, %v1441
        %v1445 = vxor.u32 %v1444, 2147483648
        %v1446 = vsel %vm1363, %v1445, %v1444
        %v1447 = vsub.s32 4, %v1423
        %v1448 = vsel %vm1363, %v1447, %v1423
        %v1449 = vsel %vm1362, %v320, %v1446
        %v1450 = vsel %vm1362, 0, %v1448
        %v1451 = vcosq.f32.pop %v1449
        %v1452 = vsinq.f32.pop %v1449
        %vm1453 = vweird.f32 %v320
        %v1454 = vand.u32 %v1450, 3
        %vm1455 = vcmp.lt.s32.totalorder %v1454, 2
        %vm1456 = vcmp.eq.s32.totalorder %v1454, 0
        %v1457 = vxor.u32 %v1452, 2147483648
        %v1458 = vsel %vm1456, %v1451, %v1457
        %vm1459 = vcmp.eq.s32.totalorder %v1454, 2
        %v1460 = vxor.u32 %v1451, 2147483648
        %v1461 = vsel %vm1459, %v1460, %v1452
        %v1462 = vsel %vm1455, %v1458, %v1461
        %v1463 = vsel %vm1453, nan, %v1462
        %v1464 = vand.u32 2147483647, %v321
        %vm1465 = vcmp.le.f32.partialorder %v1464, 0.7853982
        %vm1466 = vcmp.lt.s32.totalorder %v321, 0
        %v1467 = vand.u32 %v321, 2139095040
        %v1468 = vshrl.u32 %v1467, 23
        %v1469 = vsub.s32 %v1468, 127
        %v1470 = vand.u32 2147483647, %v321
        %v1471 = vand.u32 %v1470, 8388607
        %v1472 = vor.u32 %v1471, 8388608
        %v1473 = vsub.s32 0, %v1472
        %v1474 = vadd.s32 %v1469, 1
        %vm1475 = vcmp.gt.s32.totalorder %v1474, 0
        %v1476 = vsel %vm1475, %v1474, 0
        %v1477 = vshrl.u32 %v1476, 5
        %v1478 = vand.u32 %v1476, 31
        %v1479 = vsub.s32 32, %v1478
        %v1480 = vshrl.u32 683565275, %v1479
        %v1481 = vshll.u32 683565275, %v1478
        %v1482 = vshrl.u32 2475754826, %v1479
        %v1483 = vor.u32 %v1481, %v1482
        %v1484 = vshll.u32 2475754826, %v1478
        %v1485 = vshrl.u32 2131351028, %v1479
        %v1486 = vor.u32 %v1484, %v1485
        %v1487 = vshll.u32 2131351028, %v1478
        %v1488 = vshrl.u32 2102212464, %v1479
        %v1489 = vor.u32 %v1487, %v1488
        %v1490 = vshll.u32 2102212464, %v1478
        %v1491 = vshrl.u32 920167782, %v1479
        %v1492 = vor.u32 %v1490, %v1491
        %v1493 = vshll.u32 920167782, %v1478
        %v1494 = vshrl.u32 1326507024, %v1479
        %v1495 = vor.u32 %v1493, %v1494
        %vm1496 = vcmp.lt.s32.totalorder %v1477, 1
        %vm1497 = vcmp.lt.s32.totalorder %v1477, 2
        %vm1498 = vcmp.lt.s32.totalorder %v1477, 3
        %vm1499 = vcmp.lt.s32.totalorder %v1477, 4
        %v1500 = vsel %vm1496, %v1480, %v1483
        %v1501 = vsel %vm1499, %v1489, 2102212464
        %v1502 = vsel %vm1498, %v1486, %v1501
        %v1503 = vsel %vm1497, %v1500, %v1502
        %v1504 = vsel %vm1496, %v1483, %v1486
        %v1505 = vsel %vm1499, %v1492, 920167782
        %v1506 = vsel %vm1498, %v1489, %v1505
        %v1507 = vsel %vm1497, %v1504, %v1506
        %v1508 = vsel %vm1496, %v1486, %v1489
        %v1509 = vsel %vm1499, %v1495, 1326507024
        %v1510 = vsel %vm1498, %v1492, %v1509
        %v1511 = vsel %vm1497, %v1508, %v1510
        %v1512 = vshll.u32 %v1472, 8
        %v1513 = vmul.u32.u64.compose %v1512, %v1511
        %v1514 = vextract.low.u32 %v1513
        %v1515 = vextract.high.u32 %v1513
        %v1516 = vmul.u32.u64.compose %v1512, %v1507
        %v1517 = vextract.low.u32 %v1516
        %v1518 = vextract.high.u32 %v1516
        %v1519 = vmul.u32 %v1512, %v1503
        %v1520 = vadd.s32 %v1515, %v1517
        %vm1521 = vc.u32 %v1515, %v1517
        %v1522 = vadd.s32 %v1518, 1
        %v1523 = vsel %vm1521, %v1522, %v1518
        %v1524 = vadd.s32 %v1519, %v1523
        %v1525 = vadd.s32 %v1524, 536870912
        %v1526 = vshrl.u32 %v1525, 30
        %v1527 = vshll.u32 %v1526, 30
        %v1528 = vsub.s32 %v1524, %v1527
        %vm1529 = vcmp.lt.s32.totalorder %v1528, 0
        %v1530 = vsub.s32 0, %v1528
        %v1531 = vsel %vm1529, %v1530, %v1528
        %v1532 = vclz %v1531
        %v1533 = vsub.s32 %v1532, 2
        %vm1534 = vcmp.gt.s32.totalorder 0, %v1533
        %v1535 = vsel %vm1534, 0, %v1533
        %v1536 = vsub.s32 32, %v1535
        %v1537 = vshll.u32 %v1528, %v1535
        %v1538 = vshrl.u32 %v1520, %v1536
        %v1539 = vor.u32 %v1537, %v1538
        %v1540 = vsub.s32 4294967266, %v1535
        %v1541 = vadd.s32 %v1540, 127
        %v1542 = vshll.u32 %v1541, 23
        %v1543 = vor.u32 4788187, %v1542
        %v1544 = vand.u32 2147483647, %v1543
        %v1546 = vcvt.s32.f32 %v1539
        %v1547 = vmul.f32 %v1546, %v1544
        %v1548 = vxor.u32 %v1547, 2147483648
        %v1549 = vsel %vm1466, %v1548, %v1547
        %v1550 = vsub.s32 4, %v1526
        %v1551 = vsel %vm1466, %v1550, %v1526
        %v1552 = vsel %vm1465, %v321, %v1549
        %v1553 = vsel %vm1465, 0, %v1551
        %v1554 = vcosq.f32.pop %v1552
        %v1555 = vsinq.f32.pop %v1552
        %vm1556 = vweird.f32 %v321
        %v1557 = vand.u32 %v1553, 3
        %vm1558 = vcmp.lt.s32.totalorder %v1557, 2
        %vm1559 = vcmp.eq.s32.totalorder %v1557, 0
        %v1560 = vxor.u32 %v1555, 2147483648
        %v1561 = vsel %vm1559, %v1554, %v1560
        %vm1562 = vcmp.eq.s32.totalorder %v1557, 2
        %v1563 = vxor.u32 %v1554, 2147483648
        %v1564 = vsel %vm1562, %v1563, %v1555
        %v1565 = vsel %vm1558, %v1561, %v1564
        %v1566 = vsel %vm1556, nan, %v1565
        %v1567 = vand.u32 2147483647, %v322
        %vm1568 = vcmp.le.f32.partialorder %v1567, 0.7853982
        %vm1569 = vcmp.lt.s32.totalorder %v322, 0
        %v1570 = vand.u32 %v322, 2139095040
        %v1571 = vshrl.u32 %v1570, 23
        %v1572 = vsub.s32 %v1571, 127
        %v1573 = vand.u32 2147483647, %v322
        %v1574 = vand.u32 %v1573, 8388607
        %v1575 = vor.u32 %v1574, 8388608
        %v1576 = vsub.s32 0, %v1575
        %v1577 = vadd.s32 %v1572, 1
        %vm1578 = vcmp.gt.s32.totalorder %v1577, 0
        %v1579 = vsel %vm1578, %v1577, 0
        %v1580 = vshrl.u32 %v1579, 5
        %v1581 = vand.u32 %v1579, 31
        %v1582 = vsub.s32 32, %v1581
        %v1583 = vshrl.u32 683565275, %v1582
        %v1584 = vshll.u32 683565275, %v1581
        %v1585 = vshrl.u32 2475754826, %v1582
        %v1586 = vor.u32 %v1584, %v1585
        %v1587 = vshll.u32 2475754826, %v1581
        %v1588 = vshrl.u32 2131351028, %v1582
        %v1589 = vor.u32 %v1587, %v1588
        %v1590 = vshll.u32 2131351028, %v1581
        %v1591 = vshrl.u32 2102212464, %v1582
        %v1592 = vor.u32 %v1590, %v1591
        %v1593 = vshll.u32 2102212464, %v1581
        %v1594 = vshrl.u32 920167782, %v1582
        %v1595 = vor.u32 %v1593, %v1594
        %v1596 = vshll.u32 920167782, %v1581
        %v1597 = vshrl.u32 1326507024, %v1582
        %v1598 = vor.u32 %v1596, %v1597
        %vm1599 = vcmp.lt.s32.totalorder %v1580, 1
        %vm1600 = vcmp.lt.s32.totalorder %v1580, 2
        %vm1601 = vcmp.lt.s32.totalorder %v1580, 3
        %vm1602 = vcmp.lt.s32.totalorder %v1580, 4
        %v1603 = vsel %vm1599, %v1583, %v1586
        %v1604 = vsel %vm1602, %v1592, 2102212464
        %v1605 = vsel %vm1601, %v1589, %v1604
        %v1606 = vsel %vm1600, %v1603, %v1605
        %v1607 = vsel %vm1599, %v1586, %v1589
        %v1608 = vsel %vm1602, %v1595, 920167782
        %v1609 = vsel %vm1601, %v1592, %v1608
        %v1610 = vsel %vm1600, %v1607, %v1609
        %v1611 = vsel %vm1599, %v1589, %v1592
        %v1612 = vsel %vm1602, %v1598, 1326507024
        %v1613 = vsel %vm1601, %v1595, %v1612
        %v1614 = vsel %vm1600, %v1611, %v1613
        %v1615 = vshll.u32 %v1575, 8
        %v1616 = vmul.u32.u64.compose %v1615, %v1614
        %v1617 = vextract.low.u32 %v1616
        %v1618 = vextract.high.u32 %v1616
        %v1619 = vmul.u32.u64.compose %v1615, %v1610
        %v1620 = vextract.low.u32 %v1619
        %v1621 = vextract.high.u32 %v1619
        %v1622 = vmul.u32 %v1615, %v1606
        %v1623 = vadd.s32 %v1618, %v1620
        %vm1624 = vc.u32 %v1618, %v1620
        %v1625 = vadd.s32 %v1621, 1
        %v1626 = vsel %vm1624, %v1625, %v1621
        %v1627 = vadd.s32 %v1622, %v1626
        %v1628 = vadd.s32 %v1627, 536870912
        %v1629 = vshrl.u32 %v1628, 30
        %v1630 = vshll.u32 %v1629, 30
        %v1631 = vsub.s32 %v1627, %v1630
        %vm1632 = vcmp.lt.s32.totalorder %v1631, 0
        %v1633 = vsub.s32 0, %v1631
        %v1634 = vsel %vm1632, %v1633, %v1631
        %v1635 = vclz %v1634
        %v1636 = vsub.s32 %v1635, 2
        %vm1637 = vcmp.gt.s32.totalorder 0, %v1636
        %v1638 = vsel %vm1637, 0, %v1636
        %v1639 = vsub.s32 32, %v1638
        %v1640 = vshll.u32 %v1631, %v1638
        %v1641 = vshrl.u32 %v1623, %v1639
        %v1642 = vor.u32 %v1640, %v1641
        %v1643 = vsub.s32 4294967266, %v1638
        %v1644 = vadd.s32 %v1643, 127
        %v1645 = vshll.u32 %v1644, 23
        %v1646 = vor.u32 4788187, %v1645
        %v1647 = vand.u32 2147483647, %v1646
        %v1649 = vcvt.s32.f32 %v1642
        %v1650 = vmul.f32 %v1649, %v1647
        %v1651 = vxor.u32 %v1650, 2147483648
        %v1652 = vsel %vm1569, %v1651, %v1650
        %v1653 = vsub.s32 4, %v1629
        %v1654 = vsel %vm1569, %v1653, %v1629
        %v1655 = vsel %vm1568, %v322, %v1652
        %v1656 = vsel %vm1568, 0, %v1654
        %v1657 = vcosq.f32.pop %v1655
        %v1658 = vsinq.f32.pop %v1655
        %vm1659 = vweird.f32 %v322
        %v1660 = vand.u32 %v1656, 3
        %vm1661 = vcmp.lt.s32.totalorder %v1660, 2
        %vm1662 = vcmp.eq.s32.totalorder %v1660, 0
        %v1663 = vxor.u32 %v1658, 2147483648
        %v1664 = vsel %vm1662, %v1657, %v1663
        %vm1665 = vcmp.eq.s32.totalorder %v1660, 2
        %v1666 = vxor.u32 %v1657, 2147483648
        %v1667 = vsel %vm1665, %v1666, %v1658
        %v1668 = vsel %vm1661, %v1664, %v1667
        %v1669 = vsel %vm1659, nan, %v1668
        %v1670 = vand.u32 2147483647, %v323
        %vm1671 = vcmp.le.f32.partialorder %v1670, 0.7853982
        %vm1672 = vcmp.lt.s32.totalorder %v323, 0
        %v1673 = vand.u32 %v323, 2139095040
        %v1674 = vshrl.u32 %v1673, 23
        %v1675 = vsub.s32 %v1674, 127
        %v1676 = vand.u32 2147483647, %v323
        %v1677 = vand.u32 %v1676, 8388607
        %v1678 = vor.u32 %v1677, 8388608
        %v1679 = vsub.s32 0, %v1678
        %v1680 = vadd.s32 %v1675, 1
        %vm1681 = vcmp.gt.s32.totalorder %v1680, 0
        %v1682 = vsel %vm1681, %v1680, 0
        %v1683 = vshrl.u32 %v1682, 5
        %v1684 = vand.u32 %v1682, 31
        %v1685 = vsub.s32 32, %v1684
        %v1686 = vshrl.u32 683565275, %v1685
        %v1687 = vshll.u32 683565275, %v1684
        %v1688 = vshrl.u32 2475754826, %v1685
        %v1689 = vor.u32 %v1687, %v1688
        %v1690 = vshll.u32 2475754826, %v1684
        %v1691 = vshrl.u32 2131351028, %v1685
        %v1692 = vor.u32 %v1690, %v1691
        %v1693 = vshll.u32 2131351028, %v1684
        %v1694 = vshrl.u32 2102212464, %v1685
        %v1695 = vor.u32 %v1693, %v1694
        %v1696 = vshll.u32 2102212464, %v1684
        %v1697 = vshrl.u32 920167782, %v1685
        %v1698 = vor.u32 %v1696, %v1697
        %v1699 = vshll.u32 920167782, %v1684
        %v1700 = vshrl.u32 1326507024, %v1685
        %v1701 = vor.u32 %v1699, %v1700
        %vm1702 = vcmp.lt.s32.totalorder %v1683, 1
        %vm1703 = vcmp.lt.s32.totalorder %v1683, 2
        %vm1704 = vcmp.lt.s32.totalorder %v1683, 3
        %vm1705 = vcmp.lt.s32.totalorder %v1683, 4
        %v1706 = vsel %vm1702, %v1686, %v1689
        %v1707 = vsel %vm1705, %v1695, 2102212464
        %v1708 = vsel %vm1704, %v1692, %v1707
        %v1709 = vsel %vm1703, %v1706, %v1708
        %v1710 = vsel %vm1702, %v1689, %v1692
        %v1711 = vsel %vm1705, %v1698, 920167782
        %v1712 = vsel %vm1704, %v1695, %v1711
        %v1713 = vsel %vm1703, %v1710, %v1712
        %v1714 = vsel %vm1702, %v1692, %v1695
        %v1715 = vsel %vm1705, %v1701, 1326507024
        %v1716 = vsel %vm1704, %v1698, %v1715
        %v1717 = vsel %vm1703, %v1714, %v1716
        %v1718 = vshll.u32 %v1678, 8
        %v1719 = vmul.u32.u64.compose %v1718, %v1717
        %v1720 = vextract.low.u32 %v1719
        %v1721 = vextract.high.u32 %v1719
        %v1722 = vmul.u32.u64.compose %v1718, %v1713
        %v1723 = vextract.low.u32 %v1722
        %v1724 = vextract.high.u32 %v1722
        %v1725 = vmul.u32 %v1718, %v1709
        %v1726 = vadd.s32 %v1721, %v1723
        %vm1727 = vc.u32 %v1721, %v1723
        %v1728 = vadd.s32 %v1724, 1
        %v1729 = vsel %vm1727, %v1728, %v1724
        %v1730 = vadd.s32 %v1725, %v1729
        %v1731 = vadd.s32 %v1730, 536870912
        %v1732 = vshrl.u32 %v1731, 30
        %v1733 = vshll.u32 %v1732, 30
        %v1734 = vsub.s32 %v1730, %v1733
        %vm1735 = vcmp.lt.s32.totalorder %v1734, 0
        %v1736 = vsub.s32 0, %v1734
        %v1737 = vsel %vm1735, %v1736, %v1734
        %v1738 = vclz %v1737
        %v1739 = vsub.s32 %v1738, 2
        %vm1740 = vcmp.gt.s32.totalorder 0, %v1739
        %v1741 = vsel %vm1740, 0, %v1739
        %v1742 = vsub.s32 32, %v1741
        %v1743 = vshll.u32 %v1734, %v1741
        %v1744 = vshrl.u32 %v1726, %v1742
        %v1745 = vor.u32 %v1743, %v1744
        %v1746 = vsub.s32 4294967266, %v1741
        %v1747 = vadd.s32 %v1746, 127
        %v1748 = vshll.u32 %v1747, 23
        %v1749 = vor.u32 4788187, %v1748
        %v1750 = vand.u32 2147483647, %v1749
        %v1752 = vcvt.s32.f32 %v1745
        %v1753 = vmul.f32 %v1752, %v1750
        %v1754 = vxor.u32 %v1753, 2147483648
        %v1755 = vsel %vm1672, %v1754, %v1753
        %v1756 = vsub.s32 4, %v1732
        %v1757 = vsel %vm1672, %v1756, %v1732
        %v1758 = vsel %vm1671, %v323, %v1755
        %v1759 = vsel %vm1671, 0, %v1757
        %v1760 = vcosq.f32.pop %v1758
        %v1761 = vsinq.f32.pop %v1758
        %vm1762 = vweird.f32 %v323
        %v1763 = vand.u32 %v1759, 3
        %vm1764 = vcmp.lt.s32.totalorder %v1763, 2
        %vm1765 = vcmp.eq.s32.totalorder %v1763, 0
        %v1766 = vxor.u32 %v1761, 2147483648
        %v1767 = vsel %vm1765, %v1760, %v1766
        %vm1768 = vcmp.eq.s32.totalorder %v1763, 2
        %v1769 = vxor.u32 %v1760, 2147483648
        %v1770 = vsel %vm1768, %v1769, %v1761
        %v1771 = vsel %vm1764, %v1767, %v1770
        %v1772 = vsel %vm1762, nan, %v1771
        %v1773 = vand.u32 2147483647, %v310
        %vm1774 = vcmp.le.f32.partialorder %v1773, 0.7853982
        %vm1775 = vcmp.lt.s32.totalorder %v310, 0
        %v1776 = vand.u32 %v310, 2139095040
        %v1777 = vshrl.u32 %v1776, 23
        %v1778 = vsub.s32 %v1777, 127
        %v1779 = vand.u32 2147483647, %v310
        %v1780 = vand.u32 %v1779, 8388607
        %v1781 = vor.u32 %v1780, 8388608
        %v1782 = vsub.s32 0, %v1781
        %v1783 = vadd.s32 %v1778, 1
        %vm1784 = vcmp.gt.s32.totalorder %v1783, 0
        %v1785 = vsel %vm1784, %v1783, 0
        %v1786 = vshrl.u32 %v1785, 5
        %v1787 = vand.u32 %v1785, 31
        %v1788 = vsub.s32 32, %v1787
        %v1789 = vshrl.u32 683565275, %v1788
        %v1790 = vshll.u32 683565275, %v1787
        %v1791 = vshrl.u32 2475754826, %v1788
        %v1792 = vor.u32 %v1790, %v1791
        %v1793 = vshll.u32 2475754826, %v1787
        %v1794 = vshrl.u32 2131351028, %v1788
        %v1795 = vor.u32 %v1793, %v1794
        %v1796 = vshll.u32 2131351028, %v1787
        %v1797 = vshrl.u32 2102212464, %v1788
        %v1798 = vor.u32 %v1796, %v1797
        %v1799 = vshll.u32 2102212464, %v1787
        %v1800 = vshrl.u32 920167782, %v1788
        %v1801 = vor.u32 %v1799, %v1800
        %v1802 = vshll.u32 920167782, %v1787
        %v1803 = vshrl.u32 1326507024, %v1788
        %v1804 = vor.u32 %v1802, %v1803
        %vm1805 = vcmp.lt.s32.totalorder %v1786, 1
        %vm1806 = vcmp.lt.s32.totalorder %v1786, 2
        %vm1807 = vcmp.lt.s32.totalorder %v1786, 3
        %vm1808 = vcmp.lt.s32.totalorder %v1786, 4
        %v1809 = vsel %vm1805, %v1789, %v1792
        %v1810 = vsel %vm1808, %v1798, 2102212464
        %v1811 = vsel %vm1807, %v1795, %v1810
        %v1812 = vsel %vm1806, %v1809, %v1811
        %v1813 = vsel %vm1805, %v1792, %v1795
        %v1814 = vsel %vm1808, %v1801, 920167782
        %v1815 = vsel %vm1807, %v1798, %v1814
        %v1816 = vsel %vm1806, %v1813, %v1815
        %v1817 = vsel %vm1805, %v1795, %v1798
        %v1818 = vsel %vm1808, %v1804, 1326507024
        %v1819 = vsel %vm1807, %v1801, %v1818
        %v1820 = vsel %vm1806, %v1817, %v1819
        %v1821 = vshll.u32 %v1781, 8
        %v1822 = vmul.u32.u64.compose %v1821, %v1820
        %v1823 = vextract.low.u32 %v1822
        %v1824 = vextract.high.u32 %v1822
        %v1825 = vmul.u32.u64.compose %v1821, %v1816
        %v1826 = vextract.low.u32 %v1825
        %v1827 = vextract.high.u32 %v1825
        %v1828 = vmul.u32 %v1821, %v1812
        %v1829 = vadd.s32 %v1824, %v1826
        %vm1830 = vc.u32 %v1824, %v1826
        %v1831 = vadd.s32 %v1827, 1
        %v1832 = vsel %vm1830, %v1831, %v1827
        %v1833 = vadd.s32 %v1828, %v1832
        %v1834 = vadd.s32 %v1833, 536870912
        %v1835 = vshrl.u32 %v1834, 30
        %v1836 = vshll.u32 %v1835, 30
        %v1837 = vsub.s32 %v1833, %v1836
        %vm1838 = vcmp.lt.s32.totalorder %v1837, 0
        %v1839 = vsub.s32 0, %v1837
        %v1840 = vsel %vm1838, %v1839, %v1837
        %v1841 = vclz %v1840
        %v1842 = vsub.s32 %v1841, 2
        %vm1843 = vcmp.gt.s32.totalorder 0, %v1842
        %v1844 = vsel %vm1843, 0, %v1842
        %v1845 = vsub.s32 32, %v1844
        %v1846 = vshll.u32 %v1837, %v1844
        %v1847 = vshrl.u32 %v1829, %v1845
        %v1848 = vor.u32 %v1846, %v1847
        %v1849 = vsub.s32 4294967266, %v1844
        %v1850 = vadd.s32 %v1849, 127
        %v1851 = vshll.u32 %v1850, 23
        %v1852 = vor.u32 4788187, %v1851
        %v1853 = vand.u32 2147483647, %v1852
        %v1855 = vcvt.s32.f32 %v1848
        %v1856 = vmul.f32 %v1855, %v1853
        %v1857 = vxor.u32 %v1856, 2147483648
        %v1858 = vsel %vm1775, %v1857, %v1856
        %v1859 = vsub.s32 4, %v1835
        %v1860 = vsel %vm1775, %v1859, %v1835
        %v1861 = vsel %vm1774, %v310, %v1858
        %v1862 = vsel %vm1774, 0, %v1860
        %v1863 = vcosq.f32.pop %v1861
        %v1864 = vsinq.f32.pop %v1861
        %vm1865 = vweird.f32 %v310
        %v1866 = vand.u32 %v1862, 3
        %vm1867 = vcmp.lt.s32.totalorder %v1866, 2
        %vm1868 = vcmp.eq.s32.totalorder %v1866, 0
        %v1869 = vxor.u32 %v1864, 2147483648
        %v1870 = vsel %vm1868, %v1863, %v1869
        %vm1871 = vcmp.eq.s32.totalorder %v1866, 2
        %v1872 = vxor.u32 %v1863, 2147483648
        %v1873 = vsel %vm1871, %v1872, %v1864
        %v1874 = vsel %vm1867, %v1870, %v1873
        %v1875 = vsel %vm1865, nan, %v1874
        %v1876 = vand.u32 2147483647, %v311
        %vm1877 = vcmp.le.f32.partialorder %v1876, 0.7853982
        %vm1878 = vcmp.lt.s32.totalorder %v311, 0
        %v1879 = vand.u32 %v311, 2139095040
        %v1880 = vshrl.u32 %v1879, 23
        %v1881 = vsub.s32 %v1880, 127
        %v1882 = vand.u32 2147483647, %v311
        %v1883 = vand.u32 %v1882, 8388607
        %v1884 = vor.u32 %v1883, 8388608
        %v1885 = vsub.s32 0, %v1884
        %v1886 = vadd.s32 %v1881, 1
        %vm1887 = vcmp.gt.s32.totalorder %v1886, 0
        %v1888 = vsel %vm1887, %v1886, 0
        %v1889 = vshrl.u32 %v1888, 5
        %v1890 = vand.u32 %v1888, 31
        %v1891 = vsub.s32 32, %v1890
        %v1892 = vshrl.u32 683565275, %v1891
        %v1893 = vshll.u32 683565275, %v1890
        %v1894 = vshrl.u32 2475754826, %v1891
        %v1895 = vor.u32 %v1893, %v1894
        %v1896 = vshll.u32 2475754826, %v1890
        %v1897 = vshrl.u32 2131351028, %v1891
        %v1898 = vor.u32 %v1896, %v1897
        %v1899 = vshll.u32 2131351028, %v1890
        %v1900 = vshrl.u32 2102212464, %v1891
        %v1901 = vor.u32 %v1899, %v1900
        %v1902 = vshll.u32 2102212464, %v1890
        %v1903 = vshrl.u32 920167782, %v1891
        %v1904 = vor.u32 %v1902, %v1903
        %v1905 = vshll.u32 920167782, %v1890
        %v1906 = vshrl.u32 1326507024, %v1891
        %v1907 = vor.u32 %v1905, %v1906
        %vm1908 = vcmp.lt.s32.totalorder %v1889, 1
        %vm1909 = vcmp.lt.s32.totalorder %v1889, 2
        %vm1910 = vcmp.lt.s32.totalorder %v1889, 3
        %vm1911 = vcmp.lt.s32.totalorder %v1889, 4
        %v1912 = vsel %vm1908, %v1892, %v1895
        %v1913 = vsel %vm1911, %v1901, 2102212464
        %v1914 = vsel %vm1910, %v1898, %v1913
        %v1915 = vsel %vm1909, %v1912, %v1914
        %v1916 = vsel %vm1908, %v1895, %v1898
        %v1917 = vsel %vm1911, %v1904, 920167782
        %v1918 = vsel %vm1910, %v1901, %v1917
        %v1919 = vsel %vm1909, %v1916, %v1918
        %v1920 = vsel %vm1908, %v1898, %v1901
        %v1921 = vsel %vm1911, %v1907, 1326507024
        %v1922 = vsel %vm1910, %v1904, %v1921
        %v1923 = vsel %vm1909, %v1920, %v1922
        %v1924 = vshll.u32 %v1884, 8
        %v1925 = vmul.u32.u64.compose %v1924, %v1923
        %v1926 = vextract.low.u32 %v1925
        %v1927 = vextract.high.u32 %v1925
        %v1928 = vmul.u32.u64.compose %v1924, %v1919
        %v1929 = vextract.low.u32 %v1928
        %v1930 = vextract.high.u32 %v1928
        %v1931 = vmul.u32 %v1924, %v1915
        %v1932 = vadd.s32 %v1927, %v1929
        %vm1933 = vc.u32 %v1927, %v1929
        %v1934 = vadd.s32 %v1930, 1
        %v1935 = vsel %vm1933, %v1934, %v1930
        %v1936 = vadd.s32 %v1931, %v1935
        %v1937 = vadd.s32 %v1936, 536870912
        %v1938 = vshrl.u32 %v1937, 30
        %v1939 = vshll.u32 %v1938, 30
        %v1940 = vsub.s32 %v1936, %v1939
        %vm1941 = vcmp.lt.s32.totalorder %v1940, 0
        %v1942 = vsub.s32 0, %v1940
        %v1943 = vsel %vm1941, %v1942, %v1940
        %v1944 = vclz %v1943
        %v1945 = vsub.s32 %v1944, 2
        %vm1946 = vcmp.gt.s32.totalorder 0, %v1945
        %v1947 = vsel %vm1946, 0, %v1945
        %v1948 = vsub.s32 32, %v1947
        %v1949 = vshll.u32 %v1940, %v1947
        %v1950 = vshrl.u32 %v1932, %v1948
        %v1951 = vor.u32 %v1949, %v1950
        %v1952 = vsub.s32 4294967266, %v1947
        %v1953 = vadd.s32 %v1952, 127
        %v1954 = vshll.u32 %v1953, 23
        %v1955 = vor.u32 4788187, %v1954
        %v1956 = vand.u32 2147483647, %v1955
        %v1958 = vcvt.s32.f32 %v1951
        %v1959 = vmul.f32 %v1958, %v1956
        %v1960 = vxor.u32 %v1959, 2147483648
        %v1961 = vsel %vm1878, %v1960, %v1959
        %v1962 = vsub.s32 4, %v1938
        %v1963 = vsel %vm1878, %v1962, %v1938
        %v1964 = vsel %vm1877, %v311, %v1961
        %v1965 = vsel %vm1877, 0, %v1963
        %v1966 = vcosq.f32.pop %v1964
        %v1967 = vsinq.f32.pop %v1964
        %vm1968 = vweird.f32 %v311
        %v1969 = vand.u32 %v1965, 3
        %vm1970 = vcmp.lt.s32.totalorder %v1969, 2
        %vm1971 = vcmp.eq.s32.totalorder %v1969, 0
        %v1972 = vxor.u32 %v1967, 2147483648
        %v1973 = vsel %vm1971, %v1966, %v1972
        %vm1974 = vcmp.eq.s32.totalorder %v1969, 2
        %v1975 = vxor.u32 %v1966, 2147483648
        %v1976 = vsel %vm1974, %v1975, %v1967
        %v1977 = vsel %vm1970, %v1973, %v1976
        %v1978 = vsel %vm1968, nan, %v1977
        %v1979 = vand.u32 2147483647, %v312
        %vm1980 = vcmp.le.f32.partialorder %v1979, 0.7853982
        %vm1981 = vcmp.lt.s32.totalorder %v312, 0
        %v1982 = vand.u32 %v312, 2139095040
        %v1983 = vshrl.u32 %v1982, 23
        %v1984 = vsub.s32 %v1983, 127
        %v1985 = vand.u32 2147483647, %v312
        %v1986 = vand.u32 %v1985, 8388607
        %v1987 = vor.u32 %v1986, 8388608
        %v1988 = vsub.s32 0, %v1987
        %v1989 = vadd.s32 %v1984, 1
        %vm1990 = vcmp.gt.s32.totalorder %v1989, 0
        %v1991 = vsel %vm1990, %v1989, 0
        %v1992 = vshrl.u32 %v1991, 5
        %v1993 = vand.u32 %v1991, 31
        %v1994 = vsub.s32 32, %v1993
        %v1995 = vshrl.u32 683565275, %v1994
        %v1996 = vshll.u32 683565275, %v1993
        %v1997 = vshrl.u32 2475754826, %v1994
        %v1998 = vor.u32 %v1996, %v1997
        %v1999 = vshll.u32 2475754826, %v1993
        %v2000 = vshrl.u32 2131351028, %v1994
        %v2001 = vor.u32 %v1999, %v2000
        %v2002 = vshll.u32 2131351028, %v1993
        %v2003 = vshrl.u32 2102212464, %v1994
        %v2004 = vor.u32 %v2002, %v2003
        %v2005 = vshll.u32 2102212464, %v1993
        %v2006 = vshrl.u32 920167782, %v1994
        %v2007 = vor.u32 %v2005, %v2006
        %v2008 = vshll.u32 920167782, %v1993
        %v2009 = vshrl.u32 1326507024, %v1994
        %v2010 = vor.u32 %v2008, %v2009
        %vm2011 = vcmp.lt.s32.totalorder %v1992, 1
        %vm2012 = vcmp.lt.s32.totalorder %v1992, 2
        %vm2013 = vcmp.lt.s32.totalorder %v1992, 3
        %vm2014 = vcmp.lt.s32.totalorder %v1992, 4
        %v2015 = vsel %vm2011, %v1995, %v1998
        %v2016 = vsel %vm2014, %v2004, 2102212464
        %v2017 = vsel %vm2013, %v2001, %v2016
        %v2018 = vsel %vm2012, %v2015, %v2017
        %v2019 = vsel %vm2011, %v1998, %v2001
        %v2020 = vsel %vm2014, %v2007, 920167782
        %v2021 = vsel %vm2013, %v2004, %v2020
        %v2022 = vsel %vm2012, %v2019, %v2021
        %v2023 = vsel %vm2011, %v2001, %v2004
        %v2024 = vsel %vm2014, %v2010, 1326507024
        %v2025 = vsel %vm2013, %v2007, %v2024
        %v2026 = vsel %vm2012, %v2023, %v2025
        %v2027 = vshll.u32 %v1987, 8
        %v2028 = vmul.u32.u64.compose %v2027, %v2026
        %v2029 = vextract.low.u32 %v2028
        %v2030 = vextract.high.u32 %v2028
        %v2031 = vmul.u32.u64.compose %v2027, %v2022
        %v2032 = vextract.low.u32 %v2031
        %v2033 = vextract.high.u32 %v2031
        %v2034 = vmul.u32 %v2027, %v2018
        %v2035 = vadd.s32 %v2030, %v2032
        %vm2036 = vc.u32 %v2030, %v2032
        %v2037 = vadd.s32 %v2033, 1
        %v2038 = vsel %vm2036, %v2037, %v2033
        %v2039 = vadd.s32 %v2034, %v2038
        %v2040 = vadd.s32 %v2039, 536870912
        %v2041 = vshrl.u32 %v2040, 30
        %v2042 = vshll.u32 %v2041, 30
        %v2043 = vsub.s32 %v2039, %v2042
        %vm2044 = vcmp.lt.s32.totalorder %v2043, 0
        %v2045 = vsub.s32 0, %v2043
        %v2046 = vsel %vm2044, %v2045, %v2043
        %v2047 = vclz %v2046
        %v2048 = vsub.s32 %v2047, 2
        %vm2049 = vcmp.gt.s32.totalorder 0, %v2048
        %v2050 = vsel %vm2049, 0, %v2048
        %v2051 = vsub.s32 32, %v2050
        %v2052 = vshll.u32 %v2043, %v2050
        %v2053 = vshrl.u32 %v2035, %v2051
        %v2054 = vor.u32 %v2052, %v2053
        %v2055 = vsub.s32 4294967266, %v2050
        %v2056 = vadd.s32 %v2055, 127
        %v2057 = vshll.u32 %v2056, 23
        %v2058 = vor.u32 4788187, %v2057
        %v2059 = vand.u32 2147483647, %v2058
        %v2061 = vcvt.s32.f32 %v2054
        %v2062 = vmul.f32 %v2061, %v2059
        %v2063 = vxor.u32 %v2062, 2147483648
        %v2064 = vsel %vm1981, %v2063, %v2062
        %v2065 = vsub.s32 4, %v2041
        %v2066 = vsel %vm1981, %v2065, %v2041
        %v2067 = vsel %vm1980, %v312, %v2064
        %v2068 = vsel %vm1980, 0, %v2066
        %v2069 = vcosq.f32.pop %v2067
        %v2070 = vsinq.f32.pop %v2067
        %vm2071 = vweird.f32 %v312
        %v2072 = vand.u32 %v2068, 3
        %vm2073 = vcmp.lt.s32.totalorder %v2072, 2
        %vm2074 = vcmp.eq.s32.totalorder %v2072, 0
        %v2075 = vxor.u32 %v2070, 2147483648
        %v2076 = vsel %vm2074, %v2069, %v2075
        %vm2077 = vcmp.eq.s32.totalorder %v2072, 2
        %v2078 = vxor.u32 %v2069, 2147483648
        %v2079 = vsel %vm2077, %v2078, %v2070
        %v2080 = vsel %vm2073, %v2076, %v2079
        %v2081 = vsel %vm2071, nan, %v2080
        %v2082 = vand.u32 2147483647, %v313
        %vm2083 = vcmp.le.f32.partialorder %v2082, 0.7853982
        %vm2084 = vcmp.lt.s32.totalorder %v313, 0
        %v2085 = vand.u32 %v313, 2139095040
        %v2086 = vshrl.u32 %v2085, 23
        %v2087 = vsub.s32 %v2086, 127
        %v2088 = vand.u32 2147483647, %v313
        %v2089 = vand.u32 %v2088, 8388607
        %v2090 = vor.u32 %v2089, 8388608
        %v2091 = vsub.s32 0, %v2090
        %v2092 = vadd.s32 %v2087, 1
        %vm2093 = vcmp.gt.s32.totalorder %v2092, 0
        %v2094 = vsel %vm2093, %v2092, 0
        %v2095 = vshrl.u32 %v2094, 5
        %v2096 = vand.u32 %v2094, 31
        %v2097 = vsub.s32 32, %v2096
        %v2098 = vshrl.u32 683565275, %v2097
        %v2099 = vshll.u32 683565275, %v2096
        %v2100 = vshrl.u32 2475754826, %v2097
        %v2101 = vor.u32 %v2099, %v2100
        %v2102 = vshll.u32 2475754826, %v2096
        %v2103 = vshrl.u32 2131351028, %v2097
        %v2104 = vor.u32 %v2102, %v2103
        %v2105 = vshll.u32 2131351028, %v2096
        %v2106 = vshrl.u32 2102212464, %v2097
        %v2107 = vor.u32 %v2105, %v2106
        %v2108 = vshll.u32 2102212464, %v2096
        %v2109 = vshrl.u32 920167782, %v2097
        %v2110 = vor.u32 %v2108, %v2109
        %v2111 = vshll.u32 920167782, %v2096
        %v2112 = vshrl.u32 1326507024, %v2097
        %v2113 = vor.u32 %v2111, %v2112
        %vm2114 = vcmp.lt.s32.totalorder %v2095, 1
        %vm2115 = vcmp.lt.s32.totalorder %v2095, 2
        %vm2116 = vcmp.lt.s32.totalorder %v2095, 3
        %vm2117 = vcmp.lt.s32.totalorder %v2095, 4
        %v2118 = vsel %vm2114, %v2098, %v2101
        %v2119 = vsel %vm2117, %v2107, 2102212464
        %v2120 = vsel %vm2116, %v2104, %v2119
        %v2121 = vsel %vm2115, %v2118, %v2120
        %v2122 = vsel %vm2114, %v2101, %v2104
        %v2123 = vsel %vm2117, %v2110, 920167782
        %v2124 = vsel %vm2116, %v2107, %v2123
        %v2125 = vsel %vm2115, %v2122, %v2124
        %v2126 = vsel %vm2114, %v2104, %v2107
        %v2127 = vsel %vm2117, %v2113, 1326507024
        %v2128 = vsel %vm2116, %v2110, %v2127
        %v2129 = vsel %vm2115, %v2126, %v2128
        %v2130 = vshll.u32 %v2090, 8
        %v2131 = vmul.u32.u64.compose %v2130, %v2129
        %v2132 = vextract.low.u32 %v2131
        %v2133 = vextract.high.u32 %v2131
        %v2134 = vmul.u32.u64.compose %v2130, %v2125
        %v2135 = vextract.low.u32 %v2134
        %v2136 = vextract.high.u32 %v2134
        %v2137 = vmul.u32 %v2130, %v2121
        %v2138 = vadd.s32 %v2133, %v2135
        %vm2139 = vc.u32 %v2133, %v2135
        %v2140 = vadd.s32 %v2136, 1
        %v2141 = vsel %vm2139, %v2140, %v2136
        %v2142 = vadd.s32 %v2137, %v2141
        %v2143 = vadd.s32 %v2142, 536870912
        %v2144 = vshrl.u32 %v2143, 30
        %v2145 = vshll.u32 %v2144, 30
        %v2146 = vsub.s32 %v2142, %v2145
        %vm2147 = vcmp.lt.s32.totalorder %v2146, 0
        %v2148 = vsub.s32 0, %v2146
        %v2149 = vsel %vm2147, %v2148, %v2146
        %v2150 = vclz %v2149
        %v2151 = vsub.s32 %v2150, 2
        %vm2152 = vcmp.gt.s32.totalorder 0, %v2151
        %v2153 = vsel %vm2152, 0, %v2151
        %v2154 = vsub.s32 32, %v2153
        %v2155 = vshll.u32 %v2146, %v2153
        %v2156 = vshrl.u32 %v2138, %v2154
        %v2157 = vor.u32 %v2155, %v2156
        %v2158 = vsub.s32 4294967266, %v2153
        %v2159 = vadd.s32 %v2158, 127
        %v2160 = vshll.u32 %v2159, 23
        %v2161 = vor.u32 4788187, %v2160
        %v2162 = vand.u32 2147483647, %v2161
        %v2164 = vcvt.s32.f32 %v2157
        %v2165 = vmul.f32 %v2164, %v2162
        %v2166 = vxor.u32 %v2165, 2147483648
        %v2167 = vsel %vm2084, %v2166, %v2165
        %v2168 = vsub.s32 4, %v2144
        %v2169 = vsel %vm2084, %v2168, %v2144
        %v2170 = vsel %vm2083, %v313, %v2167
        %v2171 = vsel %vm2083, 0, %v2169
        %v2172 = vcosq.f32.pop %v2170
        %v2173 = vsinq.f32.pop %v2170
        %vm2174 = vweird.f32 %v313
        %v2175 = vand.u32 %v2171, 3
        %vm2176 = vcmp.lt.s32.totalorder %v2175, 2
        %vm2177 = vcmp.eq.s32.totalorder %v2175, 0
        %v2178 = vxor.u32 %v2173, 2147483648
        %v2179 = vsel %vm2177, %v2172, %v2178
        %vm2180 = vcmp.eq.s32.totalorder %v2175, 2
        %v2181 = vxor.u32 %v2172, 2147483648
        %v2182 = vsel %vm2180, %v2181, %v2173
        %v2183 = vsel %vm2176, %v2179, %v2182
        %v2184 = vsel %vm2174, nan, %v2183
        %v2185 = vand.u32 2147483647, %v314
        %vm2186 = vcmp.le.f32.partialorder %v2185, 0.7853982
        %vm2187 = vcmp.lt.s32.totalorder %v314, 0
        %v2188 = vand.u32 %v314, 2139095040
        %v2189 = vshrl.u32 %v2188, 23
        %v2190 = vsub.s32 %v2189, 127
        %v2191 = vand.u32 2147483647, %v314
        %v2192 = vand.u32 %v2191, 8388607
        %v2193 = vor.u32 %v2192, 8388608
        %v2194 = vsub.s32 0, %v2193
        %v2195 = vadd.s32 %v2190, 1
        %vm2196 = vcmp.gt.s32.totalorder %v2195, 0
        %v2197 = vsel %vm2196, %v2195, 0
        %v2198 = vshrl.u32 %v2197, 5
        %v2199 = vand.u32 %v2197, 31
        %v2200 = vsub.s32 32, %v2199
        %v2201 = vshrl.u32 683565275, %v2200
        %v2202 = vshll.u32 683565275, %v2199
        %v2203 = vshrl.u32 2475754826, %v2200
        %v2204 = vor.u32 %v2202, %v2203
        %v2205 = vshll.u32 2475754826, %v2199
        %v2206 = vshrl.u32 2131351028, %v2200
        %v2207 = vor.u32 %v2205, %v2206
        %v2208 = vshll.u32 2131351028, %v2199
        %v2209 = vshrl.u32 2102212464, %v2200
        %v2210 = vor.u32 %v2208, %v2209
        %v2211 = vshll.u32 2102212464, %v2199
        %v2212 = vshrl.u32 920167782, %v2200
        %v2213 = vor.u32 %v2211, %v2212
        %v2214 = vshll.u32 920167782, %v2199
        %v2215 = vshrl.u32 1326507024, %v2200
        %v2216 = vor.u32 %v2214, %v2215
        %vm2217 = vcmp.lt.s32.totalorder %v2198, 1
        %vm2218 = vcmp.lt.s32.totalorder %v2198, 2
        %vm2219 = vcmp.lt.s32.totalorder %v2198, 3
        %vm2220 = vcmp.lt.s32.totalorder %v2198, 4
        %v2221 = vsel %vm2217, %v2201, %v2204
        %v2222 = vsel %vm2220, %v2210, 2102212464
        %v2223 = vsel %vm2219, %v2207, %v2222
        %v2224 = vsel %vm2218, %v2221, %v2223
        %v2225 = vsel %vm2217, %v2204, %v2207
        %v2226 = vsel %vm2220, %v2213, 920167782
        %v2227 = vsel %vm2219, %v2210, %v2226
        %v2228 = vsel %vm2218, %v2225, %v2227
        %v2229 = vsel %vm2217, %v2207, %v2210
        %v2230 = vsel %vm2220, %v2216, 1326507024
        %v2231 = vsel %vm2219, %v2213, %v2230
        %v2232 = vsel %vm2218, %v2229, %v2231
        %v2233 = vshll.u32 %v2193, 8
        %v2234 = vmul.u32.u64.compose %v2233, %v2232
        %v2235 = vextract.low.u32 %v2234
        %v2236 = vextract.high.u32 %v2234
        %v2237 = vmul.u32.u64.compose %v2233, %v2228
        %v2238 = vextract.low.u32 %v2237
        %v2239 = vextract.high.u32 %v2237
        %v2240 = vmul.u32 %v2233, %v2224
        %v2241 = vadd.s32 %v2236, %v2238
        %vm2242 = vc.u32 %v2236, %v2238
        %v2243 = vadd.s32 %v2239, 1
        %v2244 = vsel %vm2242, %v2243, %v2239
        %v2245 = vadd.s32 %v2240, %v2244
        %v2246 = vadd.s32 %v2245, 536870912
        %v2247 = vshrl.u32 %v2246, 30
        %v2248 = vshll.u32 %v2247, 30
        %v2249 = vsub.s32 %v2245, %v2248
        %vm2250 = vcmp.lt.s32.totalorder %v2249, 0
        %v2251 = vsub.s32 0, %v2249
        %v2252 = vsel %vm2250, %v2251, %v2249
        %v2253 = vclz %v2252
        %v2254 = vsub.s32 %v2253, 2
        %vm2255 = vcmp.gt.s32.totalorder 0, %v2254
        %v2256 = vsel %vm2255, 0, %v2254
        %v2257 = vsub.s32 32, %v2256
        %v2258 = vshll.u32 %v2249, %v2256
        %v2259 = vshrl.u32 %v2241, %v2257
        %v2260 = vor.u32 %v2258, %v2259
        %v2261 = vsub.s32 4294967266, %v2256
        %v2262 = vadd.s32 %v2261, 127
        %v2263 = vshll.u32 %v2262, 23
        %v2264 = vor.u32 4788187, %v2263
        %v2265 = vand.u32 2147483647, %v2264
        %v2267 = vcvt.s32.f32 %v2260
        %v2268 = vmul.f32 %v2267, %v2265
        %v2269 = vxor.u32 %v2268, 2147483648
        %v2270 = vsel %vm2187, %v2269, %v2268
        %v2271 = vsub.s32 4, %v2247
        %v2272 = vsel %vm2187, %v2271, %v2247
        %v2273 = vsel %vm2186, %v314, %v2270
        %v2274 = vsel %vm2186, 0, %v2272
        %v2275 = vcosq.f32.pop %v2273
        %v2276 = vsinq.f32.pop %v2273
        %vm2277 = vweird.f32 %v314
        %v2278 = vand.u32 %v2274, 3
        %vm2279 = vcmp.lt.s32.totalorder %v2278, 2
        %vm2280 = vcmp.eq.s32.totalorder %v2278, 0
        %v2281 = vxor.u32 %v2276, 2147483648
        %v2282 = vsel %vm2280, %v2275, %v2281
        %vm2283 = vcmp.eq.s32.totalorder %v2278, 2
        %v2284 = vxor.u32 %v2275, 2147483648
        %v2285 = vsel %vm2283, %v2284, %v2276
        %v2286 = vsel %vm2279, %v2282, %v2285
        %v2287 = vsel %vm2277, nan, %v2286
        %v2288 = vand.u32 2147483647, %v315
        %vm2289 = vcmp.le.f32.partialorder %v2288, 0.7853982
        %vm2290 = vcmp.lt.s32.totalorder %v315, 0
        %v2291 = vand.u32 %v315, 2139095040
        %v2292 = vshrl.u32 %v2291, 23
        %v2293 = vsub.s32 %v2292, 127
        %v2294 = vand.u32 2147483647, %v315
        %v2295 = vand.u32 %v2294, 8388607
        %v2296 = vor.u32 %v2295, 8388608
        %v2297 = vsub.s32 0, %v2296
        %v2298 = vadd.s32 %v2293, 1
        %vm2299 = vcmp.gt.s32.totalorder %v2298, 0
        %v2300 = vsel %vm2299, %v2298, 0
        %v2301 = vshrl.u32 %v2300, 5
        %v2302 = vand.u32 %v2300, 31
        %v2303 = vsub.s32 32, %v2302
        %v2304 = vshrl.u32 683565275, %v2303
        %v2305 = vshll.u32 683565275, %v2302
        %v2306 = vshrl.u32 2475754826, %v2303
        %v2307 = vor.u32 %v2305, %v2306
        %v2308 = vshll.u32 2475754826, %v2302
        %v2309 = vshrl.u32 2131351028, %v2303
        %v2310 = vor.u32 %v2308, %v2309
        %v2311 = vshll.u32 2131351028, %v2302
        %v2312 = vshrl.u32 2102212464, %v2303
        %v2313 = vor.u32 %v2311, %v2312
        %v2314 = vshll.u32 2102212464, %v2302
        %v2315 = vshrl.u32 920167782, %v2303
        %v2316 = vor.u32 %v2314, %v2315
        %v2317 = vshll.u32 920167782, %v2302
        %v2318 = vshrl.u32 1326507024, %v2303
        %v2319 = vor.u32 %v2317, %v2318
        %vm2320 = vcmp.lt.s32.totalorder %v2301, 1
        %vm2321 = vcmp.lt.s32.totalorder %v2301, 2
        %vm2322 = vcmp.lt.s32.totalorder %v2301, 3
        %vm2323 = vcmp.lt.s32.totalorder %v2301, 4
        %v2324 = vsel %vm2320, %v2304, %v2307
        %v2325 = vsel %vm2323, %v2313, 2102212464
        %v2326 = vsel %vm2322, %v2310, %v2325
        %v2327 = vsel %vm2321, %v2324, %v2326
        %v2328 = vsel %vm2320, %v2307, %v2310
        %v2329 = vsel %vm2323, %v2316, 920167782
        %v2330 = vsel %vm2322, %v2313, %v2329
        %v2331 = vsel %vm2321, %v2328, %v2330
        %v2332 = vsel %vm2320, %v2310, %v2313
        %v2333 = vsel %vm2323, %v2319, 1326507024
        %v2334 = vsel %vm2322, %v2316, %v2333
        %v2335 = vsel %vm2321, %v2332, %v2334
        %v2336 = vshll.u32 %v2296, 8
        %v2337 = vmul.u32.u64.compose %v2336, %v2335
        %v2338 = vextract.low.u32 %v2337
        %v2339 = vextract.high.u32 %v2337
        %v2340 = vmul.u32.u64.compose %v2336, %v2331
        %v2341 = vextract.low.u32 %v2340
        %v2342 = vextract.high.u32 %v2340
        %v2343 = vmul.u32 %v2336, %v2327
        %v2344 = vadd.s32 %v2339, %v2341
        %vm2345 = vc.u32 %v2339, %v2341
        %v2346 = vadd.s32 %v2342, 1
        %v2347 = vsel %vm2345, %v2346, %v2342
        %v2348 = vadd.s32 %v2343, %v2347
        %v2349 = vadd.s32 %v2348, 536870912
        %v2350 = vshrl.u32 %v2349, 30
        %v2351 = vshll.u32 %v2350, 30
        %v2352 = vsub.s32 %v2348, %v2351
        %vm2353 = vcmp.lt.s32.totalorder %v2352, 0
        %v2354 = vsub.s32 0, %v2352
        %v2355 = vsel %vm2353, %v2354, %v2352
        %v2356 = vclz %v2355
        %v2357 = vsub.s32 %v2356, 2
        %vm2358 = vcmp.gt.s32.totalorder 0, %v2357
        %v2359 = vsel %vm2358, 0, %v2357
        %v2360 = vsub.s32 32, %v2359
        %v2361 = vshll.u32 %v2352, %v2359
        %v2362 = vshrl.u32 %v2344, %v2360
        %v2363 = vor.u32 %v2361, %v2362
        %v2364 = vsub.s32 4294967266, %v2359
        %v2365 = vadd.s32 %v2364, 127
        %v2366 = vshll.u32 %v2365, 23
        %v2367 = vor.u32 4788187, %v2366
        %v2368 = vand.u32 2147483647, %v2367
        %v2370 = vcvt.s32.f32 %v2363
        %v2371 = vmul.f32 %v2370, %v2368
        %v2372 = vxor.u32 %v2371, 2147483648
        %v2373 = vsel %vm2290, %v2372, %v2371
        %v2374 = vsub.s32 4, %v2350
        %v2375 = vsel %vm2290, %v2374, %v2350
        %v2376 = vsel %vm2289, %v315, %v2373
        %v2377 = vsel %vm2289, 0, %v2375
        %v2378 = vcosq.f32.pop %v2376
        %v2379 = vsinq.f32.pop %v2376
        %vm2380 = vweird.f32 %v315
        %v2381 = vand.u32 %v2377, 3
        %vm2382 = vcmp.lt.s32.totalorder %v2381, 2
        %vm2383 = vcmp.eq.s32.totalorder %v2381, 0
        %v2384 = vxor.u32 %v2379, 2147483648
        %v2385 = vsel %vm2383, %v2378, %v2384
        %vm2386 = vcmp.eq.s32.totalorder %v2381, 2
        %v2387 = vxor.u32 %v2378, 2147483648
        %v2388 = vsel %vm2386, %v2387, %v2379
        %v2389 = vsel %vm2382, %v2385, %v2388
        %v2390 = vsel %vm2380, nan, %v2389
        %v2391 = vand.u32 2147483647, %v316
        %vm2392 = vcmp.le.f32.partialorder %v2391, 0.7853982
        %vm2393 = vcmp.lt.s32.totalorder %v316, 0
        %v2394 = vand.u32 %v316, 2139095040
        %v2395 = vshrl.u32 %v2394, 23
        %v2396 = vsub.s32 %v2395, 127
        %v2397 = vand.u32 2147483647, %v316
        %v2398 = vand.u32 %v2397, 8388607
        %v2399 = vor.u32 %v2398, 8388608
        %v2400 = vsub.s32 0, %v2399
        %v2401 = vadd.s32 %v2396, 1
        %vm2402 = vcmp.gt.s32.totalorder %v2401, 0
        %v2403 = vsel %vm2402, %v2401, 0
        %v2404 = vshrl.u32 %v2403, 5
        %v2405 = vand.u32 %v2403, 31
        %v2406 = vsub.s32 32, %v2405
        %v2407 = vshrl.u32 683565275, %v2406
        %v2408 = vshll.u32 683565275, %v2405
        %v2409 = vshrl.u32 2475754826, %v2406
        %v2410 = vor.u32 %v2408, %v2409
        %v2411 = vshll.u32 2475754826, %v2405
        %v2412 = vshrl.u32 2131351028, %v2406
        %v2413 = vor.u32 %v2411, %v2412
        %v2414 = vshll.u32 2131351028, %v2405
        %v2415 = vshrl.u32 2102212464, %v2406
        %v2416 = vor.u32 %v2414, %v2415
        %v2417 = vshll.u32 2102212464, %v2405
        %v2418 = vshrl.u32 920167782, %v2406
        %v2419 = vor.u32 %v2417, %v2418
        %v2420 = vshll.u32 920167782, %v2405
        %v2421 = vshrl.u32 1326507024, %v2406
        %v2422 = vor.u32 %v2420, %v2421
        %vm2423 = vcmp.lt.s32.totalorder %v2404, 1
        %vm2424 = vcmp.lt.s32.totalorder %v2404, 2
        %vm2425 = vcmp.lt.s32.totalorder %v2404, 3
        %vm2426 = vcmp.lt.s32.totalorder %v2404, 4
        %v2427 = vsel %vm2423, %v2407, %v2410
        %v2428 = vsel %vm2426, %v2416, 2102212464
        %v2429 = vsel %vm2425, %v2413, %v2428
        %v2430 = vsel %vm2424, %v2427, %v2429
        %v2431 = vsel %vm2423, %v2410, %v2413
        %v2432 = vsel %vm2426, %v2419, 920167782
        %v2433 = vsel %vm2425, %v2416, %v2432
        %v2434 = vsel %vm2424, %v2431, %v2433
        %v2435 = vsel %vm2423, %v2413, %v2416
        %v2436 = vsel %vm2426, %v2422, 1326507024
        %v2437 = vsel %vm2425, %v2419, %v2436
        %v2438 = vsel %vm2424, %v2435, %v2437
        %v2439 = vshll.u32 %v2399, 8
        %v2440 = vmul.u32.u64.compose %v2439, %v2438
        %v2441 = vextract.low.u32 %v2440
        %v2442 = vextract.high.u32 %v2440
        %v2443 = vmul.u32.u64.compose %v2439, %v2434
        %v2444 = vextract.low.u32 %v2443
        %v2445 = vextract.high.u32 %v2443
        %v2446 = vmul.u32 %v2439, %v2430
        %v2447 = vadd.s32 %v2442, %v2444
        %vm2448 = vc.u32 %v2442, %v2444
        %v2449 = vadd.s32 %v2445, 1
        %v2450 = vsel %vm2448, %v2449, %v2445
        %v2451 = vadd.s32 %v2446, %v2450
        %v2452 = vadd.s32 %v2451, 536870912
        %v2453 = vshrl.u32 %v2452, 30
        %v2454 = vshll.u32 %v2453, 30
        %v2455 = vsub.s32 %v2451, %v2454
        %vm2456 = vcmp.lt.s32.totalorder %v2455, 0
        %v2457 = vsub.s32 0, %v2455
        %v2458 = vsel %vm2456, %v2457, %v2455
        %v2459 = vclz %v2458
        %v2460 = vsub.s32 %v2459, 2
        %vm2461 = vcmp.gt.s32.totalorder 0, %v2460
        %v2462 = vsel %vm2461, 0, %v2460
        %v2463 = vsub.s32 32, %v2462
        %v2464 = vshll.u32 %v2455, %v2462
        %v2465 = vshrl.u32 %v2447, %v2463
        %v2466 = vor.u32 %v2464, %v2465
        %v2467 = vsub.s32 4294967266, %v2462
        %v2468 = vadd.s32 %v2467, 127
        %v2469 = vshll.u32 %v2468, 23
        %v2470 = vor.u32 4788187, %v2469
        %v2471 = vand.u32 2147483647, %v2470
        %v2473 = vcvt.s32.f32 %v2466
        %v2474 = vmul.f32 %v2473, %v2471
        %v2475 = vxor.u32 %v2474, 2147483648
        %v2476 = vsel %vm2393, %v2475, %v2474
        %v2477 = vsub.s32 4, %v2453
        %v2478 = vsel %vm2393, %v2477, %v2453
        %v2479 = vsel %vm2392, %v316, %v2476
        %v2480 = vsel %vm2392, 0, %v2478
        %v2481 = vcosq.f32.pop %v2479
        %v2482 = vsinq.f32.pop %v2479
        %vm2483 = vweird.f32 %v316
        %v2484 = vand.u32 %v2480, 3
        %vm2485 = vcmp.lt.s32.totalorder %v2484, 2
        %vm2486 = vcmp.eq.s32.totalorder %v2484, 0
        %v2487 = vxor.u32 %v2482, 2147483648
        %v2488 = vsel %vm2486, %v2481, %v2487
        %vm2489 = vcmp.eq.s32.totalorder %v2484, 2
        %v2490 = vxor.u32 %v2481, 2147483648
        %v2491 = vsel %vm2489, %v2490, %v2482
        %v2492 = vsel %vm2485, %v2488, %v2491
        %v2493 = vsel %vm2483, nan, %v2492
        %2501 = vrot.lane.b32.xlu0 %v1875, 1
        %v2502 = vpop.permute.xlu0 %2501
        %2503 = vrot.lane.b32.xlu0 %v1978, 1
        %v2504 = vpop.permute.xlu0 %2503
        %2505 = vrot.lane.b32.xlu0 %v2081, 1
        %v2506 = vpop.permute.xlu0 %2505
        %2507 = vrot.lane.b32.xlu0 %v2184, 1
        %v2508 = vpop.permute.xlu0 %2507
        %2509 = vrot.lane.b32.xlu0 %v2287, 1
        %v2510 = vpop.permute.xlu0 %2509
        %2511 = vrot.lane.b32.xlu0 %v2390, 1
        %v2512 = vpop.permute.xlu0 %2511
        %2513 = vrot.lane.b32.xlu0 %v2493, 1
        %v2514 = vpop.permute.xlu0 %2513
        %v2522 = vmul.f32 %v427, %v2502
        %v2523 = vmul.f32 %v531, %v2504
        %v2524 = vmul.f32 %v635, %v2506
        %v2525 = vmul.f32 %v739, %v2508
        %v2526 = vmul.f32 %v843, %v2510
        %v2527 = vmul.f32 %v947, %v2512
        %v2528 = vmul.f32 %v1051, %v2514
        %v2529 = vand.u32 2147483647, %v310
        %vm2530 = vcmp.le.f32.partialorder %v2529, 0.7853982
        %vm2531 = vcmp.lt.s32.totalorder %v310, 0
        %v2532 = vand.u32 %v310, 2139095040
        %v2533 = vshrl.u32 %v2532, 23
        %v2534 = vsub.s32 %v2533, 127
        %v2535 = vand.u32 2147483647, %v310
        %v2536 = vand.u32 %v2535, 8388607
        %v2537 = vor.u32 %v2536, 8388608
        %v2538 = vsub.s32 0, %v2537
        %v2539 = vadd.s32 %v2534, 1
        %vm2540 = vcmp.gt.s32.totalorder %v2539, 0
        %v2541 = vsel %vm2540, %v2539, 0
        %v2542 = vshrl.u32 %v2541, 5
        %v2543 = vand.u32 %v2541, 31
        %v2544 = vsub.s32 32, %v2543
        %v2545 = vshrl.u32 683565275, %v2544
        %v2546 = vshll.u32 683565275, %v2543
        %v2547 = vshrl.u32 2475754826, %v2544
        %v2548 = vor.u32 %v2546, %v2547
        %v2549 = vshll.u32 2475754826, %v2543
        %v2550 = vshrl.u32 2131351028, %v2544
        %v2551 = vor.u32 %v2549, %v2550
        %v2552 = vshll.u32 2131351028, %v2543
        %v2553 = vshrl.u32 2102212464, %v2544
        %v2554 = vor.u32 %v2552, %v2553
        %v2555 = vshll.u32 2102212464, %v2543
        %v2556 = vshrl.u32 920167782, %v2544
        %v2557 = vor.u32 %v2555, %v2556
        %v2558 = vshll.u32 920167782, %v2543
        %v2559 = vshrl.u32 1326507024, %v2544
        %v2560 = vor.u32 %v2558, %v2559
        %vm2561 = vcmp.lt.s32.totalorder %v2542, 1
        %vm2562 = vcmp.lt.s32.totalorder %v2542, 2
        %vm2563 = vcmp.lt.s32.totalorder %v2542, 3
        %vm2564 = vcmp.lt.s32.totalorder %v2542, 4
        %v2565 = vsel %vm2561, %v2545, %v2548
        %v2566 = vsel %vm2564, %v2554, 2102212464
        %v2567 = vsel %vm2563, %v2551, %v2566
        %v2568 = vsel %vm2562, %v2565, %v2567
        %v2569 = vsel %vm2561, %v2548, %v2551
        %v2570 = vsel %vm2564, %v2557, 920167782
        %v2571 = vsel %vm2563, %v2554, %v2570
        %v2572 = vsel %vm2562, %v2569, %v2571
        %v2573 = vsel %vm2561, %v2551, %v2554
        %v2574 = vsel %vm2564, %v2560, 1326507024
        %v2575 = vsel %vm2563, %v2557, %v2574
        %v2576 = vsel %vm2562, %v2573, %v2575
        %v2577 = vshll.u32 %v2537, 8
        %v2578 = vmul.u32.u64.compose %v2577, %v2576
        %v2579 = vextract.low.u32 %v2578
        %v2580 = vextract.high.u32 %v2578
        %v2581 = vmul.u32.u64.compose %v2577, %v2572
        %v2582 = vextract.low.u32 %v2581
        %v2583 = vextract.high.u32 %v2581
        %v2584 = vmul.u32 %v2577, %v2568
        %v2585 = vadd.s32 %v2580, %v2582
        %vm2586 = vc.u32 %v2580, %v2582
        %v2587 = vadd.s32 %v2583, 1
        %v2588 = vsel %vm2586, %v2587, %v2583
        %v2589 = vadd.s32 %v2584, %v2588
        %v2590 = vadd.s32 %v2589, 536870912
        %v2591 = vshrl.u32 %v2590, 30
        %v2592 = vshll.u32 %v2591, 30
        %v2593 = vsub.s32 %v2589, %v2592
        %vm2594 = vcmp.lt.s32.totalorder %v2593, 0
        %v2595 = vsub.s32 0, %v2593
        %v2596 = vsel %vm2594, %v2595, %v2593
        %v2597 = vclz %v2596
        %v2598 = vsub.s32 %v2597, 2
        %vm2599 = vcmp.gt.s32.totalorder 0, %v2598
        %v2600 = vsel %vm2599, 0, %v2598
        %v2601 = vsub.s32 32, %v2600
        %v2602 = vshll.u32 %v2593, %v2600
        %v2603 = vshrl.u32 %v2585, %v2601
        %v2604 = vor.u32 %v2602, %v2603
        %v2605 = vsub.s32 4294967266, %v2600
        %v2606 = vadd.s32 %v2605, 127
        %v2607 = vshll.u32 %v2606, 23
        %v2608 = vor.u32 4788187, %v2607
        %v2609 = vand.u32 2147483647, %v2608
        %v2611 = vcvt.s32.f32 %v2604
        %v2612 = vmul.f32 %v2611, %v2609
        %v2613 = vxor.u32 %v2612, 2147483648
        %v2614 = vsel %vm2531, %v2613, %v2612
        %v2615 = vsub.s32 4, %v2591
        %v2616 = vsel %vm2531, %v2615, %v2591
        %v2617 = vsel %vm2530, %v310, %v2614
        %v2618 = vsel %vm2530, 0, %v2616
        %v2619 = vcosq.f32.pop %v2617
        %v2620 = vsinq.f32.pop %v2617
        %vm2621 = vweird.f32 %v310
        %v2622 = vadd.s32 %v2618, 3
        %v2623 = vand.u32 %v2622, 3
        %vm2624 = vcmp.lt.s32.totalorder %v2623, 2
        %vm2625 = vcmp.eq.s32.totalorder %v2623, 0
        %v2626 = vxor.u32 %v2620, 2147483648
        %v2627 = vsel %vm2625, %v2619, %v2626
        %vm2628 = vcmp.eq.s32.totalorder %v2623, 2
        %v2629 = vxor.u32 %v2619, 2147483648
        %v2630 = vsel %vm2628, %v2629, %v2620
        %v2631 = vsel %vm2624, %v2627, %v2630
        %v2632 = vsel %vm2621, nan, %v2631
        %v2633 = vand.u32 2147483647, %v311
        %vm2634 = vcmp.le.f32.partialorder %v2633, 0.7853982
        %vm2635 = vcmp.lt.s32.totalorder %v311, 0
        %v2636 = vand.u32 %v311, 2139095040
        %v2637 = vshrl.u32 %v2636, 23
        %v2638 = vsub.s32 %v2637, 127
        %v2639 = vand.u32 2147483647, %v311
        %v2640 = vand.u32 %v2639, 8388607
        %v2641 = vor.u32 %v2640, 8388608
        %v2642 = vsub.s32 0, %v2641
        %v2643 = vadd.s32 %v2638, 1
        %vm2644 = vcmp.gt.s32.totalorder %v2643, 0
        %v2645 = vsel %vm2644, %v2643, 0
        %v2646 = vshrl.u32 %v2645, 5
        %v2647 = vand.u32 %v2645, 31
        %v2648 = vsub.s32 32, %v2647
        %v2649 = vshrl.u32 683565275, %v2648
        %v2650 = vshll.u32 683565275, %v2647
        %v2651 = vshrl.u32 2475754826, %v2648
        %v2652 = vor.u32 %v2650, %v2651
        %v2653 = vshll.u32 2475754826, %v2647
        %v2654 = vshrl.u32 2131351028, %v2648
        %v2655 = vor.u32 %v2653, %v2654
        %v2656 = vshll.u32 2131351028, %v2647
        %v2657 = vshrl.u32 2102212464, %v2648
        %v2658 = vor.u32 %v2656, %v2657
        %v2659 = vshll.u32 2102212464, %v2647
        %v2660 = vshrl.u32 920167782, %v2648
        %v2661 = vor.u32 %v2659, %v2660
        %v2662 = vshll.u32 920167782, %v2647
        %v2663 = vshrl.u32 1326507024, %v2648
        %v2664 = vor.u32 %v2662, %v2663
        %vm2665 = vcmp.lt.s32.totalorder %v2646, 1
        %vm2666 = vcmp.lt.s32.totalorder %v2646, 2
        %vm2667 = vcmp.lt.s32.totalorder %v2646, 3
        %vm2668 = vcmp.lt.s32.totalorder %v2646, 4
        %v2669 = vsel %vm2665, %v2649, %v2652
        %v2670 = vsel %vm2668, %v2658, 2102212464
        %v2671 = vsel %vm2667, %v2655, %v2670
        %v2672 = vsel %vm2666, %v2669, %v2671
        %v2673 = vsel %vm2665, %v2652, %v2655
        %v2674 = vsel %vm2668, %v2661, 920167782
        %v2675 = vsel %vm2667, %v2658, %v2674
        %v2676 = vsel %vm2666, %v2673, %v2675
        %v2677 = vsel %vm2665, %v2655, %v2658
        %v2678 = vsel %vm2668, %v2664, 1326507024
        %v2679 = vsel %vm2667, %v2661, %v2678
        %v2680 = vsel %vm2666, %v2677, %v2679
        %v2681 = vshll.u32 %v2641, 8
        %v2682 = vmul.u32.u64.compose %v2681, %v2680
        %v2683 = vextract.low.u32 %v2682
        %v2684 = vextract.high.u32 %v2682
        %v2685 = vmul.u32.u64.compose %v2681, %v2676
        %v2686 = vextract.low.u32 %v2685
        %v2687 = vextract.high.u32 %v2685
        %v2688 = vmul.u32 %v2681, %v2672
        %v2689 = vadd.s32 %v2684, %v2686
        %vm2690 = vc.u32 %v2684, %v2686
        %v2691 = vadd.s32 %v2687, 1
        %v2692 = vsel %vm2690, %v2691, %v2687
        %v2693 = vadd.s32 %v2688, %v2692
        %v2694 = vadd.s32 %v2693, 536870912
        %v2695 = vshrl.u32 %v2694, 30
        %v2696 = vshll.u32 %v2695, 30
        %v2697 = vsub.s32 %v2693, %v2696
        %vm2698 = vcmp.lt.s32.totalorder %v2697, 0
        %v2699 = vsub.s32 0, %v2697
        %v2700 = vsel %vm2698, %v2699, %v2697
        %v2701 = vclz %v2700
        %v2702 = vsub.s32 %v2701, 2
        %vm2703 = vcmp.gt.s32.totalorder 0, %v2702
        %v2704 = vsel %vm2703, 0, %v2702
        %v2705 = vsub.s32 32, %v2704
        %v2706 = vshll.u32 %v2697, %v2704
        %v2707 = vshrl.u32 %v2689, %v2705
        %v2708 = vor.u32 %v2706, %v2707
        %v2709 = vsub.s32 4294967266, %v2704
        %v2710 = vadd.s32 %v2709, 127
        %v2711 = vshll.u32 %v2710, 23
        %v2712 = vor.u32 4788187, %v2711
        %v2713 = vand.u32 2147483647, %v2712
        %v2715 = vcvt.s32.f32 %v2708
        %v2716 = vmul.f32 %v2715, %v2713
        %v2717 = vxor.u32 %v2716, 2147483648
        %v2718 = vsel %vm2635, %v2717, %v2716
        %v2719 = vsub.s32 4, %v2695
        %v2720 = vsel %vm2635, %v2719, %v2695
        %v2721 = vsel %vm2634, %v311, %v2718
        %v2722 = vsel %vm2634, 0, %v2720
        %v2723 = vcosq.f32.pop %v2721
        %v2724 = vsinq.f32.pop %v2721
        %vm2725 = vweird.f32 %v311
        %v2726 = vadd.s32 %v2722, 3
        %v2727 = vand.u32 %v2726, 3
        %vm2728 = vcmp.lt.s32.totalorder %v2727, 2
        %vm2729 = vcmp.eq.s32.totalorder %v2727, 0
        %v2730 = vxor.u32 %v2724, 2147483648
        %v2731 = vsel %vm2729, %v2723, %v2730
        %vm2732 = vcmp.eq.s32.totalorder %v2727, 2
        %v2733 = vxor.u32 %v2723, 2147483648
        %v2734 = vsel %vm2732, %v2733, %v2724
        %v2735 = vsel %vm2728, %v2731, %v2734
        %v2736 = vsel %vm2725, nan, %v2735
        %v2737 = vand.u32 2147483647, %v312
        %vm2738 = vcmp.le.f32.partialorder %v2737, 0.7853982
        %vm2739 = vcmp.lt.s32.totalorder %v312, 0
        %v2740 = vand.u32 %v312, 2139095040
        %v2741 = vshrl.u32 %v2740, 23
        %v2742 = vsub.s32 %v2741, 127
        %v2743 = vand.u32 2147483647, %v312
        %v2744 = vand.u32 %v2743, 8388607
        %v2745 = vor.u32 %v2744, 8388608
        %v2746 = vsub.s32 0, %v2745
        %v2747 = vadd.s32 %v2742, 1
        %vm2748 = vcmp.gt.s32.totalorder %v2747, 0
        %v2749 = vsel %vm2748, %v2747, 0
        %v2750 = vshrl.u32 %v2749, 5
        %v2751 = vand.u32 %v2749, 31
        %v2752 = vsub.s32 32, %v2751
        %v2753 = vshrl.u32 683565275, %v2752
        %v2754 = vshll.u32 683565275, %v2751
        %v2755 = vshrl.u32 2475754826, %v2752
        %v2756 = vor.u32 %v2754, %v2755
        %v2757 = vshll.u32 2475754826, %v2751
        %v2758 = vshrl.u32 2131351028, %v2752
        %v2759 = vor.u32 %v2757, %v2758
        %v2760 = vshll.u32 2131351028, %v2751
        %v2761 = vshrl.u32 2102212464, %v2752
        %v2762 = vor.u32 %v2760, %v2761
        %v2763 = vshll.u32 2102212464, %v2751
        %v2764 = vshrl.u32 920167782, %v2752
        %v2765 = vor.u32 %v2763, %v2764
        %v2766 = vshll.u32 920167782, %v2751
        %v2767 = vshrl.u32 1326507024, %v2752
        %v2768 = vor.u32 %v2766, %v2767
        %vm2769 = vcmp.lt.s32.totalorder %v2750, 1
        %vm2770 = vcmp.lt.s32.totalorder %v2750, 2
        %vm2771 = vcmp.lt.s32.totalorder %v2750, 3
        %vm2772 = vcmp.lt.s32.totalorder %v2750, 4
        %v2773 = vsel %vm2769, %v2753, %v2756
        %v2774 = vsel %vm2772, %v2762, 2102212464
        %v2775 = vsel %vm2771, %v2759, %v2774
        %v2776 = vsel %vm2770, %v2773, %v2775
        %v2777 = vsel %vm2769, %v2756, %v2759
        %v2778 = vsel %vm2772, %v2765, 920167782
        %v2779 = vsel %vm2771, %v2762, %v2778
        %v2780 = vsel %vm2770, %v2777, %v2779
        %v2781 = vsel %vm2769, %v2759, %v2762
        %v2782 = vsel %vm2772, %v2768, 1326507024
        %v2783 = vsel %vm2771, %v2765, %v2782
        %v2784 = vsel %vm2770, %v2781, %v2783
        %v2785 = vshll.u32 %v2745, 8
        %v2786 = vmul.u32.u64.compose %v2785, %v2784
        %v2787 = vextract.low.u32 %v2786
        %v2788 = vextract.high.u32 %v2786
        %v2789 = vmul.u32.u64.compose %v2785, %v2780
        %v2790 = vextract.low.u32 %v2789
        %v2791 = vextract.high.u32 %v2789
        %v2792 = vmul.u32 %v2785, %v2776
        %v2793 = vadd.s32 %v2788, %v2790
        %vm2794 = vc.u32 %v2788, %v2790
        %v2795 = vadd.s32 %v2791, 1
        %v2796 = vsel %vm2794, %v2795, %v2791
        %v2797 = vadd.s32 %v2792, %v2796
        %v2798 = vadd.s32 %v2797, 536870912
        %v2799 = vshrl.u32 %v2798, 30
        %v2800 = vshll.u32 %v2799, 30
        %v2801 = vsub.s32 %v2797, %v2800
        %vm2802 = vcmp.lt.s32.totalorder %v2801, 0
        %v2803 = vsub.s32 0, %v2801
        %v2804 = vsel %vm2802, %v2803, %v2801
        %v2805 = vclz %v2804
        %v2806 = vsub.s32 %v2805, 2
        %vm2807 = vcmp.gt.s32.totalorder 0, %v2806
        %v2808 = vsel %vm2807, 0, %v2806
        %v2809 = vsub.s32 32, %v2808
        %v2810 = vshll.u32 %v2801, %v2808
        %v2811 = vshrl.u32 %v2793, %v2809
        %v2812 = vor.u32 %v2810, %v2811
        %v2813 = vsub.s32 4294967266, %v2808
        %v2814 = vadd.s32 %v2813, 127
        %v2815 = vshll.u32 %v2814, 23
        %v2816 = vor.u32 4788187, %v2815
        %v2817 = vand.u32 2147483647, %v2816
        %v2819 = vcvt.s32.f32 %v2812
        %v2820 = vmul.f32 %v2819, %v2817
        %v2821 = vxor.u32 %v2820, 2147483648
        %v2822 = vsel %vm2739, %v2821, %v2820
        %v2823 = vsub.s32 4, %v2799
        %v2824 = vsel %vm2739, %v2823, %v2799
        %v2825 = vsel %vm2738, %v312, %v2822
        %v2826 = vsel %vm2738, 0, %v2824
        %v2827 = vcosq.f32.pop %v2825
        %v2828 = vsinq.f32.pop %v2825
        %vm2829 = vweird.f32 %v312
        %v2830 = vadd.s32 %v2826, 3
        %v2831 = vand.u32 %v2830, 3
        %vm2832 = vcmp.lt.s32.totalorder %v2831, 2
        %vm2833 = vcmp.eq.s32.totalorder %v2831, 0
        %v2834 = vxor.u32 %v2828, 2147483648
        %v2835 = vsel %vm2833, %v2827, %v2834
        %vm2836 = vcmp.eq.s32.totalorder %v2831, 2
        %v2837 = vxor.u32 %v2827, 2147483648
        %v2838 = vsel %vm2836, %v2837, %v2828
        %v2839 = vsel %vm2832, %v2835, %v2838
        %v2840 = vsel %vm2829, nan, %v2839
        %v2841 = vand.u32 2147483647, %v313
        %vm2842 = vcmp.le.f32.partialorder %v2841, 0.7853982
        %vm2843 = vcmp.lt.s32.totalorder %v313, 0
        %v2844 = vand.u32 %v313, 2139095040
        %v2845 = vshrl.u32 %v2844, 23
        %v2846 = vsub.s32 %v2845, 127
        %v2847 = vand.u32 2147483647, %v313
        %v2848 = vand.u32 %v2847, 8388607
        %v2849 = vor.u32 %v2848, 8388608
        %v2850 = vsub.s32 0, %v2849
        %v2851 = vadd.s32 %v2846, 1
        %vm2852 = vcmp.gt.s32.totalorder %v2851, 0
        %v2853 = vsel %vm2852, %v2851, 0
        %v2854 = vshrl.u32 %v2853, 5
        %v2855 = vand.u32 %v2853, 31
        %v2856 = vsub.s32 32, %v2855
        %v2857 = vshrl.u32 683565275, %v2856
        %v2858 = vshll.u32 683565275, %v2855
        %v2859 = vshrl.u32 2475754826, %v2856
        %v2860 = vor.u32 %v2858, %v2859
        %v2861 = vshll.u32 2475754826, %v2855
        %v2862 = vshrl.u32 2131351028, %v2856
        %v2863 = vor.u32 %v2861, %v2862
        %v2864 = vshll.u32 2131351028, %v2855
        %v2865 = vshrl.u32 2102212464, %v2856
        %v2866 = vor.u32 %v2864, %v2865
        %v2867 = vshll.u32 2102212464, %v2855
        %v2868 = vshrl.u32 920167782, %v2856
        %v2869 = vor.u32 %v2867, %v2868
        %v2870 = vshll.u32 920167782, %v2855
        %v2871 = vshrl.u32 1326507024, %v2856
        %v2872 = vor.u32 %v2870, %v2871
        %vm2873 = vcmp.lt.s32.totalorder %v2854, 1
        %vm2874 = vcmp.lt.s32.totalorder %v2854, 2
        %vm2875 = vcmp.lt.s32.totalorder %v2854, 3
        %vm2876 = vcmp.lt.s32.totalorder %v2854, 4
        %v2877 = vsel %vm2873, %v2857, %v2860
        %v2878 = vsel %vm2876, %v2866, 2102212464
        %v2879 = vsel %vm2875, %v2863, %v2878
        %v2880 = vsel %vm2874, %v2877, %v2879
        %v2881 = vsel %vm2873, %v2860, %v2863
        %v2882 = vsel %vm2876, %v2869, 920167782
        %v2883 = vsel %vm2875, %v2866, %v2882
        %v2884 = vsel %vm2874, %v2881, %v2883
        %v2885 = vsel %vm2873, %v2863, %v2866
        %v2886 = vsel %vm2876, %v2872, 1326507024
        %v2887 = vsel %vm2875, %v2869, %v2886
        %v2888 = vsel %vm2874, %v2885, %v2887
        %v2889 = vshll.u32 %v2849, 8
        %v2890 = vmul.u32.u64.compose %v2889, %v2888
        %v2891 = vextract.low.u32 %v2890
        %v2892 = vextract.high.u32 %v2890
        %v2893 = vmul.u32.u64.compose %v2889, %v2884
        %v2894 = vextract.low.u32 %v2893
        %v2895 = vextract.high.u32 %v2893
        %v2896 = vmul.u32 %v2889, %v2880
        %v2897 = vadd.s32 %v2892, %v2894
        %vm2898 = vc.u32 %v2892, %v2894
        %v2899 = vadd.s32 %v2895, 1
        %v2900 = vsel %vm2898, %v2899, %v2895
        %v2901 = vadd.s32 %v2896, %v2900
        %v2902 = vadd.s32 %v2901, 536870912
        %v2903 = vshrl.u32 %v2902, 30
        %v2904 = vshll.u32 %v2903, 30
        %v2905 = vsub.s32 %v2901, %v2904
        %vm2906 = vcmp.lt.s32.totalorder %v2905, 0
        %v2907 = vsub.s32 0, %v2905
        %v2908 = vsel %vm2906, %v2907, %v2905
        %v2909 = vclz %v2908
        %v2910 = vsub.s32 %v2909, 2
        %vm2911 = vcmp.gt.s32.totalorder 0, %v2910
        %v2912 = vsel %vm2911, 0, %v2910
        %v2913 = vsub.s32 32, %v2912
        %v2914 = vshll.u32 %v2905, %v2912
        %v2915 = vshrl.u32 %v2897, %v2913
        %v2916 = vor.u32 %v2914, %v2915
        %v2917 = vsub.s32 4294967266, %v2912
        %v2918 = vadd.s32 %v2917, 127
        %v2919 = vshll.u32 %v2918, 23
        %v2920 = vor.u32 4788187, %v2919
        %v2921 = vand.u32 2147483647, %v2920
        %v2923 = vcvt.s32.f32 %v2916
        %v2924 = vmul.f32 %v2923, %v2921
        %v2925 = vxor.u32 %v2924, 2147483648
        %v2926 = vsel %vm2843, %v2925, %v2924
        %v2927 = vsub.s32 4, %v2903
        %v2928 = vsel %vm2843, %v2927, %v2903
        %v2929 = vsel %vm2842, %v313, %v2926
        %v2930 = vsel %vm2842, 0, %v2928
        %v2931 = vcosq.f32.pop %v2929
        %v2932 = vsinq.f32.pop %v2929
        %vm2933 = vweird.f32 %v313
        %v2934 = vadd.s32 %v2930, 3
        %v2935 = vand.u32 %v2934, 3
        %vm2936 = vcmp.lt.s32.totalorder %v2935, 2
        %vm2937 = vcmp.eq.s32.totalorder %v2935, 0
        %v2938 = vxor.u32 %v2932, 2147483648
        %v2939 = vsel %vm2937, %v2931, %v2938
        %vm2940 = vcmp.eq.s32.totalorder %v2935, 2
        %v2941 = vxor.u32 %v2931, 2147483648
        %v2942 = vsel %vm2940, %v2941, %v2932
        %v2943 = vsel %vm2936, %v2939, %v2942
        %v2944 = vsel %vm2933, nan, %v2943
        %v2945 = vand.u32 2147483647, %v314
        %vm2946 = vcmp.le.f32.partialorder %v2945, 0.7853982
        %vm2947 = vcmp.lt.s32.totalorder %v314, 0
        %v2948 = vand.u32 %v314, 2139095040
        %v2949 = vshrl.u32 %v2948, 23
        %v2950 = vsub.s32 %v2949, 127
        %v2951 = vand.u32 2147483647, %v314
        %v2952 = vand.u32 %v2951, 8388607
        %v2953 = vor.u32 %v2952, 8388608
        %v2954 = vsub.s32 0, %v2953
        %v2955 = vadd.s32 %v2950, 1
        %vm2956 = vcmp.gt.s32.totalorder %v2955, 0
        %v2957 = vsel %vm2956, %v2955, 0
        %v2958 = vshrl.u32 %v2957, 5
        %v2959 = vand.u32 %v2957, 31
        %v2960 = vsub.s32 32, %v2959
        %v2961 = vshrl.u32 683565275, %v2960
        %v2962 = vshll.u32 683565275, %v2959
        %v2963 = vshrl.u32 2475754826, %v2960
        %v2964 = vor.u32 %v2962, %v2963
        %v2965 = vshll.u32 2475754826, %v2959
        %v2966 = vshrl.u32 2131351028, %v2960
        %v2967 = vor.u32 %v2965, %v2966
        %v2968 = vshll.u32 2131351028, %v2959
        %v2969 = vshrl.u32 2102212464, %v2960
        %v2970 = vor.u32 %v2968, %v2969
        %v2971 = vshll.u32 2102212464, %v2959
        %v2972 = vshrl.u32 920167782, %v2960
        %v2973 = vor.u32 %v2971, %v2972
        %v2974 = vshll.u32 920167782, %v2959
        %v2975 = vshrl.u32 1326507024, %v2960
        %v2976 = vor.u32 %v2974, %v2975
        %vm2977 = vcmp.lt.s32.totalorder %v2958, 1
        %vm2978 = vcmp.lt.s32.totalorder %v2958, 2
        %vm2979 = vcmp.lt.s32.totalorder %v2958, 3
        %vm2980 = vcmp.lt.s32.totalorder %v2958, 4
        %v2981 = vsel %vm2977, %v2961, %v2964
        %v2982 = vsel %vm2980, %v2970, 2102212464
        %v2983 = vsel %vm2979, %v2967, %v2982
        %v2984 = vsel %vm2978, %v2981, %v2983
        %v2985 = vsel %vm2977, %v2964, %v2967
        %v2986 = vsel %vm2980, %v2973, 920167782
        %v2987 = vsel %vm2979, %v2970, %v2986
        %v2988 = vsel %vm2978, %v2985, %v2987
        %v2989 = vsel %vm2977, %v2967, %v2970
        %v2990 = vsel %vm2980, %v2976, 1326507024
        %v2991 = vsel %vm2979, %v2973, %v2990
        %v2992 = vsel %vm2978, %v2989, %v2991
        %v2993 = vshll.u32 %v2953, 8
        %v2994 = vmul.u32.u64.compose %v2993, %v2992
        %v2995 = vextract.low.u32 %v2994
        %v2996 = vextract.high.u32 %v2994
        %v2997 = vmul.u32.u64.compose %v2993, %v2988
        %v2998 = vextract.low.u32 %v2997
        %v2999 = vextract.high.u32 %v2997
        %v3000 = vmul.u32 %v2993, %v2984
        %v3001 = vadd.s32 %v2996, %v2998
        %vm3002 = vc.u32 %v2996, %v2998
        %v3003 = vadd.s32 %v2999, 1
        %v3004 = vsel %vm3002, %v3003, %v2999
        %v3005 = vadd.s32 %v3000, %v3004
        %v3006 = vadd.s32 %v3005, 536870912
        %v3007 = vshrl.u32 %v3006, 30
        %v3008 = vshll.u32 %v3007, 30
        %v3009 = vsub.s32 %v3005, %v3008
        %vm3010 = vcmp.lt.s32.totalorder %v3009, 0
        %v3011 = vsub.s32 0, %v3009
        %v3012 = vsel %vm3010, %v3011, %v3009
        %v3013 = vclz %v3012
        %v3014 = vsub.s32 %v3013, 2
        %vm3015 = vcmp.gt.s32.totalorder 0, %v3014
        %v3016 = vsel %vm3015, 0, %v3014
        %v3017 = vsub.s32 32, %v3016
        %v3018 = vshll.u32 %v3009, %v3016
        %v3019 = vshrl.u32 %v3001, %v3017
        %v3020 = vor.u32 %v3018, %v3019
        %v3021 = vsub.s32 4294967266, %v3016
        %v3022 = vadd.s32 %v3021, 127
        %v3023 = vshll.u32 %v3022, 23
        %v3024 = vor.u32 4788187, %v3023
        %v3025 = vand.u32 2147483647, %v3024
        %v3027 = vcvt.s32.f32 %v3020
        %v3028 = vmul.f32 %v3027, %v3025
        %v3029 = vxor.u32 %v3028, 2147483648
        %v3030 = vsel %vm2947, %v3029, %v3028
        %v3031 = vsub.s32 4, %v3007
        %v3032 = vsel %vm2947, %v3031, %v3007
        %v3033 = vsel %vm2946, %v314, %v3030
        %v3034 = vsel %vm2946, 0, %v3032
        %v3035 = vcosq.f32.pop %v3033
        %v3036 = vsinq.f32.pop %v3033
        %vm3037 = vweird.f32 %v314
        %v3038 = vadd.s32 %v3034, 3
        %v3039 = vand.u32 %v3038, 3
        %vm3040 = vcmp.lt.s32.totalorder %v3039, 2
        %vm3041 = vcmp.eq.s32.totalorder %v3039, 0
        %v3042 = vxor.u32 %v3036, 2147483648
        %v3043 = vsel %vm3041, %v3035, %v3042
        %vm3044 = vcmp.eq.s32.totalorder %v3039, 2
        %v3045 = vxor.u32 %v3035, 2147483648
        %v3046 = vsel %vm3044, %v3045, %v3036
        %v3047 = vsel %vm3040, %v3043, %v3046
        %v3048 = vsel %vm3037, nan, %v3047
        %v3049 = vand.u32 2147483647, %v315
        %vm3050 = vcmp.le.f32.partialorder %v3049, 0.7853982
        %vm3051 = vcmp.lt.s32.totalorder %v315, 0
        %v3052 = vand.u32 %v315, 2139095040
        %v3053 = vshrl.u32 %v3052, 23
        %v3054 = vsub.s32 %v3053, 127
        %v3055 = vand.u32 2147483647, %v315
        %v3056 = vand.u32 %v3055, 8388607
        %v3057 = vor.u32 %v3056, 8388608
        %v3058 = vsub.s32 0, %v3057
        %v3059 = vadd.s32 %v3054, 1
        %vm3060 = vcmp.gt.s32.totalorder %v3059, 0
        %v3061 = vsel %vm3060, %v3059, 0
        %v3062 = vshrl.u32 %v3061, 5
        %v3063 = vand.u32 %v3061, 31
        %v3064 = vsub.s32 32, %v3063
        %v3065 = vshrl.u32 683565275, %v3064
        %v3066 = vshll.u32 683565275, %v3063
        %v3067 = vshrl.u32 2475754826, %v3064
        %v3068 = vor.u32 %v3066, %v3067
        %v3069 = vshll.u32 2475754826, %v3063
        %v3070 = vshrl.u32 2131351028, %v3064
        %v3071 = vor.u32 %v3069, %v3070
        %v3072 = vshll.u32 2131351028, %v3063
        %v3073 = vshrl.u32 2102212464, %v3064
        %v3074 = vor.u32 %v3072, %v3073
        %v3075 = vshll.u32 2102212464, %v3063
        %v3076 = vshrl.u32 920167782, %v3064
        %v3077 = vor.u32 %v3075, %v3076
        %v3078 = vshll.u32 920167782, %v3063
        %v3079 = vshrl.u32 1326507024, %v3064
        %v3080 = vor.u32 %v3078, %v3079
        %vm3081 = vcmp.lt.s32.totalorder %v3062, 1
        %vm3082 = vcmp.lt.s32.totalorder %v3062, 2
        %vm3083 = vcmp.lt.s32.totalorder %v3062, 3
        %vm3084 = vcmp.lt.s32.totalorder %v3062, 4
        %v3085 = vsel %vm3081, %v3065, %v3068
        %v3086 = vsel %vm3084, %v3074, 2102212464
        %v3087 = vsel %vm3083, %v3071, %v3086
        %v3088 = vsel %vm3082, %v3085, %v3087
        %v3089 = vsel %vm3081, %v3068, %v3071
        %v3090 = vsel %vm3084, %v3077, 920167782
        %v3091 = vsel %vm3083, %v3074, %v3090
        %v3092 = vsel %vm3082, %v3089, %v3091
        %v3093 = vsel %vm3081, %v3071, %v3074
        %v3094 = vsel %vm3084, %v3080, 1326507024
        %v3095 = vsel %vm3083, %v3077, %v3094
        %v3096 = vsel %vm3082, %v3093, %v3095
        %v3097 = vshll.u32 %v3057, 8
        %v3098 = vmul.u32.u64.compose %v3097, %v3096
        %v3099 = vextract.low.u32 %v3098
        %v3100 = vextract.high.u32 %v3098
        %v3101 = vmul.u32.u64.compose %v3097, %v3092
        %v3102 = vextract.low.u32 %v3101
        %v3103 = vextract.high.u32 %v3101
        %v3104 = vmul.u32 %v3097, %v3088
        %v3105 = vadd.s32 %v3100, %v3102
        %vm3106 = vc.u32 %v3100, %v3102
        %v3107 = vadd.s32 %v3103, 1
        %v3108 = vsel %vm3106, %v3107, %v3103
        %v3109 = vadd.s32 %v3104, %v3108
        %v3110 = vadd.s32 %v3109, 536870912
        %v3111 = vshrl.u32 %v3110, 30
        %v3112 = vshll.u32 %v3111, 30
        %v3113 = vsub.s32 %v3109, %v3112
        %vm3114 = vcmp.lt.s32.totalorder %v3113, 0
        %v3115 = vsub.s32 0, %v3113
        %v3116 = vsel %vm3114, %v3115, %v3113
        %v3117 = vclz %v3116
        %v3118 = vsub.s32 %v3117, 2
        %vm3119 = vcmp.gt.s32.totalorder 0, %v3118
        %v3120 = vsel %vm3119, 0, %v3118
        %v3121 = vsub.s32 32, %v3120
        %v3122 = vshll.u32 %v3113, %v3120
        %v3123 = vshrl.u32 %v3105, %v3121
        %v3124 = vor.u32 %v3122, %v3123
        %v3125 = vsub.s32 4294967266, %v3120
        %v3126 = vadd.s32 %v3125, 127
        %v3127 = vshll.u32 %v3126, 23
        %v3128 = vor.u32 4788187, %v3127
        %v3129 = vand.u32 2147483647, %v3128
        %v3131 = vcvt.s32.f32 %v3124
        %v3132 = vmul.f32 %v3131, %v3129
        %v3133 = vxor.u32 %v3132, 2147483648
        %v3134 = vsel %vm3051, %v3133, %v3132
        %v3135 = vsub.s32 4, %v3111
        %v3136 = vsel %vm3051, %v3135, %v3111
        %v3137 = vsel %vm3050, %v315, %v3134
        %v3138 = vsel %vm3050, 0, %v3136
        %v3139 = vcosq.f32.pop %v3137
        %v3140 = vsinq.f32.pop %v3137
        %vm3141 = vweird.f32 %v315
        %v3142 = vadd.s32 %v3138, 3
        %v3143 = vand.u32 %v3142, 3
        %vm3144 = vcmp.lt.s32.totalorder %v3143, 2
        %vm3145 = vcmp.eq.s32.totalorder %v3143, 0
        %v3146 = vxor.u32 %v3140, 2147483648
        %v3147 = vsel %vm3145, %v3139, %v3146
        %vm3148 = vcmp.eq.s32.totalorder %v3143, 2
        %v3149 = vxor.u32 %v3139, 2147483648
        %v3150 = vsel %vm3148, %v3149, %v3140
        %v3151 = vsel %vm3144, %v3147, %v3150
        %v3152 = vsel %vm3141, nan, %v3151
        %v3153 = vand.u32 2147483647, %v316
        %vm3154 = vcmp.le.f32.partialorder %v3153, 0.7853982
        %vm3155 = vcmp.lt.s32.totalorder %v316, 0
        %v3156 = vand.u32 %v316, 2139095040
        %v3157 = vshrl.u32 %v3156, 23
        %v3158 = vsub.s32 %v3157, 127
        %v3159 = vand.u32 2147483647, %v316
        %v3160 = vand.u32 %v3159, 8388607
        %v3161 = vor.u32 %v3160, 8388608
        %v3162 = vsub.s32 0, %v3161
        %v3163 = vadd.s32 %v3158, 1
        %vm3164 = vcmp.gt.s32.totalorder %v3163, 0
        %v3165 = vsel %vm3164, %v3163, 0
        %v3166 = vshrl.u32 %v3165, 5
        %v3167 = vand.u32 %v3165, 31
        %v3168 = vsub.s32 32, %v3167
        %v3169 = vshrl.u32 683565275, %v3168
        %v3170 = vshll.u32 683565275, %v3167
        %v3171 = vshrl.u32 2475754826, %v3168
        %v3172 = vor.u32 %v3170, %v3171
        %v3173 = vshll.u32 2475754826, %v3167
        %v3174 = vshrl.u32 2131351028, %v3168
        %v3175 = vor.u32 %v3173, %v3174
        %v3176 = vshll.u32 2131351028, %v3167
        %v3177 = vshrl.u32 2102212464, %v3168
        %v3178 = vor.u32 %v3176, %v3177
        %v3179 = vshll.u32 2102212464, %v3167
        %v3180 = vshrl.u32 920167782, %v3168
        %v3181 = vor.u32 %v3179, %v3180
        %v3182 = vshll.u32 920167782, %v3167
        %v3183 = vshrl.u32 1326507024, %v3168
        %v3184 = vor.u32 %v3182, %v3183
        %vm3185 = vcmp.lt.s32.totalorder %v3166, 1
        %vm3186 = vcmp.lt.s32.totalorder %v3166, 2
        %vm3187 = vcmp.lt.s32.totalorder %v3166, 3
        %vm3188 = vcmp.lt.s32.totalorder %v3166, 4
        %v3189 = vsel %vm3185, %v3169, %v3172
        %v3190 = vsel %vm3188, %v3178, 2102212464
        %v3191 = vsel %vm3187, %v3175, %v3190
        %v3192 = vsel %vm3186, %v3189, %v3191
        %v3193 = vsel %vm3185, %v3172, %v3175
        %v3194 = vsel %vm3188, %v3181, 920167782
        %v3195 = vsel %vm3187, %v3178, %v3194
        %v3196 = vsel %vm3186, %v3193, %v3195
        %v3197 = vsel %vm3185, %v3175, %v3178
        %v3198 = vsel %vm3188, %v3184, 1326507024
        %v3199 = vsel %vm3187, %v3181, %v3198
        %v3200 = vsel %vm3186, %v3197, %v3199
        %v3201 = vshll.u32 %v3161, 8
        %v3202 = vmul.u32.u64.compose %v3201, %v3200
        %v3203 = vextract.low.u32 %v3202
        %v3204 = vextract.high.u32 %v3202
        %v3205 = vmul.u32.u64.compose %v3201, %v3196
        %v3206 = vextract.low.u32 %v3205
        %v3207 = vextract.high.u32 %v3205
        %v3208 = vmul.u32 %v3201, %v3192
        %v3209 = vadd.s32 %v3204, %v3206
        %vm3210 = vc.u32 %v3204, %v3206
        %v3211 = vadd.s32 %v3207, 1
        %v3212 = vsel %vm3210, %v3211, %v3207
        %v3213 = vadd.s32 %v3208, %v3212
        %v3214 = vadd.s32 %v3213, 536870912
        %v3215 = vshrl.u32 %v3214, 30
        %v3216 = vshll.u32 %v3215, 30
        %v3217 = vsub.s32 %v3213, %v3216
        %vm3218 = vcmp.lt.s32.totalorder %v3217, 0
        %v3219 = vsub.s32 0, %v3217
        %v3220 = vsel %vm3218, %v3219, %v3217
        %v3221 = vclz %v3220
        %v3222 = vsub.s32 %v3221, 2
        %vm3223 = vcmp.gt.s32.totalorder 0, %v3222
        %v3224 = vsel %vm3223, 0, %v3222
        %v3225 = vsub.s32 32, %v3224
        %v3226 = vshll.u32 %v3217, %v3224
        %v3227 = vshrl.u32 %v3209, %v3225
        %v3228 = vor.u32 %v3226, %v3227
        %v3229 = vsub.s32 4294967266, %v3224
        %v3230 = vadd.s32 %v3229, 127
        %v3231 = vshll.u32 %v3230, 23
        %v3232 = vor.u32 4788187, %v3231
        %v3233 = vand.u32 2147483647, %v3232
        %v3235 = vcvt.s32.f32 %v3228
        %v3236 = vmul.f32 %v3235, %v3233
        %v3237 = vxor.u32 %v3236, 2147483648
        %v3238 = vsel %vm3155, %v3237, %v3236
        %v3239 = vsub.s32 4, %v3215
        %v3240 = vsel %vm3155, %v3239, %v3215
        %v3241 = vsel %vm3154, %v316, %v3238
        %v3242 = vsel %vm3154, 0, %v3240
        %v3243 = vcosq.f32.pop %v3241
        %v3244 = vsinq.f32.pop %v3241
        %vm3245 = vweird.f32 %v316
        %v3246 = vadd.s32 %v3242, 3
        %v3247 = vand.u32 %v3246, 3
        %vm3248 = vcmp.lt.s32.totalorder %v3247, 2
        %vm3249 = vcmp.eq.s32.totalorder %v3247, 0
        %v3250 = vxor.u32 %v3244, 2147483648
        %v3251 = vsel %vm3249, %v3243, %v3250
        %vm3252 = vcmp.eq.s32.totalorder %v3247, 2
        %v3253 = vxor.u32 %v3243, 2147483648
        %v3254 = vsel %vm3252, %v3253, %v3244
        %v3255 = vsel %vm3248, %v3251, %v3254
        %v3256 = vsel %vm3245, nan, %v3255
        %3264 = vrot.lane.b32.xlu0 %v2632, 1
        %v3265 = vpop.permute.xlu0 %3264
        %3266 = vrot.lane.b32.xlu0 %v2736, 1
        %v3267 = vpop.permute.xlu0 %3266
        %3268 = vrot.lane.b32.xlu0 %v2840, 1
        %v3269 = vpop.permute.xlu0 %3268
        %3270 = vrot.lane.b32.xlu0 %v2944, 1
        %v3271 = vpop.permute.xlu0 %3270
        %3272 = vrot.lane.b32.xlu0 %v3048, 1
        %v3273 = vpop.permute.xlu0 %3272
        %3274 = vrot.lane.b32.xlu0 %v3152, 1
        %v3275 = vpop.permute.xlu0 %3274
        %3276 = vrot.lane.b32.xlu0 %v3256, 1
        %v3277 = vpop.permute.xlu0 %3276
        %v3285 = vmul.f32 %v427, %v3265
        %v3286 = vmul.f32 %v531, %v3267
        %v3287 = vmul.f32 %v635, %v3269
        %v3288 = vmul.f32 %v739, %v3271
        %v3289 = vmul.f32 %v843, %v3273
        %v3290 = vmul.f32 %v947, %v3275
        %v3291 = vmul.f32 %v1051, %v3277
        %v3292 = vmul.f32 %v3285, 0.48860252
        %v3293 = vmul.f32 %v3286, 0.48860252
        %v3294 = vmul.f32 %v3287, 0.48860252
        %v3295 = vmul.f32 %v3288, 0.48860252
        %v3296 = vmul.f32 %v3289, 0.48860252
        %v3297 = vmul.f32 %v3290, 0.48860252
        %v3298 = vmul.f32 %v3291, 0.48860252
        %v3299 = vmul.f32 %v1154, 0.48860252
        %v3300 = vmul.f32 %v1257, 0.48860252
        %v3301 = vmul.f32 %v1360, 0.48860252
        %v3302 = vmul.f32 %v1463, 0.48860252
        %v3303 = vmul.f32 %v1566, 0.48860252
        %v3304 = vmul.f32 %v1669, 0.48860252
        %v3305 = vmul.f32 %v1772, 0.48860252
        %v3306 = vmul.f32 %v2522, 0.48860252
        %v3307 = vmul.f32 %v2523, 0.48860252
        %v3308 = vmul.f32 %v2524, 0.48860252
        %v3309 = vmul.f32 %v2525, 0.48860252
        %v3310 = vmul.f32 %v2526, 0.48860252
        %v3311 = vmul.f32 %v2527, 0.48860252
        %v3312 = vmul.f32 %v2528, 0.48860252
        %v3313 = vmul.f32 %v2522, 1.0925485
        %v3314 = vmul.f32 %v2523, 1.0925485
        %v3315 = vmul.f32 %v2524, 1.0925485
        %v3316 = vmul.f32 %v2525, 1.0925485
        %v3317 = vmul.f32 %v2526, 1.0925485
        %v3318 = vmul.f32 %v2527, 1.0925485
        %v3319 = vmul.f32 %v2528, 1.0925485
        %v3320 = vmul.f32 %v3313, %v3285
        %v3321 = vmul.f32 %v3314, %v3286
        %v3322 = vmul.f32 %v3315, %v3287
        %v3323 = vmul.f32 %v3316, %v3288
        %v3324 = vmul.f32 %v3317, %v3289
        %v3325 = vmul.f32 %v3318, %v3290
        %v3326 = vmul.f32 %v3319, %v3291
        %v3327 = vmul.f32 %v3285, 1.0925485
        %v3328 = vmul.f32 %v3286, 1.0925485
        %v3329 = vmul.f32 %v3287, 1.0925485
        %v3330 = vmul.f32 %v3288, 1.0925485
        %v3331 = vmul.f32 %v3289, 1.0925485
        %v3332 = vmul.f32 %v3290, 1.0925485
        %v3333 = vmul.f32 %v3291, 1.0925485
        %v3334 = vmul.f32 %v3327, %v1154
        %v3335 = vmul.f32 %v3328, %v1257
        %v3336 = vmul.f32 %v3329, %v1360
        %v3337 = vmul.f32 %v3330, %v1463
        %v3338 = vmul.f32 %v3331, %v1566
        %v3339 = vmul.f32 %v3332, %v1669
        %v3340 = vmul.f32 %v3333, %v1772
        %v3341 = vmul.f32 %v1154, 3.0
        %v3342 = vmul.f32 %v1257, 3.0
        %v3343 = vmul.f32 %v1360, 3.0
        %v3344 = vmul.f32 %v1463, 3.0
        %v3345 = vmul.f32 %v1566, 3.0
        %v3346 = vmul.f32 %v1669, 3.0
        %v3347 = vmul.f32 %v1772, 3.0
        %v3348 = vmul.f32 %v3341, %v1154
        %v3349 = vmul.f32 %v3342, %v1257
        %v3350 = vmul.f32 %v3343, %v1360
        %v3351 = vmul.f32 %v3344, %v1463
        %v3352 = vmul.f32 %v3345, %v1566
        %v3353 = vmul.f32 %v3346, %v1669
        %v3354 = vmul.f32 %v3347, %v1772
        %v3355 = vsub.f32 %v3348, 1.0
        %v3356 = vsub.f32 %v3349, 1.0
        %v3357 = vsub.f32 %v3350, 1.0
        %v3358 = vsub.f32 %v3351, 1.0
        %v3359 = vsub.f32 %v3352, 1.0
        %v3360 = vsub.f32 %v3353, 1.0
        %v3361 = vsub.f32 %v3354, 1.0
        %v3362 = vmul.f32 %v3355, 0.31539157
        %v3363 = vmul.f32 %v3356, 0.31539157
        %v3364 = vmul.f32 %v3357, 0.31539157
        %v3365 = vmul.f32 %v3358, 0.31539157
        %v3366 = vmul.f32 %v3359, 0.31539157
        %v3367 = vmul.f32 %v3360, 0.31539157
        %v3368 = vmul.f32 %v3361, 0.31539157
        %v3369 = vmul.f32 %v3313, %v1154
        %v3370 = vmul.f32 %v3314, %v1257
        %v3371 = vmul.f32 %v3315, %v1360
        %v3372 = vmul.f32 %v3316, %v1463
        %v3373 = vmul.f32 %v3317, %v1566
        %v3374 = vmul.f32 %v3318, %v1669
        %v3375 = vmul.f32 %v3319, %v1772
        %v3376 = vmul.f32 %v2522, %v2522
        %v3377 = vmul.f32 %v2523, %v2523
        %v3378 = vmul.f32 %v2524, %v2524
        %v3379 = vmul.f32 %v2525, %v2525
        %v3380 = vmul.f32 %v2526, %v2526
        %v3381 = vmul.f32 %v2527, %v2527
        %v3382 = vmul.f32 %v2528, %v2528
        %v3383 = vmul.f32 %v3285, %v3285
        %v3384 = vmul.f32 %v3286, %v3286
        %v3385 = vmul.f32 %v3287, %v3287
        %v3386 = vmul.f32 %v3288, %v3288
        %v3387 = vmul.f32 %v3289, %v3289
        %v3388 = vmul.f32 %v3290, %v3290
        %v3389 = vmul.f32 %v3291, %v3291
        %v3390 = vsub.f32 %v3376, %v3383
        %v3391 = vsub.f32 %v3377, %v3384
        %v3392 = vsub.f32 %v3378, %v3385
        %v3393 = vsub.f32 %v3379, %v3386
        %v3394 = vsub.f32 %v3380, %v3387
        %v3395 = vsub.f32 %v3381, %v3388
        %v3396 = vsub.f32 %v3382, %v3389
        %v3397 = vmul.f32 %v3390, 0.54627424
        %v3398 = vmul.f32 %v3391, 0.54627424
        %v3399 = vmul.f32 %v3392, 0.54627424
        %v3400 = vmul.f32 %v3393, 0.54627424
        %v3401 = vmul.f32 %v3394, 0.54627424
        %v3402 = vmul.f32 %v3395, 0.54627424
        %v3403 = vmul.f32 %v3396, 0.54627424
        %v3404 = vlaneseq
        %v3405 = vand.u32 %v3404, 127
        %vm3406 = vcmp.eq.s32.totalorder %v3405, 0
        %v3407 = vsel %vm3406, 0.2820948, 0.0
        %vm3408 = vcmp.eq.s32.totalorder %v3405, 1
        %3410 = vset.pattern.permute.xlu0 1
        %3411 = vperm.xlu0 %3410, %v3292
        %v3412 = vpop.permute.xlu0 %3411
        %3415 = vset.pattern.permute.xlu0 1
        %3416 = vperm.xlu0 %3415, %v3293
        %v3417 = vpop.permute.xlu0 %3416
        %3420 = vset.pattern.permute.xlu0 1
        %3421 = vperm.xlu0 %3420, %v3294
        %v3422 = vpop.permute.xlu0 %3421
        %3425 = vset.pattern.permute.xlu0 1
        %3426 = vperm.xlu0 %3425, %v3295
        %v3427 = vpop.permute.xlu0 %3426
        %3430 = vset.pattern.permute.xlu0 1
        %3431 = vperm.xlu0 %3430, %v3296
        %v3432 = vpop.permute.xlu0 %3431
        %3435 = vset.pattern.permute.xlu0 1
        %3436 = vperm.xlu0 %3435, %v3297
        %v3437 = vpop.permute.xlu0 %3436
        %3440 = vset.pattern.permute.xlu0 1
        %3441 = vperm.xlu0 %3440, %v3298
        %v3442 = vpop.permute.xlu0 %3441
        %v3444 = vsel %vm3408, %v3412, %v3407
        %v3445 = vsel %vm3408, %v3417, %v3407
        %v3446 = vsel %vm3408, %v3422, %v3407
        %v3447 = vsel %vm3408, %v3427, %v3407
        %v3448 = vsel %vm3408, %v3432, %v3407
        %v3449 = vsel %vm3408, %v3437, %v3407
        %v3450 = vsel %vm3408, %v3442, %v3407
        %vm3451 = vcmp.eq.s32.totalorder %v3405, 2
        %3453 = vset.pattern.permute.xlu0 1
        %3454 = vperm.xlu0 %3453, %v3299
        %v3455 = vpop.permute.xlu0 %3454
        %3458 = vset.pattern.permute.xlu0 1
        %3459 = vperm.xlu0 %3458, %v3300
        %v3460 = vpop.permute.xlu0 %3459
        %3463 = vset.pattern.permute.xlu0 1
        %3464 = vperm.xlu0 %3463, %v3301
        %v3465 = vpop.permute.xlu0 %3464
        %3468 = vset.pattern.permute.xlu0 1
        %3469 = vperm.xlu0 %3468, %v3302
        %v3470 = vpop.permute.xlu0 %3469
        %3473 = vset.pattern.permute.xlu0 1
        %3474 = vperm.xlu0 %3473, %v3303
        %v3475 = vpop.permute.xlu0 %3474
        %3478 = vset.pattern.permute.xlu0 1
        %3479 = vperm.xlu0 %3478, %v3304
        %v3480 = vpop.permute.xlu0 %3479
        %3483 = vset.pattern.permute.xlu0 1
        %3484 = vperm.xlu0 %3483, %v3305
        %v3485 = vpop.permute.xlu0 %3484
        %v3487 = vsel %vm3451, %v3455, %v3444
        %v3488 = vsel %vm3451, %v3460, %v3445
        %v3489 = vsel %vm3451, %v3465, %v3446
        %v3490 = vsel %vm3451, %v3470, %v3447
        %v3491 = vsel %vm3451, %v3475, %v3448
        %v3492 = vsel %vm3451, %v3480, %v3449
        %v3493 = vsel %vm3451, %v3485, %v3450
        %vm3494 = vcmp.eq.s32.totalorder %v3405, 3
        %3496 = vset.pattern.permute.xlu0 1
        %3497 = vperm.xlu0 %3496, %v3306
        %v3498 = vpop.permute.xlu0 %3497
        %3501 = vset.pattern.permute.xlu0 1
        %3502 = vperm.xlu0 %3501, %v3307
        %v3503 = vpop.permute.xlu0 %3502
        %3506 = vset.pattern.permute.xlu0 1
        %3507 = vperm.xlu0 %3506, %v3308
        %v3508 = vpop.permute.xlu0 %3507
        %3511 = vset.pattern.permute.xlu0 1
        %3512 = vperm.xlu0 %3511, %v3309
        %v3513 = vpop.permute.xlu0 %3512
        %3516 = vset.pattern.permute.xlu0 1
        %3517 = vperm.xlu0 %3516, %v3310
        %v3518 = vpop.permute.xlu0 %3517
        %3521 = vset.pattern.permute.xlu0 1
        %3522 = vperm.xlu0 %3521, %v3311
        %v3523 = vpop.permute.xlu0 %3522
        %3526 = vset.pattern.permute.xlu0 1
        %3527 = vperm.xlu0 %3526, %v3312
        %v3528 = vpop.permute.xlu0 %3527
        %v3530 = vsel %vm3494, %v3498, %v3487
        %v3531 = vsel %vm3494, %v3503, %v3488
        %v3532 = vsel %vm3494, %v3508, %v3489
        %v3533 = vsel %vm3494, %v3513, %v3490
        %v3534 = vsel %vm3494, %v3518, %v3491
        %v3535 = vsel %vm3494, %v3523, %v3492
        %v3536 = vsel %vm3494, %v3528, %v3493
        %vm3537 = vcmp.eq.s32.totalorder %v3405, 4
        %3539 = vset.pattern.permute.xlu0 1
        %3540 = vperm.xlu0 %3539, %v3320
        %v3541 = vpop.permute.xlu0 %3540
        %3544 = vset.pattern.permute.xlu0 1
        %3545 = vperm.xlu0 %3544, %v3321
        %v3546 = vpop.permute.xlu0 %3545
        %3549 = vset.pattern.permute.xlu0 1
        %3550 = vperm.xlu0 %3549, %v3322
        %v3551 = vpop.permute.xlu0 %3550
        %3554 = vset.pattern.permute.xlu0 1
        %3555 = vperm.xlu0 %3554, %v3323
        %v3556 = vpop.permute.xlu0 %3555
        %3559 = vset.pattern.permute.xlu0 1
        %3560 = vperm.xlu0 %3559, %v3324
        %v3561 = vpop.permute.xlu0 %3560
        %3564 = vset.pattern.permute.xlu0 1
        %3565 = vperm.xlu0 %3564, %v3325
        %v3566 = vpop.permute.xlu0 %3565
        %3569 = vset.pattern.permute.xlu0 1
        %3570 = vperm.xlu0 %3569, %v3326
        %v3571 = vpop.permute.xlu0 %3570
        %v3573 = vsel %vm3537, %v3541, %v3530
        %v3574 = vsel %vm3537, %v3546, %v3531
        %v3575 = vsel %vm3537, %v3551, %v3532
        %v3576 = vsel %vm3537, %v3556, %v3533
        %v3577 = vsel %vm3537, %v3561, %v3534
        %v3578 = vsel %vm3537, %v3566, %v3535
        %v3579 = vsel %vm3537, %v3571, %v3536
        %vm3580 = vcmp.eq.s32.totalorder %v3405, 5
        %3582 = vset.pattern.permute.xlu0 1
        %3583 = vperm.xlu0 %3582, %v3334
        %v3584 = vpop.permute.xlu0 %3583
        %3587 = vset.pattern.permute.xlu0 1
        %3588 = vperm.xlu0 %3587, %v3335
        %v3589 = vpop.permute.xlu0 %3588
        %3592 = vset.pattern.permute.xlu0 1
        %3593 = vperm.xlu0 %3592, %v3336
        %v3594 = vpop.permute.xlu0 %3593
        %3597 = vset.pattern.permute.xlu0 1
        %3598 = vperm.xlu0 %3597, %v3337
        %v3599 = vpop.permute.xlu0 %3598
        %3602 = vset.pattern.permute.xlu0 1
        %3603 = vperm.xlu0 %3602, %v3338
        %v3604 = vpop.permute.xlu0 %3603
        %3607 = vset.pattern.permute.xlu0 1
        %3608 = vperm.xlu0 %3607, %v3339
        %v3609 = vpop.permute.xlu0 %3608
        %3612 = vset.pattern.permute.xlu0 1
        %3613 = vperm.xlu0 %3612, %v3340
        %v3614 = vpop.permute.xlu0 %3613
        %v3616 = vsel %vm3580, %v3584, %v3573
        %v3617 = vsel %vm3580, %v3589, %v3574
        %v3618 = vsel %vm3580, %v3594, %v3575
        %v3619 = vsel %vm3580, %v3599, %v3576
        %v3620 = vsel %vm3580, %v3604, %v3577
        %v3621 = vsel %vm3580, %v3609, %v3578
        %v3622 = vsel %vm3580, %v3614, %v3579
        %vm3623 = vcmp.eq.s32.totalorder %v3405, 6
        %3625 = vset.pattern.permute.xlu0 1
        %3626 = vperm.xlu0 %3625, %v3362
        %v3627 = vpop.permute.xlu0 %3626
        %3630 = vset.pattern.permute.xlu0 1
        %3631 = vperm.xlu0 %3630, %v3363
        %v3632 = vpop.permute.xlu0 %3631
        %3635 = vset.pattern.permute.xlu0 1
        %3636 = vperm.xlu0 %3635, %v3364
        %v3637 = vpop.permute.xlu0 %3636
        %3640 = vset.pattern.permute.xlu0 1
        %3641 = vperm.xlu0 %3640, %v3365
        %v3642 = vpop.permute.xlu0 %3641
        %3645 = vset.pattern.permute.xlu0 1
        %3646 = vperm.xlu0 %3645, %v3366
        %v3647 = vpop.permute.xlu0 %3646
        %3650 = vset.pattern.permute.xlu0 1
        %3651 = vperm.xlu0 %3650, %v3367
        %v3652 = vpop.permute.xlu0 %3651
        %3655 = vset.pattern.permute.xlu0 1
        %3656 = vperm.xlu0 %3655, %v3368
        %v3657 = vpop.permute.xlu0 %3656
        %v3659 = vsel %vm3623, %v3627, %v3616
        %v3660 = vsel %vm3623, %v3632, %v3617
        %v3661 = vsel %vm3623, %v3637, %v3618
        %v3662 = vsel %vm3623, %v3642, %v3619
        %v3663 = vsel %vm3623, %v3647, %v3620
        %v3664 = vsel %vm3623, %v3652, %v3621
        %v3665 = vsel %vm3623, %v3657, %v3622
        %vm3666 = vcmp.eq.s32.totalorder %v3405, 7
        %3668 = vset.pattern.permute.xlu0 1
        %3669 = vperm.xlu0 %3668, %v3369
        %v3670 = vpop.permute.xlu0 %3669
        %3673 = vset.pattern.permute.xlu0 1
        %3674 = vperm.xlu0 %3673, %v3370
        %v3675 = vpop.permute.xlu0 %3674
        %3678 = vset.pattern.permute.xlu0 1
        %3679 = vperm.xlu0 %3678, %v3371
        %v3680 = vpop.permute.xlu0 %3679
        %3683 = vset.pattern.permute.xlu0 1
        %3684 = vperm.xlu0 %3683, %v3372
        %v3685 = vpop.permute.xlu0 %3684
        %3688 = vset.pattern.permute.xlu0 1
        %3689 = vperm.xlu0 %3688, %v3373
        %v3690 = vpop.permute.xlu0 %3689
        %3693 = vset.pattern.permute.xlu0 1
        %3694 = vperm.xlu0 %3693, %v3374
        %v3695 = vpop.permute.xlu0 %3694
        %3698 = vset.pattern.permute.xlu0 1
        %3699 = vperm.xlu0 %3698, %v3375
        %v3700 = vpop.permute.xlu0 %3699
        %v3702 = vsel %vm3666, %v3670, %v3659
        %v3703 = vsel %vm3666, %v3675, %v3660
        %v3704 = vsel %vm3666, %v3680, %v3661
        %v3705 = vsel %vm3666, %v3685, %v3662
        %v3706 = vsel %vm3666, %v3690, %v3663
        %v3707 = vsel %vm3666, %v3695, %v3664
        %v3708 = vsel %vm3666, %v3700, %v3665
        %vm3709 = vcmp.eq.s32.totalorder %v3405, 8
        %3711 = vset.pattern.permute.xlu0 1
        %3712 = vperm.xlu0 %3711, %v3397
        %v3713 = vpop.permute.xlu0 %3712
        %3716 = vset.pattern.permute.xlu0 1
        %3717 = vperm.xlu0 %3716, %v3398
        %v3718 = vpop.permute.xlu0 %3717
        %3721 = vset.pattern.permute.xlu0 1
        %3722 = vperm.xlu0 %3721, %v3399
        %v3723 = vpop.permute.xlu0 %3722
        %3726 = vset.pattern.permute.xlu0 1
        %3727 = vperm.xlu0 %3726, %v3400
        %v3728 = vpop.permute.xlu0 %3727
        %3731 = vset.pattern.permute.xlu0 1
        %3732 = vperm.xlu0 %3731, %v3401
        %v3733 = vpop.permute.xlu0 %3732
        %3736 = vset.pattern.permute.xlu0 1
        %3737 = vperm.xlu0 %3736, %v3402
        %v3738 = vpop.permute.xlu0 %3737
        %3741 = vset.pattern.permute.xlu0 1
        %3742 = vperm.xlu0 %3741, %v3403
        %v3743 = vpop.permute.xlu0 %3742
        %v3745 = vsel %vm3709, %v3713, %v3702
        %v3746 = vsel %vm3709, %v3718, %v3703
        %v3747 = vsel %vm3709, %v3723, %v3704
        %v3748 = vsel %vm3709, %v3728, %v3705
        %v3749 = vsel %vm3709, %v3733, %v3706
        %v3750 = vsel %vm3709, %v3738, %v3707
        %v3751 = vsel %vm3709, %v3743, %v3708
        %v3752 = vld [vmem:[%s1] sm:$0xf]
        %v3753 = vld [vmem:[%s1 + $0x4] sm:$0xf]
        %v3754 = vld [vmem:[%s2] sm:$0x1]
        %v3755 = vpack.c.bf16 %v3746, %v3745
        %v3756 = vpack.c.bf16 %v3748, %v3747
        %v3757 = vpack.c.bf16 %v3750, %v3749
        %v3758 = vpack.c.bf16 %v3751, %v3751
        %v3760 = vlaneseq
        %v3761 = vshrl.u32 %v3760, 7
        %v3762 = vsub.s32 0, %v3761
        %v3763 = vrot.slane %v3754, %v3762
        %v3767 = vunpack.c.l.b16 %v3752
        %v3768 = vunpack.c.l.b16 %v3753
        %v3769 = vpack.c.b16 %v3768, %v3767
        %vm3771 = vcmask 130048
        %v3773 = vsel %vm3771, %v3755, 0
        %v3776 = vsel %vm3771, %v3756, 0
        %v3779 = vsel %vm3771, %v3757, 0
        %v3782 = vsel %vm3771, %v3758, 0
        %3784 = vmatprep.subr.bf16.mxu0 0
        %3785 = vmatpush1.bf16.msra.mxu0 %v3769
        %3786 = vmatprep.subr.bf16.mxu0 0
        %3787 = vmatpush1.bf16.msra.mxu0 0
        %3788 = vmatprep.subr.bf16.mxu0 0
        %3789 = vmatpush1.bf16.msra.mxu0 0
        %3790 = vmatprep.subr.bf16.mxu0 0
        %3791 = vmatpush1.bf16.msra.mxu0 0
        %3792 = vmatprep.subr.bf16.mxu0 0
        %3793 = vmatpush1.bf16.msra.mxu0 0
        %3794 = vmatprep.subr.bf16.mxu0 0
        %3795 = vmatpush1.bf16.msra.mxu0 0
        %3796 = vmatprep.subr.bf16.mxu0 0
        %3797 = vmatpush1.bf16.msra.mxu0 0
        %3798 = vmatprep.subr.bf16.mxu0 0
        %3799 = vmatpush1.bf16.msra.mxu0 0
        %3800 = vmatprep.subr.bf16.mxu0 0
        %3801 = vmatpush1.bf16.msra.mxu0 0
        %3802 = vmatprep.subr.bf16.mxu0 0
        %3803 = vmatpush1.bf16.msra.mxu0 0
        %3804 = vmatprep.subr.bf16.mxu0 0
        %3805 = vmatpush1.bf16.msra.mxu0 0
        %3806 = vmatprep.subr.bf16.mxu0 0
        %3807 = vmatpush1.bf16.msra.mxu0 0
        %3808 = vmatprep.subr.bf16.mxu0 0
        %3809 = vmatpush1.bf16.msra.mxu0 0
        %3810 = vmatprep.subr.bf16.mxu0 0
        %3811 = vmatpush1.bf16.msra.mxu0 0
        %3812 = vmatprep.subr.bf16.mxu0 0
        %3813 = vmatpush1.bf16.msra.mxu0 0
        %3814 = vmatprep.subr.bf16.mxu0 0
        %3815 = vmatpush1.bf16.msra.mxu0 0
        %3816 = vmatprep.mubr.bf16.mxu0 0
        %3817 = vmatmul.mubr.bf16.gmra.mrb[0].mxu0 %v3773
        %v3818 = vpop.f32.mrb[0].mxu0
        %v3819 = vadd.f32 %v3763, %v3818
        %v3820 = vpop.f32.mrb[0].mxu0
        %v3821 = vpop.f32.mrb[0].mxu0
        %v3822 = vadd.f32 %v3763, %v3821
        %v3823 = vpop.f32.mrb[0].mxu0
        %3824 = vmatprep.mubr.bf16.mxu0 0
        %3825 = vmatmul.mubr.bf16.gmra.mrb[0].mxu0 %v3776
        %v3826 = vpop.f32.mrb[0].mxu0
        %v3827 = vadd.f32 %v3763, %v3826
        %v3828 = vpop.f32.mrb[0].mxu0
        %v3829 = vpop.f32.mrb[0].mxu0
        %v3830 = vadd.f32 %v3763, %v3829
        %v3831 = vpop.f32.mrb[0].mxu0
        %3832 = vmatprep.mubr.bf16.mxu0 0
        %3833 = vmatmul.mubr.bf16.gmra.mrb[0].mxu0 %v3779
        %v3834 = vpop.f32.mrb[0].mxu0
        %v3835 = vadd.f32 %v3763, %v3834
        %v3836 = vpop.f32.mrb[0].mxu0
        %v3837 = vpop.f32.mrb[0].mxu0
        %v3838 = vadd.f32 %v3763, %v3837
        %v3839 = vpop.f32.mrb[0].mxu0
        %3840 = vmatprep.mubr.bf16.mxu0 0
        %3841 = vmatmul.mubr.bf16.gmra.mrb[0].mxu0 %v3782
        %v3842 = vpop.f32.mrb[0].mxu0
        %v3843 = vadd.f32 %v3763, %v3842
        %v3844 = vpop.f32.mrb[0].mxu0
        %v3845 = vpop.f32.mrb[0].mxu0
        %v3846 = vpop.f32.mrb[0].mxu0
        %3847 = vdwg.mxu0
        %v3848 = vand.u32 2147483647, %v3819
        %vm3849 = vcmp.le.f32.partialorder %v3848, 0.7853982
        %vm3850 = vcmp.lt.s32.totalorder %v3819, 0
        %v3851 = vand.u32 %v3819, 2139095040
        %v3852 = vshrl.u32 %v3851, 23
        %v3853 = vsub.s32 %v3852, 127
        %v3854 = vand.u32 2147483647, %v3819
        %v3855 = vand.u32 %v3854, 8388607
        %v3856 = vor.u32 %v3855, 8388608
        %v3857 = vsub.s32 0, %v3856
        %v3858 = vadd.s32 %v3853, 1
        %vm3859 = vcmp.gt.s32.totalorder %v3858, 0
        %v3860 = vsel %vm3859, %v3858, 0
        %v3861 = vshrl.u32 %v3860, 5
        %v3862 = vand.u32 %v3860, 31
        %v3863 = vsub.s32 32, %v3862
        %v3864 = vshrl.u32 683565275, %v3863
        %v3865 = vshll.u32 683565275, %v3862
        %v3866 = vshrl.u32 2475754826, %v3863
        %v3867 = vor.u32 %v3865, %v3866
        %v3868 = vshll.u32 2475754826, %v3862
        %v3869 = vshrl.u32 2131351028, %v3863
        %v3870 = vor.u32 %v3868, %v3869
        %v3871 = vshll.u32 2131351028, %v3862
        %v3872 = vshrl.u32 2102212464, %v3863
        %v3873 = vor.u32 %v3871, %v3872
        %v3874 = vshll.u32 2102212464, %v3862
        %v3875 = vshrl.u32 920167782, %v3863
        %v3876 = vor.u32 %v3874, %v3875
        %v3877 = vshll.u32 920167782, %v3862
        %v3878 = vshrl.u32 1326507024, %v3863
        %v3879 = vor.u32 %v3877, %v3878
        %vm3880 = vcmp.lt.s32.totalorder %v3861, 1
        %vm3881 = vcmp.lt.s32.totalorder %v3861, 2
        %vm3882 = vcmp.lt.s32.totalorder %v3861, 3
        %vm3883 = vcmp.lt.s32.totalorder %v3861, 4
        %v3884 = vsel %vm3880, %v3864, %v3867
        %v3885 = vsel %vm3883, %v3873, 2102212464
        %v3886 = vsel %vm3882, %v3870, %v3885
        %v3887 = vsel %vm3881, %v3884, %v3886
        %v3888 = vsel %vm3880, %v3867, %v3870
        %v3889 = vsel %vm3883, %v3876, 920167782
        %v3890 = vsel %vm3882, %v3873, %v3889
        %v3891 = vsel %vm3881, %v3888, %v3890
        %v3892 = vsel %vm3880, %v3870, %v3873
        %v3893 = vsel %vm3883, %v3879, 1326507024
        %v3894 = vsel %vm3882, %v3876, %v3893
        %v3895 = vsel %vm3881, %v3892, %v3894
        %v3896 = vshll.u32 %v3856, 8
        %v3897 = vmul.u32.u64.compose %v3896, %v3895
        %v3898 = vextract.low.u32 %v3897
        %v3899 = vextract.high.u32 %v3897
        %v3900 = vmul.u32.u64.compose %v3896, %v3891
        %v3901 = vextract.low.u32 %v3900
        %v3902 = vextract.high.u32 %v3900
        %v3903 = vmul.u32 %v3896, %v3887
        %v3904 = vadd.s32 %v3899, %v3901
        %vm3905 = vc.u32 %v3899, %v3901
        %v3906 = vadd.s32 %v3902, 1
        %v3907 = vsel %vm3905, %v3906, %v3902
        %v3908 = vadd.s32 %v3903, %v3907
        %v3909 = vadd.s32 %v3908, 536870912
        %v3910 = vshrl.u32 %v3909, 30
        %v3911 = vshll.u32 %v3910, 30
        %v3912 = vsub.s32 %v3908, %v3911
        %vm3913 = vcmp.lt.s32.totalorder %v3912, 0
        %v3914 = vsub.s32 0, %v3912
        %v3915 = vsel %vm3913, %v3914, %v3912
        %v3916 = vclz %v3915
        %v3917 = vsub.s32 %v3916, 2
        %vm3918 = vcmp.gt.s32.totalorder 0, %v3917
        %v3919 = vsel %vm3918, 0, %v3917
        %v3920 = vsub.s32 32, %v3919
        %v3921 = vshll.u32 %v3912, %v3919
        %v3922 = vshrl.u32 %v3904, %v3920
        %v3923 = vor.u32 %v3921, %v3922
        %v3924 = vsub.s32 4294967266, %v3919
        %v3925 = vadd.s32 %v3924, 127
        %v3926 = vshll.u32 %v3925, 23
        %v3927 = vor.u32 4788187, %v3926
        %v3928 = vand.u32 2147483647, %v3927
        %v3930 = vcvt.s32.f32 %v3923
        %v3931 = vmul.f32 %v3930, %v3928
        %v3932 = vxor.u32 %v3931, 2147483648
        %v3933 = vsel %vm3850, %v3932, %v3931
        %v3934 = vsub.s32 4, %v3910
        %v3935 = vsel %vm3850, %v3934, %v3910
        %v3936 = vsel %vm3849, %v3819, %v3933
        %v3937 = vsel %vm3849, 0, %v3935
        %v3938 = vcosq.f32.pop %v3936
        %v3939 = vsinq.f32.pop %v3936
        %vm3940 = vweird.f32 %v3819
        %v3941 = vadd.s32 %v3937, 3
        %v3942 = vand.u32 %v3941, 3
        %vm3943 = vcmp.lt.s32.totalorder %v3942, 2
        %vm3944 = vcmp.eq.s32.totalorder %v3942, 0
        %v3945 = vxor.u32 %v3939, 2147483648
        %v3946 = vsel %vm3944, %v3938, %v3945
        %vm3947 = vcmp.eq.s32.totalorder %v3942, 2
        %v3948 = vxor.u32 %v3938, 2147483648
        %v3949 = vsel %vm3947, %v3948, %v3939
        %v3950 = vsel %vm3943, %v3946, %v3949
        %v3951 = vsel %vm3940, nan, %v3950
        %v3952 = vand.u32 2147483647, %v3822
        %vm3953 = vcmp.le.f32.partialorder %v3952, 0.7853982
        %vm3954 = vcmp.lt.s32.totalorder %v3822, 0
        %v3955 = vand.u32 %v3822, 2139095040
        %v3956 = vshrl.u32 %v3955, 23
        %v3957 = vsub.s32 %v3956, 127
        %v3958 = vand.u32 2147483647, %v3822
        %v3959 = vand.u32 %v3958, 8388607
        %v3960 = vor.u32 %v3959, 8388608
        %v3961 = vsub.s32 0, %v3960
        %v3962 = vadd.s32 %v3957, 1
        %vm3963 = vcmp.gt.s32.totalorder %v3962, 0
        %v3964 = vsel %vm3963, %v3962, 0
        %v3965 = vshrl.u32 %v3964, 5
        %v3966 = vand.u32 %v3964, 31
        %v3967 = vsub.s32 32, %v3966
        %v3968 = vshrl.u32 683565275, %v3967
        %v3969 = vshll.u32 683565275, %v3966
        %v3970 = vshrl.u32 2475754826, %v3967
        %v3971 = vor.u32 %v3969, %v3970
        %v3972 = vshll.u32 2475754826, %v3966
        %v3973 = vshrl.u32 2131351028, %v3967
        %v3974 = vor.u32 %v3972, %v3973
        %v3975 = vshll.u32 2131351028, %v3966
        %v3976 = vshrl.u32 2102212464, %v3967
        %v3977 = vor.u32 %v3975, %v3976
        %v3978 = vshll.u32 2102212464, %v3966
        %v3979 = vshrl.u32 920167782, %v3967
        %v3980 = vor.u32 %v3978, %v3979
        %v3981 = vshll.u32 920167782, %v3966
        %v3982 = vshrl.u32 1326507024, %v3967
        %v3983 = vor.u32 %v3981, %v3982
        %vm3984 = vcmp.lt.s32.totalorder %v3965, 1
        %vm3985 = vcmp.lt.s32.totalorder %v3965, 2
        %vm3986 = vcmp.lt.s32.totalorder %v3965, 3
        %vm3987 = vcmp.lt.s32.totalorder %v3965, 4
        %v3988 = vsel %vm3984, %v3968, %v3971
        %v3989 = vsel %vm3987, %v3977, 2102212464
        %v3990 = vsel %vm3986, %v3974, %v3989
        %v3991 = vsel %vm3985, %v3988, %v3990
        %v3992 = vsel %vm3984, %v3971, %v3974
        %v3993 = vsel %vm3987, %v3980, 920167782
        %v3994 = vsel %vm3986, %v3977, %v3993
        %v3995 = vsel %vm3985, %v3992, %v3994
        %v3996 = vsel %vm3984, %v3974, %v3977
        %v3997 = vsel %vm3987, %v3983, 1326507024
        %v3998 = vsel %vm3986, %v3980, %v3997
        %v3999 = vsel %vm3985, %v3996, %v3998
        %v4000 = vshll.u32 %v3960, 8
        %v4001 = vmul.u32.u64.compose %v4000, %v3999
        %v4002 = vextract.low.u32 %v4001
        %v4003 = vextract.high.u32 %v4001
        %v4004 = vmul.u32.u64.compose %v4000, %v3995
        %v4005 = vextract.low.u32 %v4004
        %v4006 = vextract.high.u32 %v4004
        %v4007 = vmul.u32 %v4000, %v3991
        %v4008 = vadd.s32 %v4003, %v4005
        %vm4009 = vc.u32 %v4003, %v4005
        %v4010 = vadd.s32 %v4006, 1
        %v4011 = vsel %vm4009, %v4010, %v4006
        %v4012 = vadd.s32 %v4007, %v4011
        %v4013 = vadd.s32 %v4012, 536870912
        %v4014 = vshrl.u32 %v4013, 30
        %v4015 = vshll.u32 %v4014, 30
        %v4016 = vsub.s32 %v4012, %v4015
        %vm4017 = vcmp.lt.s32.totalorder %v4016, 0
        %v4018 = vsub.s32 0, %v4016
        %v4019 = vsel %vm4017, %v4018, %v4016
        %v4020 = vclz %v4019
        %v4021 = vsub.s32 %v4020, 2
        %vm4022 = vcmp.gt.s32.totalorder 0, %v4021
        %v4023 = vsel %vm4022, 0, %v4021
        %v4024 = vsub.s32 32, %v4023
        %v4025 = vshll.u32 %v4016, %v4023
        %v4026 = vshrl.u32 %v4008, %v4024
        %v4027 = vor.u32 %v4025, %v4026
        %v4028 = vsub.s32 4294967266, %v4023
        %v4029 = vadd.s32 %v4028, 127
        %v4030 = vshll.u32 %v4029, 23
        %v4031 = vor.u32 4788187, %v4030
        %v4032 = vand.u32 2147483647, %v4031
        %v4034 = vcvt.s32.f32 %v4027
        %v4035 = vmul.f32 %v4034, %v4032
        %v4036 = vxor.u32 %v4035, 2147483648
        %v4037 = vsel %vm3954, %v4036, %v4035
        %v4038 = vsub.s32 4, %v4014
        %v4039 = vsel %vm3954, %v4038, %v4014
        %v4040 = vsel %vm3953, %v3822, %v4037
        %v4041 = vsel %vm3953, 0, %v4039
        %v4042 = vcosq.f32.pop %v4040
        %v4043 = vsinq.f32.pop %v4040
        %vm4044 = vweird.f32 %v3822
        %v4045 = vadd.s32 %v4041, 3
        %v4046 = vand.u32 %v4045, 3
        %vm4047 = vcmp.lt.s32.totalorder %v4046, 2
        %vm4048 = vcmp.eq.s32.totalorder %v4046, 0
        %v4049 = vxor.u32 %v4043, 2147483648
        %v4050 = vsel %vm4048, %v4042, %v4049
        %vm4051 = vcmp.eq.s32.totalorder %v4046, 2
        %v4052 = vxor.u32 %v4042, 2147483648
        %v4053 = vsel %vm4051, %v4052, %v4043
        %v4054 = vsel %vm4047, %v4050, %v4053
        %v4055 = vsel %vm4044, nan, %v4054
        %v4056 = vand.u32 2147483647, %v3827
        %vm4057 = vcmp.le.f32.partialorder %v4056, 0.7853982
        %vm4058 = vcmp.lt.s32.totalorder %v3827, 0
        %v4059 = vand.u32 %v3827, 2139095040
        %v4060 = vshrl.u32 %v4059, 23
        %v4061 = vsub.s32 %v4060, 127
        %v4062 = vand.u32 2147483647, %v3827
        %v4063 = vand.u32 %v4062, 8388607
        %v4064 = vor.u32 %v4063, 8388608
        %v4065 = vsub.s32 0, %v4064
        %v4066 = vadd.s32 %v4061, 1
        %vm4067 = vcmp.gt.s32.totalorder %v4066, 0
        %v4068 = vsel %vm4067, %v4066, 0
        %v4069 = vshrl.u32 %v4068, 5
        %v4070 = vand.u32 %v4068, 31
        %v4071 = vsub.s32 32, %v4070
        %v4072 = vshrl.u32 683565275, %v4071
        %v4073 = vshll.u32 683565275, %v4070
        %v4074 = vshrl.u32 2475754826, %v4071
        %v4075 = vor.u32 %v4073, %v4074
        %v4076 = vshll.u32 2475754826, %v4070
        %v4077 = vshrl.u32 2131351028, %v4071
        %v4078 = vor.u32 %v4076, %v4077
        %v4079 = vshll.u32 2131351028, %v4070
        %v4080 = vshrl.u32 2102212464, %v4071
        %v4081 = vor.u32 %v4079, %v4080
        %v4082 = vshll.u32 2102212464, %v4070
        %v4083 = vshrl.u32 920167782, %v4071
        %v4084 = vor.u32 %v4082, %v4083
        %v4085 = vshll.u32 920167782, %v4070
        %v4086 = vshrl.u32 1326507024, %v4071
        %v4087 = vor.u32 %v4085, %v4086
        %vm4088 = vcmp.lt.s32.totalorder %v4069, 1
        %vm4089 = vcmp.lt.s32.totalorder %v4069, 2
        %vm4090 = vcmp.lt.s32.totalorder %v4069, 3
        %vm4091 = vcmp.lt.s32.totalorder %v4069, 4
        %v4092 = vsel %vm4088, %v4072, %v4075
        %v4093 = vsel %vm4091, %v4081, 2102212464
        %v4094 = vsel %vm4090, %v4078, %v4093
        %v4095 = vsel %vm4089, %v4092, %v4094
        %v4096 = vsel %vm4088, %v4075, %v4078
        %v4097 = vsel %vm4091, %v4084, 920167782
        %v4098 = vsel %vm4090, %v4081, %v4097
        %v4099 = vsel %vm4089, %v4096, %v4098
        %v4100 = vsel %vm4088, %v4078, %v4081
        %v4101 = vsel %vm4091, %v4087, 1326507024
        %v4102 = vsel %vm4090, %v4084, %v4101
        %v4103 = vsel %vm4089, %v4100, %v4102
        %v4104 = vshll.u32 %v4064, 8
        %v4105 = vmul.u32.u64.compose %v4104, %v4103
        %v4106 = vextract.low.u32 %v4105
        %v4107 = vextract.high.u32 %v4105
        %v4108 = vmul.u32.u64.compose %v4104, %v4099
        %v4109 = vextract.low.u32 %v4108
        %v4110 = vextract.high.u32 %v4108
        %v4111 = vmul.u32 %v4104, %v4095
        %v4112 = vadd.s32 %v4107, %v4109
        %vm4113 = vc.u32 %v4107, %v4109
        %v4114 = vadd.s32 %v4110, 1
        %v4115 = vsel %vm4113, %v4114, %v4110
        %v4116 = vadd.s32 %v4111, %v4115
        %v4117 = vadd.s32 %v4116, 536870912
        %v4118 = vshrl.u32 %v4117, 30
        %v4119 = vshll.u32 %v4118, 30
        %v4120 = vsub.s32 %v4116, %v4119
        %vm4121 = vcmp.lt.s32.totalorder %v4120, 0
        %v4122 = vsub.s32 0, %v4120
        %v4123 = vsel %vm4121, %v4122, %v4120
        %v4124 = vclz %v4123
        %v4125 = vsub.s32 %v4124, 2
        %vm4126 = vcmp.gt.s32.totalorder 0, %v4125
        %v4127 = vsel %vm4126, 0, %v4125
        %v4128 = vsub.s32 32, %v4127
        %v4129 = vshll.u32 %v4120, %v4127
        %v4130 = vshrl.u32 %v4112, %v4128
        %v4131 = vor.u32 %v4129, %v4130
        %v4132 = vsub.s32 4294967266, %v4127
        %v4133 = vadd.s32 %v4132, 127
        %v4134 = vshll.u32 %v4133, 23
        %v4135 = vor.u32 4788187, %v4134
        %v4136 = vand.u32 2147483647, %v4135
        %v4138 = vcvt.s32.f32 %v4131
        %v4139 = vmul.f32 %v4138, %v4136
        %v4140 = vxor.u32 %v4139, 2147483648
        %v4141 = vsel %vm4058, %v4140, %v4139
        %v4142 = vsub.s32 4, %v4118
        %v4143 = vsel %vm4058, %v4142, %v4118
        %v4144 = vsel %vm4057, %v3827, %v4141
        %v4145 = vsel %vm4057, 0, %v4143
        %v4146 = vcosq.f32.pop %v4144
        %v4147 = vsinq.f32.pop %v4144
        %vm4148 = vweird.f32 %v3827
        %v4149 = vadd.s32 %v4145, 3
        %v4150 = vand.u32 %v4149, 3
        %vm4151 = vcmp.lt.s32.totalorder %v4150, 2
        %vm4152 = vcmp.eq.s32.totalorder %v4150, 0
        %v4153 = vxor.u32 %v4147, 2147483648
        %v4154 = vsel %vm4152, %v4146, %v4153
        %vm4155 = vcmp.eq.s32.totalorder %v4150, 2
        %v4156 = vxor.u32 %v4146, 2147483648
        %v4157 = vsel %vm4155, %v4156, %v4147
        %v4158 = vsel %vm4151, %v4154, %v4157
        %v4159 = vsel %vm4148, nan, %v4158
        %v4160 = vand.u32 2147483647, %v3830
        %vm4161 = vcmp.le.f32.partialorder %v4160, 0.7853982
        %vm4162 = vcmp.lt.s32.totalorder %v3830, 0
        %v4163 = vand.u32 %v3830, 2139095040
        %v4164 = vshrl.u32 %v4163, 23
        %v4165 = vsub.s32 %v4164, 127
        %v4166 = vand.u32 2147483647, %v3830
        %v4167 = vand.u32 %v4166, 8388607
        %v4168 = vor.u32 %v4167, 8388608
        %v4169 = vsub.s32 0, %v4168
        %v4170 = vadd.s32 %v4165, 1
        %vm4171 = vcmp.gt.s32.totalorder %v4170, 0
        %v4172 = vsel %vm4171, %v4170, 0
        %v4173 = vshrl.u32 %v4172, 5
        %v4174 = vand.u32 %v4172, 31
        %v4175 = vsub.s32 32, %v4174
        %v4176 = vshrl.u32 683565275, %v4175
        %v4177 = vshll.u32 683565275, %v4174
        %v4178 = vshrl.u32 2475754826, %v4175
        %v4179 = vor.u32 %v4177, %v4178
        %v4180 = vshll.u32 2475754826, %v4174
        %v4181 = vshrl.u32 2131351028, %v4175
        %v4182 = vor.u32 %v4180, %v4181
        %v4183 = vshll.u32 2131351028, %v4174
        %v4184 = vshrl.u32 2102212464, %v4175
        %v4185 = vor.u32 %v4183, %v4184
        %v4186 = vshll.u32 2102212464, %v4174
        %v4187 = vshrl.u32 920167782, %v4175
        %v4188 = vor.u32 %v4186, %v4187
        %v4189 = vshll.u32 920167782, %v4174
        %v4190 = vshrl.u32 1326507024, %v4175
        %v4191 = vor.u32 %v4189, %v4190
        %vm4192 = vcmp.lt.s32.totalorder %v4173, 1
        %vm4193 = vcmp.lt.s32.totalorder %v4173, 2
        %vm4194 = vcmp.lt.s32.totalorder %v4173, 3
        %vm4195 = vcmp.lt.s32.totalorder %v4173, 4
        %v4196 = vsel %vm4192, %v4176, %v4179
        %v4197 = vsel %vm4195, %v4185, 2102212464
        %v4198 = vsel %vm4194, %v4182, %v4197
        %v4199 = vsel %vm4193, %v4196, %v4198
        %v4200 = vsel %vm4192, %v4179, %v4182
        %v4201 = vsel %vm4195, %v4188, 920167782
        %v4202 = vsel %vm4194, %v4185, %v4201
        %v4203 = vsel %vm4193, %v4200, %v4202
        %v4204 = vsel %vm4192, %v4182, %v4185
        %v4205 = vsel %vm4195, %v4191, 1326507024
        %v4206 = vsel %vm4194, %v4188, %v4205
        %v4207 = vsel %vm4193, %v4204, %v4206
        %v4208 = vshll.u32 %v4168, 8
        %v4209 = vmul.u32.u64.compose %v4208, %v4207
        %v4210 = vextract.low.u32 %v4209
        %v4211 = vextract.high.u32 %v4209
        %v4212 = vmul.u32.u64.compose %v4208, %v4203
        %v4213 = vextract.low.u32 %v4212
        %v4214 = vextract.high.u32 %v4212
        %v4215 = vmul.u32 %v4208, %v4199
        %v4216 = vadd.s32 %v4211, %v4213
        %vm4217 = vc.u32 %v4211, %v4213
        %v4218 = vadd.s32 %v4214, 1
        %v4219 = vsel %vm4217, %v4218, %v4214
        %v4220 = vadd.s32 %v4215, %v4219
        %v4221 = vadd.s32 %v4220, 536870912
        %v4222 = vshrl.u32 %v4221, 30
        %v4223 = vshll.u32 %v4222, 30
        %v4224 = vsub.s32 %v4220, %v4223
        %vm4225 = vcmp.lt.s32.totalorder %v4224, 0
        %v4226 = vsub.s32 0, %v4224
        %v4227 = vsel %vm4225, %v4226, %v4224
        %v4228 = vclz %v4227
        %v4229 = vsub.s32 %v4228, 2
        %vm4230 = vcmp.gt.s32.totalorder 0, %v4229
        %v4231 = vsel %vm4230, 0, %v4229
        %v4232 = vsub.s32 32, %v4231
        %v4233 = vshll.u32 %v4224, %v4231
        %v4234 = vshrl.u32 %v4216, %v4232
        %v4235 = vor.u32 %v4233, %v4234
        %v4236 = vsub.s32 4294967266, %v4231
        %v4237 = vadd.s32 %v4236, 127
        %v4238 = vshll.u32 %v4237, 23
        %v4239 = vor.u32 4788187, %v4238
        %v4240 = vand.u32 2147483647, %v4239
        %v4242 = vcvt.s32.f32 %v4235
        %v4243 = vmul.f32 %v4242, %v4240
        %v4244 = vxor.u32 %v4243, 2147483648
        %v4245 = vsel %vm4162, %v4244, %v4243
        %v4246 = vsub.s32 4, %v4222
        %v4247 = vsel %vm4162, %v4246, %v4222
        %v4248 = vsel %vm4161, %v3830, %v4245
        %v4249 = vsel %vm4161, 0, %v4247
        %v4250 = vcosq.f32.pop %v4248
        %v4251 = vsinq.f32.pop %v4248
        %vm4252 = vweird.f32 %v3830
        %v4253 = vadd.s32 %v4249, 3
        %v4254 = vand.u32 %v4253, 3
        %vm4255 = vcmp.lt.s32.totalorder %v4254, 2
        %vm4256 = vcmp.eq.s32.totalorder %v4254, 0
        %v4257 = vxor.u32 %v4251, 2147483648
        %v4258 = vsel %vm4256, %v4250, %v4257
        %vm4259 = vcmp.eq.s32.totalorder %v4254, 2
        %v4260 = vxor.u32 %v4250, 2147483648
        %v4261 = vsel %vm4259, %v4260, %v4251
        %v4262 = vsel %vm4255, %v4258, %v4261
        %v4263 = vsel %vm4252, nan, %v4262
        %v4264 = vand.u32 2147483647, %v3835
        %vm4265 = vcmp.le.f32.partialorder %v4264, 0.7853982
        %vm4266 = vcmp.lt.s32.totalorder %v3835, 0
        %v4267 = vand.u32 %v3835, 2139095040
        %v4268 = vshrl.u32 %v4267, 23
        %v4269 = vsub.s32 %v4268, 127
        %v4270 = vand.u32 2147483647, %v3835
        %v4271 = vand.u32 %v4270, 8388607
        %v4272 = vor.u32 %v4271, 8388608
        %v4273 = vsub.s32 0, %v4272
        %v4274 = vadd.s32 %v4269, 1
        %vm4275 = vcmp.gt.s32.totalorder %v4274, 0
        %v4276 = vsel %vm4275, %v4274, 0
        %v4277 = vshrl.u32 %v4276, 5
        %v4278 = vand.u32 %v4276, 31
        %v4279 = vsub.s32 32, %v4278
        %v4280 = vshrl.u32 683565275, %v4279
        %v4281 = vshll.u32 683565275, %v4278
        %v4282 = vshrl.u32 2475754826, %v4279
        %v4283 = vor.u32 %v4281, %v4282
        %v4284 = vshll.u32 2475754826, %v4278
        %v4285 = vshrl.u32 2131351028, %v4279
        %v4286 = vor.u32 %v4284, %v4285
        %v4287 = vshll.u32 2131351028, %v4278
        %v4288 = vshrl.u32 2102212464, %v4279
        %v4289 = vor.u32 %v4287, %v4288
        %v4290 = vshll.u32 2102212464, %v4278
        %v4291 = vshrl.u32 920167782, %v4279
        %v4292 = vor.u32 %v4290, %v4291
        %v4293 = vshll.u32 920167782, %v4278
        %v4294 = vshrl.u32 1326507024, %v4279
        %v4295 = vor.u32 %v4293, %v4294
        %vm4296 = vcmp.lt.s32.totalorder %v4277, 1
        %vm4297 = vcmp.lt.s32.totalorder %v4277, 2
        %vm4298 = vcmp.lt.s32.totalorder %v4277, 3
        %vm4299 = vcmp.lt.s32.totalorder %v4277, 4
        %v4300 = vsel %vm4296, %v4280, %v4283
        %v4301 = vsel %vm4299, %v4289, 2102212464
        %v4302 = vsel %vm4298, %v4286, %v4301
        %v4303 = vsel %vm4297, %v4300, %v4302
        %v4304 = vsel %vm4296, %v4283, %v4286
        %v4305 = vsel %vm4299, %v4292, 920167782
        %v4306 = vsel %vm4298, %v4289, %v4305
        %v4307 = vsel %vm4297, %v4304, %v4306
        %v4308 = vsel %vm4296, %v4286, %v4289
        %v4309 = vsel %vm4299, %v4295, 1326507024
        %v4310 = vsel %vm4298, %v4292, %v4309
        %v4311 = vsel %vm4297, %v4308, %v4310
        %v4312 = vshll.u32 %v4272, 8
        %v4313 = vmul.u32.u64.compose %v4312, %v4311
        %v4314 = vextract.low.u32 %v4313
        %v4315 = vextract.high.u32 %v4313
        %v4316 = vmul.u32.u64.compose %v4312, %v4307
        %v4317 = vextract.low.u32 %v4316
        %v4318 = vextract.high.u32 %v4316
        %v4319 = vmul.u32 %v4312, %v4303
        %v4320 = vadd.s32 %v4315, %v4317
        %vm4321 = vc.u32 %v4315, %v4317
        %v4322 = vadd.s32 %v4318, 1
        %v4323 = vsel %vm4321, %v4322, %v4318
        %v4324 = vadd.s32 %v4319, %v4323
        %v4325 = vadd.s32 %v4324, 536870912
        %v4326 = vshrl.u32 %v4325, 30
        %v4327 = vshll.u32 %v4326, 30
        %v4328 = vsub.s32 %v4324, %v4327
        %vm4329 = vcmp.lt.s32.totalorder %v4328, 0
        %v4330 = vsub.s32 0, %v4328
        %v4331 = vsel %vm4329, %v4330, %v4328
        %v4332 = vclz %v4331
        %v4333 = vsub.s32 %v4332, 2
        %vm4334 = vcmp.gt.s32.totalorder 0, %v4333
        %v4335 = vsel %vm4334, 0, %v4333
        %v4336 = vsub.s32 32, %v4335
        %v4337 = vshll.u32 %v4328, %v4335
        %v4338 = vshrl.u32 %v4320, %v4336
        %v4339 = vor.u32 %v4337, %v4338
        %v4340 = vsub.s32 4294967266, %v4335
        %v4341 = vadd.s32 %v4340, 127
        %v4342 = vshll.u32 %v4341, 23
        %v4343 = vor.u32 4788187, %v4342
        %v4344 = vand.u32 2147483647, %v4343
        %v4346 = vcvt.s32.f32 %v4339
        %v4347 = vmul.f32 %v4346, %v4344
        %v4348 = vxor.u32 %v4347, 2147483648
        %v4349 = vsel %vm4266, %v4348, %v4347
        %v4350 = vsub.s32 4, %v4326
        %v4351 = vsel %vm4266, %v4350, %v4326
        %v4352 = vsel %vm4265, %v3835, %v4349
        %v4353 = vsel %vm4265, 0, %v4351
        %v4354 = vcosq.f32.pop %v4352
        %v4355 = vsinq.f32.pop %v4352
        %vm4356 = vweird.f32 %v3835
        %v4357 = vadd.s32 %v4353, 3
        %v4358 = vand.u32 %v4357, 3
        %vm4359 = vcmp.lt.s32.totalorder %v4358, 2
        %vm4360 = vcmp.eq.s32.totalorder %v4358, 0
        %v4361 = vxor.u32 %v4355, 2147483648
        %v4362 = vsel %vm4360, %v4354, %v4361
        %vm4363 = vcmp.eq.s32.totalorder %v4358, 2
        %v4364 = vxor.u32 %v4354, 2147483648
        %v4365 = vsel %vm4363, %v4364, %v4355
        %v4366 = vsel %vm4359, %v4362, %v4365
        %v4367 = vsel %vm4356, nan, %v4366
        %v4368 = vand.u32 2147483647, %v3838
        %vm4369 = vcmp.le.f32.partialorder %v4368, 0.7853982
        %vm4370 = vcmp.lt.s32.totalorder %v3838, 0
        %v4371 = vand.u32 %v3838, 2139095040
        %v4372 = vshrl.u32 %v4371, 23
        %v4373 = vsub.s32 %v4372, 127
        %v4374 = vand.u32 2147483647, %v3838
        %v4375 = vand.u32 %v4374, 8388607
        %v4376 = vor.u32 %v4375, 8388608
        %v4377 = vsub.s32 0, %v4376
        %v4378 = vadd.s32 %v4373, 1
        %vm4379 = vcmp.gt.s32.totalorder %v4378, 0
        %v4380 = vsel %vm4379, %v4378, 0
        %v4381 = vshrl.u32 %v4380, 5
        %v4382 = vand.u32 %v4380, 31
        %v4383 = vsub.s32 32, %v4382
        %v4384 = vshrl.u32 683565275, %v4383
        %v4385 = vshll.u32 683565275, %v4382
        %v4386 = vshrl.u32 2475754826, %v4383
        %v4387 = vor.u32 %v4385, %v4386
        %v4388 = vshll.u32 2475754826, %v4382
        %v4389 = vshrl.u32 2131351028, %v4383
        %v4390 = vor.u32 %v4388, %v4389
        %v4391 = vshll.u32 2131351028, %v4382
        %v4392 = vshrl.u32 2102212464, %v4383
        %v4393 = vor.u32 %v4391, %v4392
        %v4394 = vshll.u32 2102212464, %v4382
        %v4395 = vshrl.u32 920167782, %v4383
        %v4396 = vor.u32 %v4394, %v4395
        %v4397 = vshll.u32 920167782, %v4382
        %v4398 = vshrl.u32 1326507024, %v4383
        %v4399 = vor.u32 %v4397, %v4398
        %vm4400 = vcmp.lt.s32.totalorder %v4381, 1
        %vm4401 = vcmp.lt.s32.totalorder %v4381, 2
        %vm4402 = vcmp.lt.s32.totalorder %v4381, 3
        %vm4403 = vcmp.lt.s32.totalorder %v4381, 4
        %v4404 = vsel %vm4400, %v4384, %v4387
        %v4405 = vsel %vm4403, %v4393, 2102212464
        %v4406 = vsel %vm4402, %v4390, %v4405
        %v4407 = vsel %vm4401, %v4404, %v4406
        %v4408 = vsel %vm4400, %v4387, %v4390
        %v4409 = vsel %vm4403, %v4396, 920167782
        %v4410 = vsel %vm4402, %v4393, %v4409
        %v4411 = vsel %vm4401, %v4408, %v4410
        %v4412 = vsel %vm4400, %v4390, %v4393
        %v4413 = vsel %vm4403, %v4399, 1326507024
        %v4414 = vsel %vm4402, %v4396, %v4413
        %v4415 = vsel %vm4401, %v4412, %v4414
        %v4416 = vshll.u32 %v4376, 8
        %v4417 = vmul.u32.u64.compose %v4416, %v4415
        %v4418 = vextract.low.u32 %v4417
        %v4419 = vextract.high.u32 %v4417
        %v4420 = vmul.u32.u64.compose %v4416, %v4411
        %v4421 = vextract.low.u32 %v4420
        %v4422 = vextract.high.u32 %v4420
        %v4423 = vmul.u32 %v4416, %v4407
        %v4424 = vadd.s32 %v4419, %v4421
        %vm4425 = vc.u32 %v4419, %v4421
        %v4426 = vadd.s32 %v4422, 1
        %v4427 = vsel %vm4425, %v4426, %v4422
        %v4428 = vadd.s32 %v4423, %v4427
        %v4429 = vadd.s32 %v4428, 536870912
        %v4430 = vshrl.u32 %v4429, 30
        %v4431 = vshll.u32 %v4430, 30
        %v4432 = vsub.s32 %v4428, %v4431
        %vm4433 = vcmp.lt.s32.totalorder %v4432, 0
        %v4434 = vsub.s32 0, %v4432
        %v4435 = vsel %vm4433, %v4434, %v4432
        %v4436 = vclz %v4435
        %v4437 = vsub.s32 %v4436, 2
        %vm4438 = vcmp.gt.s32.totalorder 0, %v4437
        %v4439 = vsel %vm4438, 0, %v4437
        %v4440 = vsub.s32 32, %v4439
        %v4441 = vshll.u32 %v4432, %v4439
        %v4442 = vshrl.u32 %v4424, %v4440
        %v4443 = vor.u32 %v4441, %v4442
        %v4444 = vsub.s32 4294967266, %v4439
        %v4445 = vadd.s32 %v4444, 127
        %v4446 = vshll.u32 %v4445, 23
        %v4447 = vor.u32 4788187, %v4446
        %v4448 = vand.u32 2147483647, %v4447
        %v4450 = vcvt.s32.f32 %v4443
        %v4451 = vmul.f32 %v4450, %v4448
        %v4452 = vxor.u32 %v4451, 2147483648
        %v4453 = vsel %vm4370, %v4452, %v4451
        %v4454 = vsub.s32 4, %v4430
        %v4455 = vsel %vm4370, %v4454, %v4430
        %v4456 = vsel %vm4369, %v3838, %v4453
        %v4457 = vsel %vm4369, 0, %v4455
        %v4458 = vcosq.f32.pop %v4456
        %v4459 = vsinq.f32.pop %v4456
        %vm4460 = vweird.f32 %v3838
        %v4461 = vadd.s32 %v4457, 3
        %v4462 = vand.u32 %v4461, 3
        %vm4463 = vcmp.lt.s32.totalorder %v4462, 2
        %vm4464 = vcmp.eq.s32.totalorder %v4462, 0
        %v4465 = vxor.u32 %v4459, 2147483648
        %v4466 = vsel %vm4464, %v4458, %v4465
        %vm4467 = vcmp.eq.s32.totalorder %v4462, 2
        %v4468 = vxor.u32 %v4458, 2147483648
        %v4469 = vsel %vm4467, %v4468, %v4459
        %v4470 = vsel %vm4463, %v4466, %v4469
        %v4471 = vsel %vm4460, nan, %v4470
        %v4472 = vand.u32 2147483647, %v3843
        %vm4473 = vcmp.le.f32.partialorder %v4472, 0.7853982
        %vm4474 = vcmp.lt.s32.totalorder %v3843, 0
        %v4475 = vand.u32 %v3843, 2139095040
        %v4476 = vshrl.u32 %v4475, 23
        %v4477 = vsub.s32 %v4476, 127
        %v4478 = vand.u32 2147483647, %v3843
        %v4479 = vand.u32 %v4478, 8388607
        %v4480 = vor.u32 %v4479, 8388608
        %v4481 = vsub.s32 0, %v4480
        %v4482 = vadd.s32 %v4477, 1
        %vm4483 = vcmp.gt.s32.totalorder %v4482, 0
        %v4484 = vsel %vm4483, %v4482, 0
        %v4485 = vshrl.u32 %v4484, 5
        %v4486 = vand.u32 %v4484, 31
        %v4487 = vsub.s32 32, %v4486
        %v4488 = vshrl.u32 683565275, %v4487
        %v4489 = vshll.u32 683565275, %v4486
        %v4490 = vshrl.u32 2475754826, %v4487
        %v4491 = vor.u32 %v4489, %v4490
        %v4492 = vshll.u32 2475754826, %v4486
        %v4493 = vshrl.u32 2131351028, %v4487
        %v4494 = vor.u32 %v4492, %v4493
        %v4495 = vshll.u32 2131351028, %v4486
        %v4496 = vshrl.u32 2102212464, %v4487
        %v4497 = vor.u32 %v4495, %v4496
        %v4498 = vshll.u32 2102212464, %v4486
        %v4499 = vshrl.u32 920167782, %v4487
        %v4500 = vor.u32 %v4498, %v4499
        %v4501 = vshll.u32 920167782, %v4486
        %v4502 = vshrl.u32 1326507024, %v4487
        %v4503 = vor.u32 %v4501, %v4502
        %vm4504 = vcmp.lt.s32.totalorder %v4485, 1
        %vm4505 = vcmp.lt.s32.totalorder %v4485, 2
        %vm4506 = vcmp.lt.s32.totalorder %v4485, 3
        %vm4507 = vcmp.lt.s32.totalorder %v4485, 4
        %v4508 = vsel %vm4504, %v4488, %v4491
        %v4509 = vsel %vm4507, %v4497, 2102212464
        %v4510 = vsel %vm4506, %v4494, %v4509
        %v4511 = vsel %vm4505, %v4508, %v4510
        %v4512 = vsel %vm4504, %v4491, %v4494
        %v4513 = vsel %vm4507, %v4500, 920167782
        %v4514 = vsel %vm4506, %v4497, %v4513
        %v4515 = vsel %vm4505, %v4512, %v4514
        %v4516 = vsel %vm4504, %v4494, %v4497
        %v4517 = vsel %vm4507, %v4503, 1326507024
        %v4518 = vsel %vm4506, %v4500, %v4517
        %v4519 = vsel %vm4505, %v4516, %v4518
        %v4520 = vshll.u32 %v4480, 8
        %v4521 = vmul.u32.u64.compose %v4520, %v4519
        %v4522 = vextract.low.u32 %v4521
        %v4523 = vextract.high.u32 %v4521
        %v4524 = vmul.u32.u64.compose %v4520, %v4515
        %v4525 = vextract.low.u32 %v4524
        %v4526 = vextract.high.u32 %v4524
        %v4527 = vmul.u32 %v4520, %v4511
        %v4528 = vadd.s32 %v4523, %v4525
        %vm4529 = vc.u32 %v4523, %v4525
        %v4530 = vadd.s32 %v4526, 1
        %v4531 = vsel %vm4529, %v4530, %v4526
        %v4532 = vadd.s32 %v4527, %v4531
        %v4533 = vadd.s32 %v4532, 536870912
        %v4534 = vshrl.u32 %v4533, 30
        %v4535 = vshll.u32 %v4534, 30
        %v4536 = vsub.s32 %v4532, %v4535
        %vm4537 = vcmp.lt.s32.totalorder %v4536, 0
        %v4538 = vsub.s32 0, %v4536
        %v4539 = vsel %vm4537, %v4538, %v4536
        %v4540 = vclz %v4539
        %v4541 = vsub.s32 %v4540, 2
        %vm4542 = vcmp.gt.s32.totalorder 0, %v4541
        %v4543 = vsel %vm4542, 0, %v4541
        %v4544 = vsub.s32 32, %v4543
        %v4545 = vshll.u32 %v4536, %v4543
        %v4546 = vshrl.u32 %v4528, %v4544
        %v4547 = vor.u32 %v4545, %v4546
        %v4548 = vsub.s32 4294967266, %v4543
        %v4549 = vadd.s32 %v4548, 127
        %v4550 = vshll.u32 %v4549, 23
        %v4551 = vor.u32 4788187, %v4550
        %v4552 = vand.u32 2147483647, %v4551
        %v4554 = vcvt.s32.f32 %v4547
        %v4555 = vmul.f32 %v4554, %v4552
        %v4556 = vxor.u32 %v4555, 2147483648
        %v4557 = vsel %vm4474, %v4556, %v4555
        %v4558 = vsub.s32 4, %v4534
        %v4559 = vsel %vm4474, %v4558, %v4534
        %v4560 = vsel %vm4473, %v3843, %v4557
        %v4561 = vsel %vm4473, 0, %v4559
        %v4562 = vcosq.f32.pop %v4560
        %v4563 = vsinq.f32.pop %v4560
        %vm4564 = vweird.f32 %v3843
        %v4565 = vadd.s32 %v4561, 3
        %v4566 = vand.u32 %v4565, 3
        %vm4567 = vcmp.lt.s32.totalorder %v4566, 2
        %vm4568 = vcmp.eq.s32.totalorder %v4566, 0
        %v4569 = vxor.u32 %v4563, 2147483648
        %v4570 = vsel %vm4568, %v4562, %v4569
        %vm4571 = vcmp.eq.s32.totalorder %v4566, 2
        %v4572 = vxor.u32 %v4562, 2147483648
        %v4573 = vsel %vm4571, %v4572, %v4563
        %v4574 = vsel %vm4567, %v4570, %v4573
        %v4575 = vsel %vm4564, nan, %v4574
        %v4576 = vld [vmem:[%s3] sm:$0xf]
        %v4577 = vld [vmem:[%s3 + $0x4] sm:$0xf]
        %v4578 = vld [vmem:[%s3 + $0x8] sm:$0xf]
        %v4579 = vld [vmem:[%s3 + $0xc] sm:$0xf]
        %v4580 = vld [vmem:[%s3 + $0x10] sm:$0xf]
        %v4581 = vld [vmem:[%s3 + $0x14] sm:$0xf]
        %v4582 = vld [vmem:[%s3 + $0x18] sm:$0xf]
        %v4583 = vld [vmem:[%s3 + $0x1c] sm:$0xf]
        %v4584 = vld [vmem:[%s3 + $0x20] sm:$0xf]
        %v4585 = vld [vmem:[%s3 + $0x24] sm:$0xf]
        %v4586 = vld [vmem:[%s3 + $0x28] sm:$0xf]
        %v4587 = vld [vmem:[%s3 + $0x2c] sm:$0xf]
        %v4588 = vld [vmem:[%s3 + $0x30] sm:$0xf]
        %v4589 = vld [vmem:[%s3 + $0x34] sm:$0xf]
        %v4590 = vld [vmem:[%s3 + $0x38] sm:$0xf]
        %v4591 = vld [vmem:[%s3 + $0x3c] sm:$0xf]
        %v4592 = vld [vmem:[%s4] sm:$0x1]
        %v4593 = vpack.c.bf16 %v4055, %v3951
        %v4594 = vpack.c.bf16 %v4263, %v4159
        %v4595 = vpack.c.bf16 %v4471, %v4367
        %v4596 = vpack.c.bf16 %v4575, %v4575
        %v4598 = vlaneseq
        %v4599 = vshrl.u32 %v4598, 7
        %v4600 = vsub.s32 0, %v4599
        %v4601 = vrot.slane %v4592, %v4600
        %v4619 = vunpack.c.l.b16 %v4576
        %v4620 = vunpack.c.l.b16 %v4577
        %v4621 = vunpack.c.l.b16 %v4578
        %v4622 = vunpack.c.l.b16 %v4579
        %v4623 = vunpack.c.l.b16 %v4580
        %v4624 = vunpack.c.l.b16 %v4581
        %v4625 = vunpack.c.l.b16 %v4582
        %v4626 = vunpack.c.l.b16 %v4583
        %v4627 = vunpack.c.l.b16 %v4584
        %v4628 = vunpack.c.l.b16 %v4585
        %v4629 = vunpack.c.l.b16 %v4586
        %v4630 = vunpack.c.l.b16 %v4587
        %v4631 = vunpack.c.l.b16 %v4588
        %v4632 = vunpack.c.l.b16 %v4589
        %v4633 = vunpack.c.l.b16 %v4590
        %v4634 = vunpack.c.l.b16 %v4591
        %v4635 = vpack.c.b16 %v4620, %v4619
        %v4636 = vpack.c.b16 %v4622, %v4621
        %v4637 = vpack.c.b16 %v4624, %v4623
        %v4638 = vpack.c.b16 %v4626, %v4625
        %v4639 = vpack.c.b16 %v4628, %v4627
        %v4640 = vpack.c.b16 %v4630, %v4629
        %v4641 = vpack.c.b16 %v4632, %v4631
        %v4642 = vpack.c.b16 %v4634, %v4633
        %4651 = vmatprep.subr.bf16.mxu0 0
        %4652 = vmatpush1.bf16.msra.mxu0 %v4635
        %4653 = vmatprep.subr.bf16.mxu0 0
        %4654 = vmatpush1.bf16.msra.mxu0 %v4636
        %4655 = vmatprep.subr.bf16.mxu0 0
        %4656 = vmatpush1.bf16.msra.mxu0 %v4637
        %4657 = vmatprep.subr.bf16.mxu0 0
        %4658 = vmatpush1.bf16.msra.mxu0 %v4638
        %4659 = vmatprep.subr.bf16.mxu0 0
        %4660 = vmatpush1.bf16.msra.mxu0 %v4639
        %4661 = vmatprep.subr.bf16.mxu0 0
        %4662 = vmatpush1.bf16.msra.mxu0 %v4640
        %4663 = vmatprep.subr.bf16.mxu0 0
        %4664 = vmatpush1.bf16.msra.mxu0 %v4641
        %4665 = vmatprep.subr.bf16.mxu0 0
        %4666 = vmatpush1.bf16.msra.mxu0 %v4642
        %4667 = vmatprep.subr.bf16.mxu0 0
        %4668 = vmatpush1.bf16.msra.mxu0 0
        %4669 = vmatprep.subr.bf16.mxu0 0
        %4670 = vmatpush1.bf16.msra.mxu0 0
        %4671 = vmatprep.subr.bf16.mxu0 0
        %4672 = vmatpush1.bf16.msra.mxu0 0
        %4673 = vmatprep.subr.bf16.mxu0 0
        %4674 = vmatpush1.bf16.msra.mxu0 0
        %4675 = vmatprep.subr.bf16.mxu0 0
        %4676 = vmatpush1.bf16.msra.mxu0 0
        %4677 = vmatprep.subr.bf16.mxu0 0
        %4678 = vmatpush1.bf16.msra.mxu0 0
        %4679 = vmatprep.subr.bf16.mxu0 0
        %4680 = vmatpush1.bf16.msra.mxu0 0
        %4681 = vmatprep.subr.bf16.mxu0 0
        %4682 = vmatpush1.bf16.msra.mxu0 0
        %4683 = vmatprep.mubr.bf16.mxu0 0
        %4684 = vmatmul.mubr.bf16.gmra.mrb[0].mxu0 %v4593
        %v4685 = vpop.f32.mrb[0].mxu0
        %v4686 = vadd.f32 %v4601, %v4685
        %v4687 = vpop.f32.mrb[0].mxu0
        %v4688 = vpop.f32.mrb[0].mxu0
        %v4689 = vadd.f32 %v4601, %v4688
        %v4690 = vpop.f32.mrb[0].mxu0
        %4691 = vmatprep.mubr.bf16.mxu0 0
        %4692 = vmatmul.mubr.bf16.gmra.mrb[0].mxu0 %v4594
        %v4693 = vpop.f32.mrb[0].mxu0
        %v4694 = vadd.f32 %v4601, %v4693
        %v4695 = vpop.f32.mrb[0].mxu0
        %v4696 = vpop.f32.mrb[0].mxu0
        %v4697 = vadd.f32 %v4601, %v4696
        %v4698 = vpop.f32.mrb[0].mxu0
        %4699 = vmatprep.mubr.bf16.mxu0 0
        %4700 = vmatmul.mubr.bf16.gmra.mrb[0].mxu0 %v4595
        %v4701 = vpop.f32.mrb[0].mxu0
        %v4702 = vadd.f32 %v4601, %v4701
        %v4703 = vpop.f32.mrb[0].mxu0
        %v4704 = vpop.f32.mrb[0].mxu0
        %v4705 = vadd.f32 %v4601, %v4704
        %v4706 = vpop.f32.mrb[0].mxu0
        %4707 = vmatprep.mubr.bf16.mxu0 0
        %4708 = vmatmul.mubr.bf16.gmra.mrb[0].mxu0 %v4596
        %v4709 = vpop.f32.mrb[0].mxu0
        %v4710 = vadd.f32 %v4601, %v4709
        %v4711 = vpop.f32.mrb[0].mxu0
        %v4712 = vpop.f32.mrb[0].mxu0
        %v4713 = vpop.f32.mrb[0].mxu0
        %4714 = vdwg.mxu0
        %v4715 = vand.u32 2147483647, %v4686
        %vm4716 = vcmp.le.f32.partialorder %v4715, 0.7853982
        %vm4717 = vcmp.lt.s32.totalorder %v4686, 0
        %v4718 = vand.u32 %v4686, 2139095040
        %v4719 = vshrl.u32 %v4718, 23
        %v4720 = vsub.s32 %v4719, 127
        %v4721 = vand.u32 2147483647, %v4686
        %v4722 = vand.u32 %v4721, 8388607
        %v4723 = vor.u32 %v4722, 8388608
        %v4724 = vsub.s32 0, %v4723
        %v4725 = vadd.s32 %v4720, 1
        %vm4726 = vcmp.gt.s32.totalorder %v4725, 0
        %v4727 = vsel %vm4726, %v4725, 0
        %v4728 = vshrl.u32 %v4727, 5
        %v4729 = vand.u32 %v4727, 31
        %v4730 = vsub.s32 32, %v4729
        %v4731 = vshrl.u32 683565275, %v4730
        %v4732 = vshll.u32 683565275, %v4729
        %v4733 = vshrl.u32 2475754826, %v4730
        %v4734 = vor.u32 %v4732, %v4733
        %v4735 = vshll.u32 2475754826, %v4729
        %v4736 = vshrl.u32 2131351028, %v4730
        %v4737 = vor.u32 %v4735, %v4736
        %v4738 = vshll.u32 2131351028, %v4729
        %v4739 = vshrl.u32 2102212464, %v4730
        %v4740 = vor.u32 %v4738, %v4739
        %v4741 = vshll.u32 2102212464, %v4729
        %v4742 = vshrl.u32 920167782, %v4730
        %v4743 = vor.u32 %v4741, %v4742
        %v4744 = vshll.u32 920167782, %v4729
        %v4745 = vshrl.u32 1326507024, %v4730
        %v4746 = vor.u32 %v4744, %v4745
        %vm4747 = vcmp.lt.s32.totalorder %v4728, 1
        %vm4748 = vcmp.lt.s32.totalorder %v4728, 2
        %vm4749 = vcmp.lt.s32.totalorder %v4728, 3
        %vm4750 = vcmp.lt.s32.totalorder %v4728, 4
        %v4751 = vsel %vm4747, %v4731, %v4734
        %v4752 = vsel %vm4750, %v4740, 2102212464
        %v4753 = vsel %vm4749, %v4737, %v4752
        %v4754 = vsel %vm4748, %v4751, %v4753
        %v4755 = vsel %vm4747, %v4734, %v4737
        %v4756 = vsel %vm4750, %v4743, 920167782
        %v4757 = vsel %vm4749, %v4740, %v4756
        %v4758 = vsel %vm4748, %v4755, %v4757
        %v4759 = vsel %vm4747, %v4737, %v4740
        %v4760 = vsel %vm4750, %v4746, 1326507024
        %v4761 = vsel %vm4749, %v4743, %v4760
        %v4762 = vsel %vm4748, %v4759, %v4761
        %v4763 = vshll.u32 %v4723, 8
        %v4764 = vmul.u32.u64.compose %v4763, %v4762
        %v4765 = vextract.low.u32 %v4764
        %v4766 = vextract.high.u32 %v4764
        %v4767 = vmul.u32.u64.compose %v4763, %v4758
        %v4768 = vextract.low.u32 %v4767
        %v4769 = vextract.high.u32 %v4767
        %v4770 = vmul.u32 %v4763, %v4754
        %v4771 = vadd.s32 %v4766, %v4768
        %vm4772 = vc.u32 %v4766, %v4768
        %v4773 = vadd.s32 %v4769, 1
        %v4774 = vsel %vm4772, %v4773, %v4769
        %v4775 = vadd.s32 %v4770, %v4774
        %v4776 = vadd.s32 %v4775, 536870912
        %v4777 = vshrl.u32 %v4776, 30
        %v4778 = vshll.u32 %v4777, 30
        %v4779 = vsub.s32 %v4775, %v4778
        %vm4780 = vcmp.lt.s32.totalorder %v4779, 0
        %v4781 = vsub.s32 0, %v4779
        %v4782 = vsel %vm4780, %v4781, %v4779
        %v4783 = vclz %v4782
        %v4784 = vsub.s32 %v4783, 2
        %vm4785 = vcmp.gt.s32.totalorder 0, %v4784
        %v4786 = vsel %vm4785, 0, %v4784
        %v4787 = vsub.s32 32, %v4786
        %v4788 = vshll.u32 %v4779, %v4786
        %v4789 = vshrl.u32 %v4771, %v4787
        %v4790 = vor.u32 %v4788, %v4789
        %v4791 = vsub.s32 4294967266, %v4786
        %v4792 = vadd.s32 %v4791, 127
        %v4793 = vshll.u32 %v4792, 23
        %v4794 = vor.u32 4788187, %v4793
        %v4795 = vand.u32 2147483647, %v4794
        %v4797 = vcvt.s32.f32 %v4790
        %v4798 = vmul.f32 %v4797, %v4795
        %v4799 = vxor.u32 %v4798, 2147483648
        %v4800 = vsel %vm4717, %v4799, %v4798
        %v4801 = vsub.s32 4, %v4777
        %v4802 = vsel %vm4717, %v4801, %v4777
        %v4803 = vsel %vm4716, %v4686, %v4800
        %v4804 = vsel %vm4716, 0, %v4802
        %v4805 = vcosq.f32.pop %v4803
        %v4806 = vsinq.f32.pop %v4803
        %vm4807 = vweird.f32 %v4686
        %v4808 = vadd.s32 %v4804, 3
        %v4809 = vand.u32 %v4808, 3
        %vm4810 = vcmp.lt.s32.totalorder %v4809, 2
        %vm4811 = vcmp.eq.s32.totalorder %v4809, 0
        %v4812 = vxor.u32 %v4806, 2147483648
        %v4813 = vsel %vm4811, %v4805, %v4812
        %vm4814 = vcmp.eq.s32.totalorder %v4809, 2
        %v4815 = vxor.u32 %v4805, 2147483648
        %v4816 = vsel %vm4814, %v4815, %v4806
        %v4817 = vsel %vm4810, %v4813, %v4816
        %v4818 = vsel %vm4807, nan, %v4817
        %v4819 = vand.u32 2147483647, %v4689
        %vm4820 = vcmp.le.f32.partialorder %v4819, 0.7853982
        %vm4821 = vcmp.lt.s32.totalorder %v4689, 0
        %v4822 = vand.u32 %v4689, 2139095040
        %v4823 = vshrl.u32 %v4822, 23
        %v4824 = vsub.s32 %v4823, 127
        %v4825 = vand.u32 2147483647, %v4689
        %v4826 = vand.u32 %v4825, 8388607
        %v4827 = vor.u32 %v4826, 8388608
        %v4828 = vsub.s32 0, %v4827
        %v4829 = vadd.s32 %v4824, 1
        %vm4830 = vcmp.gt.s32.totalorder %v4829, 0
        %v4831 = vsel %vm4830, %v4829, 0
        %v4832 = vshrl.u32 %v4831, 5
        %v4833 = vand.u32 %v4831, 31
        %v4834 = vsub.s32 32, %v4833
        %v4835 = vshrl.u32 683565275, %v4834
        %v4836 = vshll.u32 683565275, %v4833
        %v4837 = vshrl.u32 2475754826, %v4834
        %v4838 = vor.u32 %v4836, %v4837
        %v4839 = vshll.u32 2475754826, %v4833
        %v4840 = vshrl.u32 2131351028, %v4834
        %v4841 = vor.u32 %v4839, %v4840
        %v4842 = vshll.u32 2131351028, %v4833
        %v4843 = vshrl.u32 2102212464, %v4834
        %v4844 = vor.u32 %v4842, %v4843
        %v4845 = vshll.u32 2102212464, %v4833
        %v4846 = vshrl.u32 920167782, %v4834
        %v4847 = vor.u32 %v4845, %v4846
        %v4848 = vshll.u32 920167782, %v4833
        %v4849 = vshrl.u32 1326507024, %v4834
        %v4850 = vor.u32 %v4848, %v4849
        %vm4851 = vcmp.lt.s32.totalorder %v4832, 1
        %vm4852 = vcmp.lt.s32.totalorder %v4832, 2
        %vm4853 = vcmp.lt.s32.totalorder %v4832, 3
        %vm4854 = vcmp.lt.s32.totalorder %v4832, 4
        %v4855 = vsel %vm4851, %v4835, %v4838
        %v4856 = vsel %vm4854, %v4844, 2102212464
        %v4857 = vsel %vm4853, %v4841, %v4856
        %v4858 = vsel %vm4852, %v4855, %v4857
        %v4859 = vsel %vm4851, %v4838, %v4841
        %v4860 = vsel %vm4854, %v4847, 920167782
        %v4861 = vsel %vm4853, %v4844, %v4860
        %v4862 = vsel %vm4852, %v4859, %v4861
        %v4863 = vsel %vm4851, %v4841, %v4844
        %v4864 = vsel %vm4854, %v4850, 1326507024
        %v4865 = vsel %vm4853, %v4847, %v4864
        %v4866 = vsel %vm4852, %v4863, %v4865
        %v4867 = vshll.u32 %v4827, 8
        %v4868 = vmul.u32.u64.compose %v4867, %v4866
        %v4869 = vextract.low.u32 %v4868
        %v4870 = vextract.high.u32 %v4868
        %v4871 = vmul.u32.u64.compose %v4867, %v4862
        %v4872 = vextract.low.u32 %v4871
        %v4873 = vextract.high.u32 %v4871
        %v4874 = vmul.u32 %v4867, %v4858
        %v4875 = vadd.s32 %v4870, %v4872
        %vm4876 = vc.u32 %v4870, %v4872
        %v4877 = vadd.s32 %v4873, 1
        %v4878 = vsel %vm4876, %v4877, %v4873
        %v4879 = vadd.s32 %v4874, %v4878
        %v4880 = vadd.s32 %v4879, 536870912
        %v4881 = vshrl.u32 %v4880, 30
        %v4882 = vshll.u32 %v4881, 30
        %v4883 = vsub.s32 %v4879, %v4882
        %vm4884 = vcmp.lt.s32.totalorder %v4883, 0
        %v4885 = vsub.s32 0, %v4883
        %v4886 = vsel %vm4884, %v4885, %v4883
        %v4887 = vclz %v4886
        %v4888 = vsub.s32 %v4887, 2
        %vm4889 = vcmp.gt.s32.totalorder 0, %v4888
        %v4890 = vsel %vm4889, 0, %v4888
        %v4891 = vsub.s32 32, %v4890
        %v4892 = vshll.u32 %v4883, %v4890
        %v4893 = vshrl.u32 %v4875, %v4891
        %v4894 = vor.u32 %v4892, %v4893
        %v4895 = vsub.s32 4294967266, %v4890
        %v4896 = vadd.s32 %v4895, 127
        %v4897 = vshll.u32 %v4896, 23
        %v4898 = vor.u32 4788187, %v4897
        %v4899 = vand.u32 2147483647, %v4898
        %v4901 = vcvt.s32.f32 %v4894
        %v4902 = vmul.f32 %v4901, %v4899
        %v4903 = vxor.u32 %v4902, 2147483648
        %v4904 = vsel %vm4821, %v4903, %v4902
        %v4905 = vsub.s32 4, %v4881
        %v4906 = vsel %vm4821, %v4905, %v4881
        %v4907 = vsel %vm4820, %v4689, %v4904
        %v4908 = vsel %vm4820, 0, %v4906
        %v4909 = vcosq.f32.pop %v4907
        %v4910 = vsinq.f32.pop %v4907
        %vm4911 = vweird.f32 %v4689
        %v4912 = vadd.s32 %v4908, 3
        %v4913 = vand.u32 %v4912, 3
        %vm4914 = vcmp.lt.s32.totalorder %v4913, 2
        %vm4915 = vcmp.eq.s32.totalorder %v4913, 0
        %v4916 = vxor.u32 %v4910, 2147483648
        %v4917 = vsel %vm4915, %v4909, %v4916
        %vm4918 = vcmp.eq.s32.totalorder %v4913, 2
        %v4919 = vxor.u32 %v4909, 2147483648
        %v4920 = vsel %vm4918, %v4919, %v4910
        %v4921 = vsel %vm4914, %v4917, %v4920
        %v4922 = vsel %vm4911, nan, %v4921
        %v4923 = vand.u32 2147483647, %v4694
        %vm4924 = vcmp.le.f32.partialorder %v4923, 0.7853982
        %vm4925 = vcmp.lt.s32.totalorder %v4694, 0
        %v4926 = vand.u32 %v4694, 2139095040
        %v4927 = vshrl.u32 %v4926, 23
        %v4928 = vsub.s32 %v4927, 127
        %v4929 = vand.u32 2147483647, %v4694
        %v4930 = vand.u32 %v4929, 8388607
        %v4931 = vor.u32 %v4930, 8388608
        %v4932 = vsub.s32 0, %v4931
        %v4933 = vadd.s32 %v4928, 1
        %vm4934 = vcmp.gt.s32.totalorder %v4933, 0
        %v4935 = vsel %vm4934, %v4933, 0
        %v4936 = vshrl.u32 %v4935, 5
        %v4937 = vand.u32 %v4935, 31
        %v4938 = vsub.s32 32, %v4937
        %v4939 = vshrl.u32 683565275, %v4938
        %v4940 = vshll.u32 683565275, %v4937
        %v4941 = vshrl.u32 2475754826, %v4938
        %v4942 = vor.u32 %v4940, %v4941
        %v4943 = vshll.u32 2475754826, %v4937
        %v4944 = vshrl.u32 2131351028, %v4938
        %v4945 = vor.u32 %v4943, %v4944
        %v4946 = vshll.u32 2131351028, %v4937
        %v4947 = vshrl.u32 2102212464, %v4938
        %v4948 = vor.u32 %v4946, %v4947
        %v4949 = vshll.u32 2102212464, %v4937
        %v4950 = vshrl.u32 920167782, %v4938
        %v4951 = vor.u32 %v4949, %v4950
        %v4952 = vshll.u32 920167782, %v4937
        %v4953 = vshrl.u32 1326507024, %v4938
        %v4954 = vor.u32 %v4952, %v4953
        %vm4955 = vcmp.lt.s32.totalorder %v4936, 1
        %vm4956 = vcmp.lt.s32.totalorder %v4936, 2
        %vm4957 = vcmp.lt.s32.totalorder %v4936, 3
        %vm4958 = vcmp.lt.s32.totalorder %v4936, 4
        %v4959 = vsel %vm4955, %v4939, %v4942
        %v4960 = vsel %vm4958, %v4948, 2102212464
        %v4961 = vsel %vm4957, %v4945, %v4960
        %v4962 = vsel %vm4956, %v4959, %v4961
        %v4963 = vsel %vm4955, %v4942, %v4945
        %v4964 = vsel %vm4958, %v4951, 920167782
        %v4965 = vsel %vm4957, %v4948, %v4964
        %v4966 = vsel %vm4956, %v4963, %v4965
        %v4967 = vsel %vm4955, %v4945, %v4948
        %v4968 = vsel %vm4958, %v4954, 1326507024
        %v4969 = vsel %vm4957, %v4951, %v4968
        %v4970 = vsel %vm4956, %v4967, %v4969
        %v4971 = vshll.u32 %v4931, 8
        %v4972 = vmul.u32.u64.compose %v4971, %v4970
        %v4973 = vextract.low.u32 %v4972
        %v4974 = vextract.high.u32 %v4972
        %v4975 = vmul.u32.u64.compose %v4971, %v4966
        %v4976 = vextract.low.u32 %v4975
        %v4977 = vextract.high.u32 %v4975
        %v4978 = vmul.u32 %v4971, %v4962
        %v4979 = vadd.s32 %v4974, %v4976
        %vm4980 = vc.u32 %v4974, %v4976
        %v4981 = vadd.s32 %v4977, 1
        %v4982 = vsel %vm4980, %v4981, %v4977
        %v4983 = vadd.s32 %v4978, %v4982
        %v4984 = vadd.s32 %v4983, 536870912
        %v4985 = vshrl.u32 %v4984, 30
        %v4986 = vshll.u32 %v4985, 30
        %v4987 = vsub.s32 %v4983, %v4986
        %vm4988 = vcmp.lt.s32.totalorder %v4987, 0
        %v4989 = vsub.s32 0, %v4987
        %v4990 = vsel %vm4988, %v4989, %v4987
        %v4991 = vclz %v4990
        %v4992 = vsub.s32 %v4991, 2
        %vm4993 = vcmp.gt.s32.totalorder 0, %v4992
        %v4994 = vsel %vm4993, 0, %v4992
        %v4995 = vsub.s32 32, %v4994
        %v4996 = vshll.u32 %v4987, %v4994
        %v4997 = vshrl.u32 %v4979, %v4995
        %v4998 = vor.u32 %v4996, %v4997
        %v4999 = vsub.s32 4294967266, %v4994
        %v5000 = vadd.s32 %v4999, 127
        %v5001 = vshll.u32 %v5000, 23
        %v5002 = vor.u32 4788187, %v5001
        %v5003 = vand.u32 2147483647, %v5002
        %v5005 = vcvt.s32.f32 %v4998
        %v5006 = vmul.f32 %v5005, %v5003
        %v5007 = vxor.u32 %v5006, 2147483648
        %v5008 = vsel %vm4925, %v5007, %v5006
        %v5009 = vsub.s32 4, %v4985
        %v5010 = vsel %vm4925, %v5009, %v4985
        %v5011 = vsel %vm4924, %v4694, %v5008
        %v5012 = vsel %vm4924, 0, %v5010
        %v5013 = vcosq.f32.pop %v5011
        %v5014 = vsinq.f32.pop %v5011
        %vm5015 = vweird.f32 %v4694
        %v5016 = vadd.s32 %v5012, 3
        %v5017 = vand.u32 %v5016, 3
        %vm5018 = vcmp.lt.s32.totalorder %v5017, 2
        %vm5019 = vcmp.eq.s32.totalorder %v5017, 0
        %v5020 = vxor.u32 %v5014, 2147483648
        %v5021 = vsel %vm5019, %v5013, %v5020
        %vm5022 = vcmp.eq.s32.totalorder %v5017, 2
        %v5023 = vxor.u32 %v5013, 2147483648
        %v5024 = vsel %vm5022, %v5023, %v5014
        %v5025 = vsel %vm5018, %v5021, %v5024
        %v5026 = vsel %vm5015, nan, %v5025
        %v5027 = vand.u32 2147483647, %v4697
        %vm5028 = vcmp.le.f32.partialorder %v5027, 0.7853982
        %vm5029 = vcmp.lt.s32.totalorder %v4697, 0
        %v5030 = vand.u32 %v4697, 2139095040
        %v5031 = vshrl.u32 %v5030, 23
        %v5032 = vsub.s32 %v5031, 127
        %v5033 = vand.u32 2147483647, %v4697
        %v5034 = vand.u32 %v5033, 8388607
        %v5035 = vor.u32 %v5034, 8388608
        %v5036 = vsub.s32 0, %v5035
        %v5037 = vadd.s32 %v5032, 1
        %vm5038 = vcmp.gt.s32.totalorder %v5037, 0
        %v5039 = vsel %vm5038, %v5037, 0
        %v5040 = vshrl.u32 %v5039, 5
        %v5041 = vand.u32 %v5039, 31
        %v5042 = vsub.s32 32, %v5041
        %v5043 = vshrl.u32 683565275, %v5042
        %v5044 = vshll.u32 683565275, %v5041
        %v5045 = vshrl.u32 2475754826, %v5042
        %v5046 = vor.u32 %v5044, %v5045
        %v5047 = vshll.u32 2475754826, %v5041
        %v5048 = vshrl.u32 2131351028, %v5042
        %v5049 = vor.u32 %v5047, %v5048
        %v5050 = vshll.u32 2131351028, %v5041
        %v5051 = vshrl.u32 2102212464, %v5042
        %v5052 = vor.u32 %v5050, %v5051
        %v5053 = vshll.u32 2102212464, %v5041
        %v5054 = vshrl.u32 920167782, %v5042
        %v5055 = vor.u32 %v5053, %v5054
        %v5056 = vshll.u32 920167782, %v5041
        %v5057 = vshrl.u32 1326507024, %v5042
        %v5058 = vor.u32 %v5056, %v5057
        %vm5059 = vcmp.lt.s32.totalorder %v5040, 1
        %vm5060 = vcmp.lt.s32.totalorder %v5040, 2
        %vm5061 = vcmp.lt.s32.totalorder %v5040, 3
        %vm5062 = vcmp.lt.s32.totalorder %v5040, 4
        %v5063 = vsel %vm5059, %v5043, %v5046
        %v5064 = vsel %vm5062, %v5052, 2102212464
        %v5065 = vsel %vm5061, %v5049, %v5064
        %v5066 = vsel %vm5060, %v5063, %v5065
        %v5067 = vsel %vm5059, %v5046, %v5049
        %v5068 = vsel %vm5062, %v5055, 920167782
        %v5069 = vsel %vm5061, %v5052, %v5068
        %v5070 = vsel %vm5060, %v5067, %v5069
        %v5071 = vsel %vm5059, %v5049, %v5052
        %v5072 = vsel %vm5062, %v5058, 1326507024
        %v5073 = vsel %vm5061, %v5055, %v5072
        %v5074 = vsel %vm5060, %v5071, %v5073
        %v5075 = vshll.u32 %v5035, 8
        %v5076 = vmul.u32.u64.compose %v5075, %v5074
        %v5077 = vextract.low.u32 %v5076
        %v5078 = vextract.high.u32 %v5076
        %v5079 = vmul.u32.u64.compose %v5075, %v5070
        %v5080 = vextract.low.u32 %v5079
        %v5081 = vextract.high.u32 %v5079
        %v5082 = vmul.u32 %v5075, %v5066
        %v5083 = vadd.s32 %v5078, %v5080
        %vm5084 = vc.u32 %v5078, %v5080
        %v5085 = vadd.s32 %v5081, 1
        %v5086 = vsel %vm5084, %v5085, %v5081
        %v5087 = vadd.s32 %v5082, %v5086
        %v5088 = vadd.s32 %v5087, 536870912
        %v5089 = vshrl.u32 %v5088, 30
        %v5090 = vshll.u32 %v5089, 30
        %v5091 = vsub.s32 %v5087, %v5090
        %vm5092 = vcmp.lt.s32.totalorder %v5091, 0
        %v5093 = vsub.s32 0, %v5091
        %v5094 = vsel %vm5092, %v5093, %v5091
        %v5095 = vclz %v5094
        %v5096 = vsub.s32 %v5095, 2
        %vm5097 = vcmp.gt.s32.totalorder 0, %v5096
        %v5098 = vsel %vm5097, 0, %v5096
        %v5099 = vsub.s32 32, %v5098
        %v5100 = vshll.u32 %v5091, %v5098
        %v5101 = vshrl.u32 %v5083, %v5099
        %v5102 = vor.u32 %v5100, %v5101
        %v5103 = vsub.s32 4294967266, %v5098
        %v5104 = vadd.s32 %v5103, 127
        %v5105 = vshll.u32 %v5104, 23
        %v5106 = vor.u32 4788187, %v5105
        %v5107 = vand.u32 2147483647, %v5106
        %v5109 = vcvt.s32.f32 %v5102
        %v5110 = vmul.f32 %v5109, %v5107
        %v5111 = vxor.u32 %v5110, 2147483648
        %v5112 = vsel %vm5029, %v5111, %v5110
        %v5113 = vsub.s32 4, %v5089
        %v5114 = vsel %vm5029, %v5113, %v5089
        %v5115 = vsel %vm5028, %v4697, %v5112
        %v5116 = vsel %vm5028, 0, %v5114
        %v5117 = vcosq.f32.pop %v5115
        %v5118 = vsinq.f32.pop %v5115
        %vm5119 = vweird.f32 %v4697
        %v5120 = vadd.s32 %v5116, 3
        %v5121 = vand.u32 %v5120, 3
        %vm5122 = vcmp.lt.s32.totalorder %v5121, 2
        %vm5123 = vcmp.eq.s32.totalorder %v5121, 0
        %v5124 = vxor.u32 %v5118, 2147483648
        %v5125 = vsel %vm5123, %v5117, %v5124
        %vm5126 = vcmp.eq.s32.totalorder %v5121, 2
        %v5127 = vxor.u32 %v5117, 2147483648
        %v5128 = vsel %vm5126, %v5127, %v5118
        %v5129 = vsel %vm5122, %v5125, %v5128
        %v5130 = vsel %vm5119, nan, %v5129
        %v5131 = vand.u32 2147483647, %v4702
        %vm5132 = vcmp.le.f32.partialorder %v5131, 0.7853982
        %vm5133 = vcmp.lt.s32.totalorder %v4702, 0
        %v5134 = vand.u32 %v4702, 2139095040
        %v5135 = vshrl.u32 %v5134, 23
        %v5136 = vsub.s32 %v5135, 127
        %v5137 = vand.u32 2147483647, %v4702
        %v5138 = vand.u32 %v5137, 8388607
        %v5139 = vor.u32 %v5138, 8388608
        %v5140 = vsub.s32 0, %v5139
        %v5141 = vadd.s32 %v5136, 1
        %vm5142 = vcmp.gt.s32.totalorder %v5141, 0
        %v5143 = vsel %vm5142, %v5141, 0
        %v5144 = vshrl.u32 %v5143, 5
        %v5145 = vand.u32 %v5143, 31
        %v5146 = vsub.s32 32, %v5145
        %v5147 = vshrl.u32 683565275, %v5146
        %v5148 = vshll.u32 683565275, %v5145
        %v5149 = vshrl.u32 2475754826, %v5146
        %v5150 = vor.u32 %v5148, %v5149
        %v5151 = vshll.u32 2475754826, %v5145
        %v5152 = vshrl.u32 2131351028, %v5146
        %v5153 = vor.u32 %v5151, %v5152
        %v5154 = vshll.u32 2131351028, %v5145
        %v5155 = vshrl.u32 2102212464, %v5146
        %v5156 = vor.u32 %v5154, %v5155
        %v5157 = vshll.u32 2102212464, %v5145
        %v5158 = vshrl.u32 920167782, %v5146
        %v5159 = vor.u32 %v5157, %v5158
        %v5160 = vshll.u32 920167782, %v5145
        %v5161 = vshrl.u32 1326507024, %v5146
        %v5162 = vor.u32 %v5160, %v5161
        %vm5163 = vcmp.lt.s32.totalorder %v5144, 1
        %vm5164 = vcmp.lt.s32.totalorder %v5144, 2
        %vm5165 = vcmp.lt.s32.totalorder %v5144, 3
        %vm5166 = vcmp.lt.s32.totalorder %v5144, 4
        %v5167 = vsel %vm5163, %v5147, %v5150
        %v5168 = vsel %vm5166, %v5156, 2102212464
        %v5169 = vsel %vm5165, %v5153, %v5168
        %v5170 = vsel %vm5164, %v5167, %v5169
        %v5171 = vsel %vm5163, %v5150, %v5153
        %v5172 = vsel %vm5166, %v5159, 920167782
        %v5173 = vsel %vm5165, %v5156, %v5172
        %v5174 = vsel %vm5164, %v5171, %v5173
        %v5175 = vsel %vm5163, %v5153, %v5156
        %v5176 = vsel %vm5166, %v5162, 1326507024
        %v5177 = vsel %vm5165, %v5159, %v5176
        %v5178 = vsel %vm5164, %v5175, %v5177
        %v5179 = vshll.u32 %v5139, 8
        %v5180 = vmul.u32.u64.compose %v5179, %v5178
        %v5181 = vextract.low.u32 %v5180
        %v5182 = vextract.high.u32 %v5180
        %v5183 = vmul.u32.u64.compose %v5179, %v5174
        %v5184 = vextract.low.u32 %v5183
        %v5185 = vextract.high.u32 %v5183
        %v5186 = vmul.u32 %v5179, %v5170
        %v5187 = vadd.s32 %v5182, %v5184
        %vm5188 = vc.u32 %v5182, %v5184
        %v5189 = vadd.s32 %v5185, 1
        %v5190 = vsel %vm5188, %v5189, %v5185
        %v5191 = vadd.s32 %v5186, %v5190
        %v5192 = vadd.s32 %v5191, 536870912
        %v5193 = vshrl.u32 %v5192, 30
        %v5194 = vshll.u32 %v5193, 30
        %v5195 = vsub.s32 %v5191, %v5194
        %vm5196 = vcmp.lt.s32.totalorder %v5195, 0
        %v5197 = vsub.s32 0, %v5195
        %v5198 = vsel %vm5196, %v5197, %v5195
        %v5199 = vclz %v5198
        %v5200 = vsub.s32 %v5199, 2
        %vm5201 = vcmp.gt.s32.totalorder 0, %v5200
        %v5202 = vsel %vm5201, 0, %v5200
        %v5203 = vsub.s32 32, %v5202
        %v5204 = vshll.u32 %v5195, %v5202
        %v5205 = vshrl.u32 %v5187, %v5203
        %v5206 = vor.u32 %v5204, %v5205
        %v5207 = vsub.s32 4294967266, %v5202
        %v5208 = vadd.s32 %v5207, 127
        %v5209 = vshll.u32 %v5208, 23
        %v5210 = vor.u32 4788187, %v5209
        %v5211 = vand.u32 2147483647, %v5210
        %v5213 = vcvt.s32.f32 %v5206
        %v5214 = vmul.f32 %v5213, %v5211
        %v5215 = vxor.u32 %v5214, 2147483648
        %v5216 = vsel %vm5133, %v5215, %v5214
        %v5217 = vsub.s32 4, %v5193
        %v5218 = vsel %vm5133, %v5217, %v5193
        %v5219 = vsel %vm5132, %v4702, %v5216
        %v5220 = vsel %vm5132, 0, %v5218
        %v5221 = vcosq.f32.pop %v5219
        %v5222 = vsinq.f32.pop %v5219
        %vm5223 = vweird.f32 %v4702
        %v5224 = vadd.s32 %v5220, 3
        %v5225 = vand.u32 %v5224, 3
        %vm5226 = vcmp.lt.s32.totalorder %v5225, 2
        %vm5227 = vcmp.eq.s32.totalorder %v5225, 0
        %v5228 = vxor.u32 %v5222, 2147483648
        %v5229 = vsel %vm5227, %v5221, %v5228
        %vm5230 = vcmp.eq.s32.totalorder %v5225, 2
        %v5231 = vxor.u32 %v5221, 2147483648
        %v5232 = vsel %vm5230, %v5231, %v5222
        %v5233 = vsel %vm5226, %v5229, %v5232
        %v5234 = vsel %vm5223, nan, %v5233
        %v5235 = vand.u32 2147483647, %v4705
        %vm5236 = vcmp.le.f32.partialorder %v5235, 0.7853982
        %vm5237 = vcmp.lt.s32.totalorder %v4705, 0
        %v5238 = vand.u32 %v4705, 2139095040
        %v5239 = vshrl.u32 %v5238, 23
        %v5240 = vsub.s32 %v5239, 127
        %v5241 = vand.u32 2147483647, %v4705
        %v5242 = vand.u32 %v5241, 8388607
        %v5243 = vor.u32 %v5242, 8388608
        %v5244 = vsub.s32 0, %v5243
        %v5245 = vadd.s32 %v5240, 1
        %vm5246 = vcmp.gt.s32.totalorder %v5245, 0
        %v5247 = vsel %vm5246, %v5245, 0
        %v5248 = vshrl.u32 %v5247, 5
        %v5249 = vand.u32 %v5247, 31
        %v5250 = vsub.s32 32, %v5249
        %v5251 = vshrl.u32 683565275, %v5250
        %v5252 = vshll.u32 683565275, %v5249
        %v5253 = vshrl.u32 2475754826, %v5250
        %v5254 = vor.u32 %v5252, %v5253
        %v5255 = vshll.u32 2475754826, %v5249
        %v5256 = vshrl.u32 2131351028, %v5250
        %v5257 = vor.u32 %v5255, %v5256
        %v5258 = vshll.u32 2131351028, %v5249
        %v5259 = vshrl.u32 2102212464, %v5250
        %v5260 = vor.u32 %v5258, %v5259
        %v5261 = vshll.u32 2102212464, %v5249
        %v5262 = vshrl.u32 920167782, %v5250
        %v5263 = vor.u32 %v5261, %v5262
        %v5264 = vshll.u32 920167782, %v5249
        %v5265 = vshrl.u32 1326507024, %v5250
        %v5266 = vor.u32 %v5264, %v5265
        %vm5267 = vcmp.lt.s32.totalorder %v5248, 1
        %vm5268 = vcmp.lt.s32.totalorder %v5248, 2
        %vm5269 = vcmp.lt.s32.totalorder %v5248, 3
        %vm5270 = vcmp.lt.s32.totalorder %v5248, 4
        %v5271 = vsel %vm5267, %v5251, %v5254
        %v5272 = vsel %vm5270, %v5260, 2102212464
        %v5273 = vsel %vm5269, %v5257, %v5272
        %v5274 = vsel %vm5268, %v5271, %v5273
        %v5275 = vsel %vm5267, %v5254, %v5257
        %v5276 = vsel %vm5270, %v5263, 920167782
        %v5277 = vsel %vm5269, %v5260, %v5276
        %v5278 = vsel %vm5268, %v5275, %v5277
        %v5279 = vsel %vm5267, %v5257, %v5260
        %v5280 = vsel %vm5270, %v5266, 1326507024
        %v5281 = vsel %vm5269, %v5263, %v5280
        %v5282 = vsel %vm5268, %v5279, %v5281
        %v5283 = vshll.u32 %v5243, 8
        %v5284 = vmul.u32.u64.compose %v5283, %v5282
        %v5285 = vextract.low.u32 %v5284
        %v5286 = vextract.high.u32 %v5284
        %v5287 = vmul.u32.u64.compose %v5283, %v5278
        %v5288 = vextract.low.u32 %v5287
        %v5289 = vextract.high.u32 %v5287
        %v5290 = vmul.u32 %v5283, %v5274
        %v5291 = vadd.s32 %v5286, %v5288
        %vm5292 = vc.u32 %v5286, %v5288
        %v5293 = vadd.s32 %v5289, 1
        %v5294 = vsel %vm5292, %v5293, %v5289
        %v5295 = vadd.s32 %v5290, %v5294
        %v5296 = vadd.s32 %v5295, 536870912
        %v5297 = vshrl.u32 %v5296, 30
        %v5298 = vshll.u32 %v5297, 30
        %v5299 = vsub.s32 %v5295, %v5298
        %vm5300 = vcmp.lt.s32.totalorder %v5299, 0
        %v5301 = vsub.s32 0, %v5299
        %v5302 = vsel %vm5300, %v5301, %v5299
        %v5303 = vclz %v5302
        %v5304 = vsub.s32 %v5303, 2
        %vm5305 = vcmp.gt.s32.totalorder 0, %v5304
        %v5306 = vsel %vm5305, 0, %v5304
        %v5307 = vsub.s32 32, %v5306
        %v5308 = vshll.u32 %v5299, %v5306
        %v5309 = vshrl.u32 %v5291, %v5307
        %v5310 = vor.u32 %v5308, %v5309
        %v5311 = vsub.s32 4294967266, %v5306
        %v5312 = vadd.s32 %v5311, 127
        %v5313 = vshll.u32 %v5312, 23
        %v5314 = vor.u32 4788187, %v5313
        %v5315 = vand.u32 2147483647, %v5314
        %v5317 = vcvt.s32.f32 %v5310
        %v5318 = vmul.f32 %v5317, %v5315
        %v5319 = vxor.u32 %v5318, 2147483648
        %v5320 = vsel %vm5237, %v5319, %v5318
        %v5321 = vsub.s32 4, %v5297
        %v5322 = vsel %vm5237, %v5321, %v5297
        %v5323 = vsel %vm5236, %v4705, %v5320
        %v5324 = vsel %vm5236, 0, %v5322
        %v5325 = vcosq.f32.pop %v5323
        %v5326 = vsinq.f32.pop %v5323
        %vm5327 = vweird.f32 %v4705
        %v5328 = vadd.s32 %v5324, 3
        %v5329 = vand.u32 %v5328, 3
        %vm5330 = vcmp.lt.s32.totalorder %v5329, 2
        %vm5331 = vcmp.eq.s32.totalorder %v5329, 0
        %v5332 = vxor.u32 %v5326, 2147483648
        %v5333 = vsel %vm5331, %v5325, %v5332
        %vm5334 = vcmp.eq.s32.totalorder %v5329, 2
        %v5335 = vxor.u32 %v5325, 2147483648
        %v5336 = vsel %vm5334, %v5335, %v5326
        %v5337 = vsel %vm5330, %v5333, %v5336
        %v5338 = vsel %vm5327, nan, %v5337
        %v5339 = vand.u32 2147483647, %v4710
        %vm5340 = vcmp.le.f32.partialorder %v5339, 0.7853982
        %vm5341 = vcmp.lt.s32.totalorder %v4710, 0
        %v5342 = vand.u32 %v4710, 2139095040
        %v5343 = vshrl.u32 %v5342, 23
        %v5344 = vsub.s32 %v5343, 127
        %v5345 = vand.u32 2147483647, %v4710
        %v5346 = vand.u32 %v5345, 8388607
        %v5347 = vor.u32 %v5346, 8388608
        %v5348 = vsub.s32 0, %v5347
        %v5349 = vadd.s32 %v5344, 1
        %vm5350 = vcmp.gt.s32.totalorder %v5349, 0
        %v5351 = vsel %vm5350, %v5349, 0
        %v5352 = vshrl.u32 %v5351, 5
        %v5353 = vand.u32 %v5351, 31
        %v5354 = vsub.s32 32, %v5353
        %v5355 = vshrl.u32 683565275, %v5354
        %v5356 = vshll.u32 683565275, %v5353
        %v5357 = vshrl.u32 2475754826, %v5354
        %v5358 = vor.u32 %v5356, %v5357
        %v5359 = vshll.u32 2475754826, %v5353
        %v5360 = vshrl.u32 2131351028, %v5354
        %v5361 = vor.u32 %v5359, %v5360
        %v5362 = vshll.u32 2131351028, %v5353
        %v5363 = vshrl.u32 2102212464, %v5354
        %v5364 = vor.u32 %v5362, %v5363
        %v5365 = vshll.u32 2102212464, %v5353
        %v5366 = vshrl.u32 920167782, %v5354
        %v5367 = vor.u32 %v5365, %v5366
        %v5368 = vshll.u32 920167782, %v5353
        %v5369 = vshrl.u32 1326507024, %v5354
        %v5370 = vor.u32 %v5368, %v5369
        %vm5371 = vcmp.lt.s32.totalorder %v5352, 1
        %vm5372 = vcmp.lt.s32.totalorder %v5352, 2
        %vm5373 = vcmp.lt.s32.totalorder %v5352, 3
        %vm5374 = vcmp.lt.s32.totalorder %v5352, 4
        %v5375 = vsel %vm5371, %v5355, %v5358
        %v5376 = vsel %vm5374, %v5364, 2102212464
        %v5377 = vsel %vm5373, %v5361, %v5376
        %v5378 = vsel %vm5372, %v5375, %v5377
        %v5379 = vsel %vm5371, %v5358, %v5361
        %v5380 = vsel %vm5374, %v5367, 920167782
        %v5381 = vsel %vm5373, %v5364, %v5380
        %v5382 = vsel %vm5372, %v5379, %v5381
        %v5383 = vsel %vm5371, %v5361, %v5364
        %v5384 = vsel %vm5374, %v5370, 1326507024
        %v5385 = vsel %vm5373, %v5367, %v5384
        %v5386 = vsel %vm5372, %v5383, %v5385
        %v5387 = vshll.u32 %v5347, 8
        %v5388 = vmul.u32.u64.compose %v5387, %v5386
        %v5389 = vextract.low.u32 %v5388
        %v5390 = vextract.high.u32 %v5388
        %v5391 = vmul.u32.u64.compose %v5387, %v5382
        %v5392 = vextract.low.u32 %v5391
        %v5393 = vextract.high.u32 %v5391
        %v5394 = vmul.u32 %v5387, %v5378
        %v5395 = vadd.s32 %v5390, %v5392
        %vm5396 = vc.u32 %v5390, %v5392
        %v5397 = vadd.s32 %v5393, 1
        %v5398 = vsel %vm5396, %v5397, %v5393
        %v5399 = vadd.s32 %v5394, %v5398
        %v5400 = vadd.s32 %v5399, 536870912
        %v5401 = vshrl.u32 %v5400, 30
        %v5402 = vshll.u32 %v5401, 30
        %v5403 = vsub.s32 %v5399, %v5402
        %vm5404 = vcmp.lt.s32.totalorder %v5403, 0
        %v5405 = vsub.s32 0, %v5403
        %v5406 = vsel %vm5404, %v5405, %v5403
        %v5407 = vclz %v5406
        %v5408 = vsub.s32 %v5407, 2
        %vm5409 = vcmp.gt.s32.totalorder 0, %v5408
        %v5410 = vsel %vm5409, 0, %v5408
        %v5411 = vsub.s32 32, %v5410
        %v5412 = vshll.u32 %v5403, %v5410
        %v5413 = vshrl.u32 %v5395, %v5411
        %v5414 = vor.u32 %v5412, %v5413
        %v5415 = vsub.s32 4294967266, %v5410
        %v5416 = vadd.s32 %v5415, 127
        %v5417 = vshll.u32 %v5416, 23
        %v5418 = vor.u32 4788187, %v5417
        %v5419 = vand.u32 2147483647, %v5418
        %v5421 = vcvt.s32.f32 %v5414
        %v5422 = vmul.f32 %v5421, %v5419
        %v5423 = vxor.u32 %v5422, 2147483648
        %v5424 = vsel %vm5341, %v5423, %v5422
        %v5425 = vsub.s32 4, %v5401
        %v5426 = vsel %vm5341, %v5425, %v5401
        %v5427 = vsel %vm5340, %v4710, %v5424
        %v5428 = vsel %vm5340, 0, %v5426
        %v5429 = vcosq.f32.pop %v5427
        %v5430 = vsinq.f32.pop %v5427
        %vm5431 = vweird.f32 %v4710
        %v5432 = vadd.s32 %v5428, 3
        %v5433 = vand.u32 %v5432, 3
        %vm5434 = vcmp.lt.s32.totalorder %v5433, 2
        %vm5435 = vcmp.eq.s32.totalorder %v5433, 0
        %v5436 = vxor.u32 %v5430, 2147483648
        %v5437 = vsel %vm5435, %v5429, %v5436
        %vm5438 = vcmp.eq.s32.totalorder %v5433, 2
        %v5439 = vxor.u32 %v5429, 2147483648
        %v5440 = vsel %vm5438, %v5439, %v5430
        %v5441 = vsel %vm5434, %v5437, %v5440
        %v5442 = vsel %vm5431, nan, %v5441
        %v5443 = vld [vmem:[#allocation2] sm:$0xff]
        %v5444 = vld [vmem:[#allocation2 + $0x8] sm:$0xff]
        %v5445 = vld [vmem:[#allocation2 + $0x10] sm:$0xff]
        %v5446 = vld [vmem:[#allocation2 + $0x18] sm:$0xff]
        %v5447 = vld [vmem:[#allocation2 + $0x20] sm:$0xff]
        %v5448 = vld [vmem:[#allocation2 + $0x28] sm:$0xff]
        %v5449 = vld [vmem:[#allocation2 + $0x30] sm:$0xff]
        %v5450 = vld [vmem:[#allocation2 + $0x38] sm:$0xff]
        %v5451 = vld [vmem:[#allocation2 + $0x40] sm:$0xff]
        %v5452 = vld [vmem:[#allocation2 + $0x48] sm:$0xff]
        %v5453 = vld [vmem:[#allocation2 + $0x50] sm:$0xff]
        %v5454 = vld [vmem:[#allocation2 + $0x58] sm:$0xff]
        %v5455 = vld [vmem:[#allocation2 + $0x60] sm:$0xff]
        %v5456 = vld [vmem:[#allocation2 + $0x68] sm:$0xff]
        %v5457 = vld [vmem:[#allocation2 + $0x70] sm:$0xff]
        %v5458 = vld [vmem:[#allocation2 + $0x78] sm:$0xff]
        %v5459 = vld [vmem:[#allocation2 + $0x80] sm:$0xff]
        %v5460 = vld [vmem:[#allocation2 + $0x88] sm:$0xff]
        %v5461 = vld [vmem:[#allocation2 + $0x90] sm:$0xff]
        %v5462 = vld [vmem:[#allocation2 + $0x98] sm:$0xff]
        %v5463 = vld [vmem:[#allocation2 + $0xa0] sm:$0xff]
        %v5464 = vld [vmem:[#allocation2 + $0xa8] sm:$0xff]
        %v5465 = vld [vmem:[#allocation2 + $0xb0] sm:$0xff]
        %v5466 = vld [vmem:[#allocation2 + $0xb8] sm:$0xff]
        %v5467 = vld [vmem:[#allocation2 + $0xc0] sm:$0xff]
        %v5468 = vld [vmem:[#allocation2 + $0xc8] sm:$0xff]
        %v5469 = vld [vmem:[#allocation2 + $0xd0] sm:$0xff]
        %v5470 = vld [vmem:[#allocation2 + $0xd8] sm:$0xff]
        %v5471 = vld [vmem:[#allocation2 + $0xe0] sm:$0xff]
        %v5472 = vld [vmem:[#allocation2 + $0xe8] sm:$0xff]
        %v5473 = vld [vmem:[#allocation2 + $0xf0] sm:$0xff]
        %v5474 = vld [vmem:[#allocation2 + $0xf8] sm:$0xff]
        %v5475 = vld [vmem:[%s6] sm:$0xf]
        %v5476 = vpack.c.bf16 %v4922, %v4818
        %v5477 = vpack.c.bf16 %v5130, %v5026
        %v5478 = vpack.c.bf16 %v5338, %v5234
        %v5479 = vpack.c.bf16 %v5442, %v5442
        %v5481 = vlaneseq
        %v5482 = vshrl.u32 %v5481, 7
        %v5483 = vsub.s32 0, %v5482
        %v5484 = vrot.slane %v5475, %v5483
        %v5485 = vlaneseq
        %v5486 = vshrl.u32 %v5485, 7
        %v5487 = vsub.s32 1, %v5486
        %v5488 = vrot.slane %v5475, %v5487
        %v5489 = vlaneseq
        %v5490 = vshrl.u32 %v5489, 7
        %v5491 = vsub.s32 2, %v5490
        %v5492 = vrot.slane %v5475, %v5491
        %v5493 = vlaneseq
        %v5494 = vshrl.u32 %v5493, 7
        %v5495 = vsub.s32 3, %v5494
        %v5496 = vrot.slane %v5475, %v5495
        %v5533 = vunpack.c.l.b16 %v5443
        %v5534 = vunpack.c.h.b16 %v5443
        %v5535 = vunpack.c.l.b16 %v5444
        %v5536 = vunpack.c.h.b16 %v5444
        %v5537 = vunpack.c.l.b16 %v5445
        %v5538 = vunpack.c.h.b16 %v5445
        %v5539 = vunpack.c.l.b16 %v5446
        %v5540 = vunpack.c.h.b16 %v5446
        %v5541 = vunpack.c.l.b16 %v5447
        %v5542 = vunpack.c.h.b16 %v5447
        %v5543 = vunpack.c.l.b16 %v5448
        %v5544 = vunpack.c.h.b16 %v5448
        %v5545 = vunpack.c.l.b16 %v5449
        %v5546 = vunpack.c.h.b16 %v5449
        %v5547 = vunpack.c.l.b16 %v5450
        %v5548 = vunpack.c.h.b16 %v5450
        %v5549 = vunpack.c.l.b16 %v5451
        %v5550 = vunpack.c.h.b16 %v5451
        %v5551 = vunpack.c.l.b16 %v5452
        %v5552 = vunpack.c.h.b16 %v5452
        %v5553 = vunpack.c.l.b16 %v5453
        %v5554 = vunpack.c.h.b16 %v5453
        %v5555 = vunpack.c.l.b16 %v5454
        %v5556 = vunpack.c.h.b16 %v5454
        %v5557 = vunpack.c.l.b16 %v5455
        %v5558 = vunpack.c.h.b16 %v5455
        %v5559 = vunpack.c.l.b16 %v5456
        %v5560 = vunpack.c.h.b16 %v5456
        %v5561 = vunpack.c.l.b16 %v5457
        %v5562 = vunpack.c.h.b16 %v5457
        %v5563 = vunpack.c.l.b16 %v5458
        %v5564 = vunpack.c.h.b16 %v5458
        %v5565 = vunpack.c.l.b16 %v5459
        %v5566 = vunpack.c.h.b16 %v5459
        %v5567 = vunpack.c.l.b16 %v5460
        %v5568 = vunpack.c.h.b16 %v5460
        %v5569 = vunpack.c.l.b16 %v5461
        %v5570 = vunpack.c.h.b16 %v5461
        %v5571 = vunpack.c.l.b16 %v5462
        %v5572 = vunpack.c.h.b16 %v5462
        %v5573 = vunpack.c.l.b16 %v5463
        %v5574 = vunpack.c.h.b16 %v5463
        %v5575 = vunpack.c.l.b16 %v5464
        %v5576 = vunpack.c.h.b16 %v5464
        %v5577 = vunpack.c.l.b16 %v5465
        %v5578 = vunpack.c.h.b16 %v5465
        %v5579 = vunpack.c.l.b16 %v5466
        %v5580 = vunpack.c.h.b16 %v5466
        %v5581 = vunpack.c.l.b16 %v5467
        %v5582 = vunpack.c.h.b16 %v5467
        %v5583 = vunpack.c.l.b16 %v5468
        %v5584 = vunpack.c.h.b16 %v5468
        %v5585 = vunpack.c.l.b16 %v5469
        %v5586 = vunpack.c.h.b16 %v5469
        %v5587 = vunpack.c.l.b16 %v5470
        %v5588 = vunpack.c.h.b16 %v5470
        %v5589 = vunpack.c.l.b16 %v5471
        %v5590 = vunpack.c.h.b16 %v5471
        %v5591 = vunpack.c.l.b16 %v5472
        %v5592 = vunpack.c.h.b16 %v5472
        %v5593 = vunpack.c.l.b16 %v5473
        %v5594 = vunpack.c.h.b16 %v5473
        %v5595 = vunpack.c.l.b16 %v5474
        %v5596 = vunpack.c.h.b16 %v5474
        %v5597 = vpack.c.b16 %v5537, %v5533
        %v5598 = vpack.c.b16 %v5538, %v5534
        %v5599 = vpack.c.b16 %v5539, %v5535
        %v5600 = vpack.c.b16 %v5540, %v5536
        %v5601 = vpack.c.b16 %v5545, %v5541
        %v5602 = vpack.c.b16 %v5546, %v5542
        %v5603 = vpack.c.b16 %v5547, %v5543
        %v5604 = vpack.c.b16 %v5548, %v5544
        %v5605 = vpack.c.b16 %v5553, %v5549
        %v5606 = vpack.c.b16 %v5554, %v5550
        %v5607 = vpack.c.b16 %v5555, %v5551
        %v5608 = vpack.c.b16 %v5556, %v5552
        %v5609 = vpack.c.b16 %v5561, %v5557
        %v5610 = vpack.c.b16 %v5562, %v5558
        %v5611 = vpack.c.b16 %v5563, %v5559
        %v5612 = vpack.c.b16 %v5564, %v5560
        %v5613 = vpack.c.b16 %v5569, %v5565
        %v5614 = vpack.c.b16 %v5570, %v5566
        %v5615 = vpack.c.b16 %v5571, %v5567
        %v5616 = vpack.c.b16 %v5572, %v5568
        %v5617 = vpack.c.b16 %v5577, %v5573
        %v5618 = vpack.c.b16 %v5578, %v5574
        %v5619 = vpack.c.b16 %v5579, %v5575
        %v5620 = vpack.c.b16 %v5580, %v5576
        %v5621 = vpack.c.b16 %v5585, %v5581
        %v5622 = vpack.c.b16 %v5586, %v5582
        %v5623 = vpack.c.b16 %v5587, %v5583
        %v5624 = vpack.c.b16 %v5588, %v5584
        %v5625 = vpack.c.b16 %v5593, %v5589
        %v5626 = vpack.c.b16 %v5594, %v5590
        %v5627 = vpack.c.b16 %v5595, %v5591
        %v5628 = vpack.c.b16 %v5596, %v5592
        %5661 = vmatprep.subr.bf16.mxu0 %v5598
        %5662 = vmatpush1.bf16.msra.mxu0 %v5597
        %5663 = vmatprep.subr.bf16.mxu0 %v5602
        %5664 = vmatpush1.bf16.msra.mxu0 %v5601
        %5665 = vmatprep.subr.bf16.mxu0 %v5606
        %5666 = vmatpush1.bf16.msra.mxu0 %v5605
        %5667 = vmatprep.subr.bf16.mxu0 %v5610
        %5668 = vmatpush1.bf16.msra.mxu0 %v5609
        %5669 = vmatprep.subr.bf16.mxu0 %v5614
        %5670 = vmatpush1.bf16.msra.mxu0 %v5613
        %5671 = vmatprep.subr.bf16.mxu0 %v5618
        %5672 = vmatpush1.bf16.msra.mxu0 %v5617
        %5673 = vmatprep.subr.bf16.mxu0 %v5622
        %5674 = vmatpush1.bf16.msra.mxu0 %v5621
        %5675 = vmatprep.subr.bf16.mxu0 %v5626
        %5676 = vmatpush1.bf16.msra.mxu0 %v5625
        %5677 = vmatprep.subr.bf16.mxu0 0
        %5678 = vmatpush1.bf16.msra.mxu0 0
        %5679 = vmatprep.subr.bf16.mxu0 0
        %5680 = vmatpush1.bf16.msra.mxu0 0
        %5681 = vmatprep.subr.bf16.mxu0 0
        %5682 = vmatpush1.bf16.msra.mxu0 0
        %5683 = vmatprep.subr.bf16.mxu0 0
        %5684 = vmatpush1.bf16.msra.mxu0 0
        %5685 = vmatprep.subr.bf16.mxu0 0
        %5686 = vmatpush1.bf16.msra.mxu0 0
        %5687 = vmatprep.subr.bf16.mxu0 0
        %5688 = vmatpush1.bf16.msra.mxu0 0
        %5689 = vmatprep.subr.bf16.mxu0 0
        %5690 = vmatpush1.bf16.msra.mxu0 0
        %5691 = vmatprep.subr.bf16.mxu0 0
        %5692 = vmatpush1.bf16.msra.mxu0 0
        %5693 = vmatprep.mubr.bf16.mxu0 0
        %5694 = vmatmul.mubr.bf16.gmra.mrb[0].mxu0 %v5476
        %v5695 = vpop.f32.mrb[0].mxu0
        %v5696 = vadd.f32 %v5484, %v5695
        %v5697 = vpop.f32.mrb[0].mxu0
        %v5698 = vadd.f32 %v5488, %v5697
        %v5699 = vpop.f32.mrb[0].mxu0
        %v5700 = vadd.f32 %v5484, %v5699
        %v5701 = vpop.f32.mrb[0].mxu0
        %v5702 = vadd.f32 %v5488, %v5701
        %5703 = vmatprep.mubr.bf16.mxu0 0
        %5704 = vmatmul.mubr.bf16.gmra.mrb[0].mxu0 %v5477
        %v5705 = vpop.f32.mrb[0].mxu0
        %v5706 = vadd.f32 %v5484, %v5705
        %v5707 = vpop.f32.mrb[0].mxu0
        %v5708 = vadd.f32 %v5488, %v5707
        %v5709 = vpop.f32.mrb[0].mxu0
        %v5710 = vadd.f32 %v5484, %v5709
        %v5711 = vpop.f32.mrb[0].mxu0
        %v5712 = vadd.f32 %v5488, %v5711
        %5713 = vmatprep.mubr.bf16.mxu0 0
        %5714 = vmatmul.mubr.bf16.gmra.mrb[0].mxu0 %v5478
        %v5715 = vpop.f32.mrb[0].mxu0
        %v5716 = vadd.f32 %v5484, %v5715
        %v5717 = vpop.f32.mrb[0].mxu0
        %v5718 = vadd.f32 %v5488, %v5717
        %v5719 = vpop.f32.mrb[0].mxu0
        %v5720 = vadd.f32 %v5484, %v5719
        %v5721 = vpop.f32.mrb[0].mxu0
        %v5722 = vadd.f32 %v5488, %v5721
        %5723 = vmatprep.mubr.bf16.mxu0 0
        %5724 = vmatmul.mubr.bf16.gmra.mrb[0].mxu0 %v5479
        %v5725 = vpop.f32.mrb[0].mxu0
        %v5726 = vadd.f32 %v5484, %v5725
        %v5727 = vpop.f32.mrb[0].mxu0
        %v5728 = vadd.f32 %v5488, %v5727
        %v5729 = vpop.f32.mrb[0].mxu0
        %v5730 = vpop.f32.mrb[0].mxu0
        %5731 = vdwg.mxu0
        %5732 = vmatprep.subr.bf16.mxu0 %v5600
        %5733 = vmatpush1.bf16.msra.mxu0 %v5599
        %5734 = vmatprep.subr.bf16.mxu0 %v5604
        %5735 = vmatpush1.bf16.msra.mxu0 %v5603
        %5736 = vmatprep.subr.bf16.mxu0 %v5608
        %5737 = vmatpush1.bf16.msra.mxu0 %v5607
        %5738 = vmatprep.subr.bf16.mxu0 %v5612
        %5739 = vmatpush1.bf16.msra.mxu0 %v5611
        %5740 = vmatprep.subr.bf16.mxu0 %v5616
        %5741 = vmatpush1.bf16.msra.mxu0 %v5615
        %5742 = vmatprep.subr.bf16.mxu0 %v5620
        %5743 = vmatpush1.bf16.msra.mxu0 %v5619
        %5744 = vmatprep.subr.bf16.mxu0 %v5624
        %5745 = vmatpush1.bf16.msra.mxu0 %v5623
        %5746 = vmatprep.subr.bf16.mxu0 %v5628
        %5747 = vmatpush1.bf16.msra.mxu0 %v5627
        %5748 = vmatprep.subr.bf16.mxu0 0
        %5749 = vmatpush1.bf16.msra.mxu0 0
        %5750 = vmatprep.subr.bf16.mxu0 0
        %5751 = vmatpush1.bf16.msra.mxu0 0
        %5752 = vmatprep.subr.bf16.mxu0 0
        %5753 = vmatpush1.bf16.msra.mxu0 0
        %5754 = vmatprep.subr.bf16.mxu0 0
        %5755 = vmatpush1.bf16.msra.mxu0 0
        %5756 = vmatprep.subr.bf16.mxu0 0
        %5757 = vmatpush1.bf16.msra.mxu0 0
        %5758 = vmatprep.subr.bf16.mxu0 0
        %5759 = vmatpush1.bf16.msra.mxu0 0
        %5760 = vmatprep.subr.bf16.mxu0 0
        %5761 = vmatpush1.bf16.msra.mxu0 0
        %5762 = vmatprep.subr.bf16.mxu0 0
        %5763 = vmatpush1.bf16.msra.mxu0 0
        %5764 = vmatprep.mubr.bf16.mxu0 0
        %5765 = vmatmul.mubr.bf16.gmra.mrb[0].mxu0 %v5476
        %v5766 = vpop.f32.mrb[0].mxu0
        %v5767 = vadd.f32 %v5492, %v5766
        %v5768 = vpop.f32.mrb[0].mxu0
        %v5769 = vadd.f32 %v5496, %v5768
        %v5770 = vpop.f32.mrb[0].mxu0
        %v5771 = vadd.f32 %v5492, %v5770
        %v5772 = vpop.f32.mrb[0].mxu0
        %v5773 = vadd.f32 %v5496, %v5772
        %5774 = vmatprep.mubr.bf16.mxu0 0
        %5775 = vmatmul.mubr.bf16.gmra.mrb[0].mxu0 %v5477
        %v5776 = vpop.f32.mrb[0].mxu0
        %v5777 = vadd.f32 %v5492, %v5776
        %v5778 = vpop.f32.mrb[0].mxu0
        %v5779 = vadd.f32 %v5496, %v5778
        %v5780 = vpop.f32.mrb[0].mxu0
        %v5781 = vadd.f32 %v5492, %v5780
        %v5782 = vpop.f32.mrb[0].mxu0
        %v5783 = vadd.f32 %v5496, %v5782
        %5784 = vmatprep.mubr.bf16.mxu0 0
        %5785 = vmatmul.mubr.bf16.gmra.mrb[0].mxu0 %v5478
        %v5786 = vpop.f32.mrb[0].mxu0
        %v5787 = vadd.f32 %v5492, %v5786
        %v5788 = vpop.f32.mrb[0].mxu0
        %v5789 = vadd.f32 %v5496, %v5788
        %v5790 = vpop.f32.mrb[0].mxu0
        %v5791 = vadd.f32 %v5492, %v5790
        %v5792 = vpop.f32.mrb[0].mxu0
        %v5793 = vadd.f32 %v5496, %v5792
        %5794 = vmatprep.mubr.bf16.mxu0 0
        %5795 = vmatmul.mubr.bf16.gmra.mrb[0].mxu0 %v5479
        %v5796 = vpop.f32.mrb[0].mxu0
        %v5797 = vadd.f32 %v5492, %v5796
        %v5798 = vpop.f32.mrb[0].mxu0
        %v5799 = vadd.f32 %v5496, %v5798
        %v5800 = vpop.f32.mrb[0].mxu0
        %v5801 = vpop.f32.mrb[0].mxu0
        %5802 = vdwg.mxu0
        %5803 = vst [vmem:[%s287] sm:$0xff] %v5696
        %5804 = vst [vmem:[%s287 + $0x8] sm:$0xff] %v5698
        %5805 = vst [vmem:[%s287 + $0x10] sm:$0xff] %v5767
        %5806 = vst [vmem:[%s287 + $0x18] sm:$0xff] %v5769
        %5807 = vst [vmem:[%s287 + $0x20] sm:$0xff] %v5700
        %5808 = vst [vmem:[%s287 + $0x28] sm:$0xff] %v5702
        %5809 = vst [vmem:[%s287 + $0x30] sm:$0xff] %v5771
        %5810 = vst [vmem:[%s287 + $0x38] sm:$0xff] %v5773
        %5811 = vst [vmem:[%s287 + $0x40] sm:$0xff] %v5706
        %5812 = vst [vmem:[%s287 + $0x48] sm:$0xff] %v5708
        %5813 = vst [vmem:[%s287 + $0x50] sm:$0xff] %v5777
        %5814 = vst [vmem:[%s287 + $0x58] sm:$0xff] %v5779
        %5815 = vst [vmem:[%s287 + $0x60] sm:$0xff] %v5710
        %5816 = vst [vmem:[%s287 + $0x68] sm:$0xff] %v5712
        %5817 = vst [vmem:[%s287 + $0x70] sm:$0xff] %v5781
        %5818 = vst [vmem:[%s287 + $0x78] sm:$0xff] %v5783
        %5819 = vst [vmem:[%s287 + $0x80] sm:$0xff] %v5716
        %5820 = vst [vmem:[%s287 + $0x88] sm:$0xff] %v5718
        %5821 = vst [vmem:[%s287 + $0x90] sm:$0xff] %v5787
        %5822 = vst [vmem:[%s287 + $0x98] sm:$0xff] %v5789
        %5823 = vst [vmem:[%s287 + $0xa0] sm:$0xff] %v5720
        %5824 = vst [vmem:[%s287 + $0xa8] sm:$0xff] %v5722
        %5825 = vst [vmem:[%s287 + $0xb0] sm:$0xff] %v5791
        %5826 = vst [vmem:[%s287 + $0xb8] sm:$0xff] %v5793
        %5827 = vst [vmem:[%s287 + $0xc0] sm:$0xff] %v5726
        %5828 = vst [vmem:[%s287 + $0xc8] sm:$0xff] %v5728
        %5829 = vst [vmem:[%s287 + $0xd0] sm:$0xff] %v5797
        %5830 = vst [vmem:[%s287 + $0xd8] sm:$0xff] %v5799
        %s5831 = sand.u32 %s182, 1
        %s5832 = scalar_lea.sflag [#allocation4], %s5831
        %s5833 = sand.u32 %s182, 1
        %s5834 = smul.addr %s5833, 224
        %s5835 = scalar_lea.vmem [#allocation5], %s5834
        // Predicated region
        $region53: #{tpu_custom_call.1} parent=47 // pred_check
          %p5836 = pneg %p192
        $region54: #{tpu_custom_call.1} parent=47 // pred_check_branch
          %5838 = sbr.rel (%p5836) target = $region56
        $region55: #{tpu_custom_call.1} parent=47 // pred_region
          %s5839 = smul.u32 7, %s22
          %s5841 = ssub.s32 3584, 3584
          %5842 = vsyncadd %s5832, %s5841
          %s5843 = smul.addr %s5839, 4
          %s5844 = smul.addr %s5843, 128
          %s5845 = scalar_lea.hbm %s7, %s5844
          %s5846 = sshll.u32 %s5835, 4
          %s5847 = int_to_ptr.vmem [resolvable:$true] %s5846
          %5852 = dma.vmem_to_hbm [thread:$0]  %s5847, 3584, %s5845, %s5832, 512, 512, 32
        $region56: #{tpu_custom_call.1} parent=47 // pred_fallthru
          _
      $region48: #{tpu_custom_call.1} parent=5 // pred_fallthru
        _
      %p5853 = scmp.le.s32.totalorder 2, %s17
      // Predicated region
      $region57: #{tpu_custom_call.1} parent=5 // pred_check
        %p5854 = pneg %p5853
      $region58: #{tpu_custom_call.1} parent=5 // pred_check_branch
        %5856 = sbr.rel (%p5854) target = $region60
      $region59: #{tpu_custom_call.1} parent=5 // pred_region
        %s5857 = ssub.s32 %s17, 2
        // Predicated region
        $region61: #{tpu_custom_call.1} parent=59 // pred_check
          %p5858 = pneg %p198
        $region62: #{tpu_custom_call.1} parent=59 // pred_check_branch
          %5860 = sbr.rel (%p5858) target = $region64
        $region63: #{tpu_custom_call.1} parent=59 // pred_region
          %s5861 = sand.u32 %s183, 1
          %s5862 = scalar_lea.sflag [#allocation4], %s5861
          %s5863 = sand.u32 %s183, 1
          %s5864 = smul.addr %s5863, 224
          %s5865 = scalar_lea.vmem [#allocation5], %s5864
          %5866 = dma.done %s5862, 3584
        $region64: #{tpu_custom_call.1} parent=59 // pred_fallthru
          _
      $region60: #{tpu_custom_call.1} parent=5 // pred_fallthru
        _
    $region6: #{tpu_custom_call.1} parent=1 // loop_footer
      %s21 = sadd.s32 1, %s17
    $region7: #{tpu_custom_call.1} parent=1 // loop_footer_branch
      %16 = sbr.rel target = $region3
    $region8: #{tpu_custom_call.1} parent=1 // loop_exit
      _
    %5867 = vsyncpa [#allocation3], 1
    %s5868 = scalar_lea.sflag [#allocation3], 1
    %5869 = vsyncpa %s5868, 1
    %5870 = vsyncpa [#allocation4], 1
    %s5871 = scalar_lea.sflag [#allocation4], 1
    %5872 = vsyncpa %s5871, 1

</llo_original>
